<compile_context>
chip_gen: v6e
topology: v6e:2x2x1
jax: 0.10.0
libtpu: 0.0.40
codegen_flags: <defaults>
</compile_context>

<pallas_src>
import functools

import jax
import jax.numpy as jnp
from jax import lax
from jax.experimental import pallas as pl
from jax.experimental.pallas import tpu as pltpu

_LANE = 128
_SUBLANE = 8
_VMEM_LIMIT = 48 * 1024 * 1024


def _rpad(n, m=_LANE):
    return ((n + m - 1) // m) * m


def _cparams(semantics):
    return pltpu.CompilerParams(dimension_semantics=semantics,
                                vmem_limit_bytes=_VMEM_LIMIT)


# ----------------------------------------------------------------------------
# Kernel 1: M-tiled fused matmul + bias (hoisted GRU input projections).
# ----------------------------------------------------------------------------
def _linear_kernel(x_ref, w_ref, b_ref, o_ref):
    o_ref[...] = (jnp.dot(x_ref[...].astype(jnp.bfloat16), w_ref[...],
                          preferred_element_type=jnp.float32)
                  + b_ref[...]).astype(o_ref.dtype)


def pallas_linear(x, w, b, tm=1024):
    """x:(M,K) f32, w:(K,N) bf16 (lane-padded), b:(1,N) f32 -> (M,N) f32."""
    M, K = x.shape
    _, N = w.shape
    budget = 24 << 20                              # double-buffered x/out rows
    per_row = (K + N) * 4 * 2
    tm = min(tm, M, max(_SUBLANE, (budget // per_row) // _SUBLANE * _SUBLANE))
    while tm > _SUBLANE and M % tm:
        tm -= _SUBLANE
    if M % tm:
        tm = M
    return pl.pallas_call(
        _linear_kernel,
        out_shape=jax.ShapeDtypeStruct((M, N), jnp.float32),
        grid=(M // tm,),
        in_specs=[pl.BlockSpec((tm, K), lambda i: (i, 0)),
                  pl.BlockSpec((K, N), lambda i: (0, 0)),
                  pl.BlockSpec((1, N), lambda i: (0, 0))],
        out_specs=pl.BlockSpec((tm, N), lambda i: (i, 0)),
        compiler_params=_cparams(("parallel",)),
    )(x, w, b)


# ----------------------------------------------------------------------------
# Kernel 2: fused conv block (causal conv stack + 1x1 skip + concat + stride-2
# reduction conv) on a VMEM-resident row tile of whole batches.
# ----------------------------------------------------------------------------
def _conv_block_kernel(*refs, n_layers, L):
    x_ref = refs[0]
    ws_ref, bs_ref, we_ref, wo_ref, br_ref = refs[1 + 2 * n_layers:1 + 2 * n_layers + 5]
    out_ref, q_ref = refs[-2], refs[-1]

    x = x_ref[...]                                    # (rows, C_in) f32, rows = bb*L
    rows = x.shape[0]
    half = rows // 2

    row = lax.broadcasted_iota(jnp.int32, (rows, 1), 0)
    not_first = (row % L) != 0                        # zero h[t-1] at each batch's t = 0

    # main causal-conv stack: y[t] = relu([h[t-1] | h[t]] @ [W_prev; W_cur] + b)
    h = x
    for i in range(n_layers):
        wk = refs[1 + 2 * i][...]                     # bf16 (2*C, NF)
        b = refs[2 + 2 * i][...]                      # f32  (1, NF)
        hprev = jnp.where(not_first, pltpu.roll(h, 1, 0), 0.0)
        xk = jnp.concatenate([hprev, h], axis=-1).astype(jnp.bfloat16)
        h = jnp.maximum(
            jnp.dot(xk, wk, preferred_element_type=jnp.float32) + b, 0.0)

    # 1x1 skip conv on the block input
    s = jnp.maximum(
        jnp.dot(x.astype(jnp.bfloat16), ws_ref[...],
                preferred_element_type=jnp.float32) + bs_ref[...], 0.0)

    # channel concat + fused k=2 stride-2 reduction conv.
    # q[t] = cat[t] @ W_even + cat[t+1] @ W_odd; only even-t rows are kept.
    cat = jnp.concatenate([h, s], axis=-1)            # (rows, NF+NS) f32
    cat_next = pltpu.roll(cat, rows - 1, 0)           # cat[t+1]; wrapped rows are odd -> dropped
    q = (jnp.dot(cat.astype(jnp.bfloat16), we_ref[...],
                 preferred_element_type=jnp.float32)
         + jnp.dot(cat_next.astype(jnp.bfloat16), wo_ref[...],
                   preferred_element_type=jnp.float32)
         + br_ref[...])
    q_ref[...] = q
    out_ref[...] = q_ref[pl.ds(0, half, stride=2), :]  # keep even timesteps (stride 2)


def _pick_bb(batch, length, target_rows=512):
    """Whole batches per row tile; input (bb*L) and output (bb*L/2) block rows must both be
    sublane-aligned unless the tile covers the whole batch."""
    valid = [bb for bb in range(1, batch + 1)
             if batch % bb == 0 and (bb * length) % (2 * _SUBLANE) == 0]
    if not valid:
        return batch
    big = [bb for bb in valid if bb * length >= target_rows]
    return big[0] if big else valid[0]


def pallas_conv_block(x2d, bp, *, batch, length):
    rows, cin = x2d.shape
    assert rows == batch * length and length % 2 == 0
    n_layers = len(bp["layers"])
    ctotp = bp["we"].shape[1]
    bb = _pick_bb(batch, length)
    rows_t = bb * length

    inputs = [x2d]
    in_specs = [pl.BlockSpec((rows_t, cin), lambda i: (i, 0))]
    for (wk, b) in bp["layers"]:
        inputs += [wk, b]
        in_specs += [pl.BlockSpec(wk.shape, lambda i: (0, 0)),
                     pl.BlockSpec(b.shape, lambda i: (0, 0))]
    for a in (bp["ws"], bp["bs"], bp["we"], bp["wo"], bp["br"]):
        inputs.append(a)
        in_specs.append(pl.BlockSpec(a.shape, lambda i: (0, 0)))

    return pl.pallas_call(
        functools.partial(_conv_block_kernel, n_layers=n_layers, L=length),
        out_shape=jax.ShapeDtypeStruct((batch * (length // 2), ctotp), jnp.float32),
        grid=(batch // bb,),
        in_specs=in_specs,
        out_specs=pl.BlockSpec((rows_t // 2, ctotp), lambda i: (i, 0)),
        scratch_shapes=[pltpu.VMEM((rows_t, ctotp), jnp.float32)],
        compiler_params=_cparams(("parallel",)),
    )(*inputs)


# ----------------------------------------------------------------------------
# Kernel 3: GRU recurrence.  Gates (x @ W_ih + biases) are precomputed outside
# as one GEMM and passed as a single time-major (T, B, 3H) array; the kernel
# does ONE fused (B,H)x(H,3H) hidden matmul per timestep, static lane slices
# for r/z/n, and carries h in VMEM scratch across time chunks.
# ----------------------------------------------------------------------------
def _gru_kernel(gi_ref, whh_ref, bhn_ref, out_ref, h_ref, *, tt, hp, return_seq):
    c = pl.program_id(0)

    @pl.when(c == 0)
    def _():
        h_ref[...] = jnp.zeros_like(h_ref)

    whh = whh_ref[...]                     # bf16 (HP, 3*HP)
    bhn = bhn_ref[...]                     # f32  (1, HP)

    h = h_ref[...]
    for j in range(tt):                    # static unroll, static indices
        g = gi_ref[j]                      # (BP, 3*HP) f32
        hh = jnp.dot(h.astype(jnp.bfloat16), whh,
                     preferred_element_type=jnp.float32)
        r = jax.nn.sigmoid(g[:, :hp] + hh[:, :hp])
        z = jax.nn.sigmoid(g[:, hp:2 * hp] + hh[:, hp:2 * hp])
        n = jnp.tanh(g[:, 2 * hp:] + r * (hh[:, 2 * hp:] + bhn))
        h = (1.0 - z) * n + z * h
        if return_seq:
            out_ref[j] = h.astype(out_ref.dtype)
    h_ref[...] = h

    if not return_seq:
        out_ref[...] = h.astype(out_ref.dtype)


def _time_chunk(T, bp_rows, g, budget=8 << 20, max_tt=64):
    per_t = bp_rows * g * 4 * 2            # gate chunk, double-buffered f32
    tt = max(1, min(T, max_tt, budget // max(per_t, 1)))
    while T % tt:
        tt -= 1
    return tt


def pallas_gru(gi, w_hh, b_hn, *, return_seq):
    """gi: (T, BP, 3*HP) time-major gates.  Returns (T, BP, HP) or final (BP, HP)."""
    T, BP, G = gi.shape
    HP = w_hh.shape[0]
    tt = _time_chunk(T, BP, G)
    gi_spec = pl.BlockSpec((tt, BP, G), lambda c: (c, 0, 0))
    whh_spec = pl.BlockSpec(w_hh.shape, lambda c: (0, 0))
    bhn_spec = pl.BlockSpec(b_hn.shape, lambda c: (0, 0))
    if return_seq:
        out_shape = jax.ShapeDtypeStruct((T, BP, HP), jnp.float32)
        out_spec = pl.BlockSpec((tt, BP, HP), lambda c: (c, 0, 0))
    else:
        out_shape = jax.ShapeDtypeStruct((BP, HP), jnp.float32)
        out_spec = pl.BlockSpec((BP, HP), lambda c: (0, 0))
    return pl.pallas_call(
        functools.partial(_gru_kernel, tt=tt, hp=HP, return_seq=return_seq),
        out_shape=out_shape,
        grid=(T // tt,),
        in_specs=[gi_spec, whh_spec, bhn_spec],
        out_specs=out_spec,
        scratch_shapes=[pltpu.VMEM((BP, HP), jnp.float32)],
        compiler_params=_cparams(("arbitrary",)),
    )(gi, w_hh, b_hn)


# ----------------------------------------------------------------------------
# Kernel 4: fused classifier MLP (all Linear(+ReLU) layers in one kernel).
# ----------------------------------------------------------------------------
def _mlp_kernel(*refs, n_layers):
    x_ref, out_ref = refs[0], refs[-1]
    y = x_ref[...]
    for i in range(n_layers):
        w = refs[1 + 2 * i][...]           # bf16
        b = refs[2 + 2 * i][...]           # f32 (1, D)
        y = jnp.dot(y.astype(jnp.bfloat16), w, preferred_element_type=jnp.float32) + b
        if i < n_layers - 1:
            y = jnp.maximum(y, 0.0)
    out_ref[...] = y.astype(out_ref.dtype)


def pallas_mlp(x, layers):
    M, D = x.shape
    n_out = layers[-1][0].shape[1]
    tm = min(512, M)
    while tm > _SUBLANE and M % tm:
        tm -= _SUBLANE
    if M % tm:
        tm = M
    inputs = [x]
    in_specs = [pl.BlockSpec((tm, D), lambda i: (i, 0))]
    for (w, b) in layers:
        inputs += [w, b]
        in_specs += [pl.BlockSpec(w.shape, lambda i: (0, 0)),
                     pl.BlockSpec(b.shape, lambda i: (0, 0))]
    return pl.pallas_call(
        functools.partial(_mlp_kernel, n_layers=len(layers)),
        out_shape=jax.ShapeDtypeStruct((M, n_out), jnp.float32),
        grid=(M // tm,),
        in_specs=in_specs,
        out_specs=pl.BlockSpec((tm, n_out), lambda i: (i, 0)),
        compiler_params=_cparams(("parallel",)),
    )(*inputs)


# ----------------------------------------------------------------------------
# Parameter init: canonical shapes, zero-padded to 128 lanes, weights pre-cast
# to bf16 (biases stay f32).  Padded channels/hidden units provably remain zero.
# ----------------------------------------------------------------------------
def _uni(key, shape, scale):
    return jax.random.uniform(key, shape, jnp.float32, minval=-scale, maxval=scale)


def init_params(key, cfg):
    p = {"conv": [], "gru": [], "classifier": []}

    # ---- temporal compressor ----
    c_in = cfg["n_input_channels"]
    cp_in = c_in                                   # block-0 input is not lane-padded
    for i in range(cfg["n_blocks"]):
        nf, ns = cfg["n_filters_per_block"][i], cfg["n_filters_per_skip"][i]
        nfp, nsp = _rpad(nf), _rpad(ns)
        layers = []
        c, cp = c_in, cp_in
        for _ in range(cfg["n_layers_per_block"][i]):
            key, kp_, kc_, kb_ = jax.random.split(key, 4)
            scale = (2 * c) ** -0.5                # torch Conv1d fan_in = in_ch * kernel
            wk = jnp.zeros((2 * cp, nfp), jnp.float32)
            wk = wk.at[:c, :nf].set(_uni(kp_, (c, nf), scale))          # W_prev (k=0)
            wk = wk.at[cp:cp + c, :nf].set(_uni(kc_, (c, nf), scale))   # W_cur  (k=1)
            b = jnp.zeros((nfp,), jnp.float32).at[:nf].set(_uni(kb_, (nf,), scale))
            layers.append((wk.astype(jnp.bfloat16), b.reshape(1, -1)))
            c, cp = nf, nfp
        key, kw_, kb_ = jax.random.split(key, 3)
        scale = c_in ** -0.5
        ws = jnp.zeros((cp_in, nsp), jnp.float32).at[:c_in, :ns].set(
            _uni(kw_, (c_in, ns), scale))
        bs = jnp.zeros((nsp,), jnp.float32).at[:ns].set(_uni(kb_, (ns,), scale))
        ctot = nf + ns
        ctotp = _rpad(ctot)
        key, ke1, ke2, ko1, ko2, kb_ = jax.random.split(key, 6)
        scale = (2 * ctot) ** -0.5
        we = jnp.zeros((nfp + nsp, ctotp), jnp.float32)
        we = we.at[:nf, :ctot].set(_uni(ke1, (nf, ctot), scale))
        we = we.at[nfp:nfp + ns, :ctot].set(_uni(ke2, (ns, ctot), scale))
        wo = jnp.zeros((nfp + nsp, ctotp), jnp.float32)
        wo = wo.at[:nf, :ctot].set(_uni(ko1, (nf, ctot), scale))
        wo = wo.at[nfp:nfp + ns, :ctot].set(_uni(ko2, (ns, ctot), scale))
        br = jnp.zeros((ctotp,), jnp.float32).at[:ctot].set(_uni(kb_, (ctot,), scale))
        p["conv"].append(dict(
            layers=layers,
            ws=ws.astype(jnp.bfloat16), bs=bs.reshape(1, -1),
            we=we.astype(jnp.bfloat16), wo=wo.astype(jnp.bfloat16),
            br=br.reshape(1, -1)))
        c_in, cp_in = ctot, ctotp

    # ---- GRU stack (gate columns laid out [r | z | n] on 128-padded blocks) ----
    H = cfg["hidden_size"]
    HP = _rpad(H)
    c, cp = c_in, cp_in
    for _ in range(cfg["n_seq_encoder_layers"]):
        key, kih, khh, kbi, kbh = jax.random.split(key, 5)
        scale = H ** -0.5
        wih_r = _uni(kih, (c, 3 * H), scale)
        whh_r = _uni(khh, (H, 3 * H), scale)
        bih_r = _uni(kbi, (3 * H,), scale)
        bhh_r = _uni(kbh, (3 * H,), scale)
        w_ih = jnp.zeros((cp, 3 * HP), jnp.float32)
        w_hh = jnp.zeros((HP, 3 * HP), jnp.float32)
        b_ih = jnp.zeros((3 * HP,), jnp.float32)
        b_hh = jnp.zeros((3 * HP,), jnp.float32)
        for g in range(3):
            w_ih = w_ih.at[:c, g * HP:g * HP + H].set(wih_r[:, g * H:(g + 1) * H])
            w_hh = w_hh.at[:H, g * HP:g * HP + H].set(whh_r[:, g * H:(g + 1) * H])
            b_ih = b_ih.at[g * HP:g * HP + H].set(bih_r[g * H:(g + 1) * H])
            b_hh = b_hh.at[g * HP:g * HP + H].set(bhh_r[g * H:(g + 1) * H])
        # fold b_hr / b_hz into the hoisted projection; b_hn stays in-kernel (gated by r)
        b_comb = b_ih.at[:2 * HP].add(b_hh[:2 * HP])
        p["gru"].append(dict(
            w_ih=w_ih.astype(jnp.bfloat16), b_comb=b_comb.reshape(1, -1),
            w_hh=w_hh.astype(jnp.bfloat16), b_hn=b_hh[2 * HP:].reshape(1, -1)))
        c, cp = H, HP

    # ---- classifier MLP ----
    # TODO(synk): BaseClassifier's exact definition is not in the provided source; canonical
    #             MLP (Linear+ReLU per hidden layer, final Linear) is used.
    dims = ([H]
            + list(cfg["n_units_per_classifier_layer"][:cfg["n_classifier_layers"]])
            + [cfg["n_classes"]])
    d, dp = H, HP
    for j in range(1, len(dims)):
        dout = dims[j]
        dop = _rpad(dout)
        key, kw_, kb_ = jax.random.split(key, 3)
        scale = d ** -0.5
        w = jnp.zeros((dp, dop), jnp.float32).at[:d, :dout].set(_uni(kw_, (d, dout), scale))
        b = jnp.zeros((dop,), jnp.float32).at[:dout].set(_uni(kb_, (dout,), scale))
        p["classifier"].append((w.astype(jnp.bfloat16), b.reshape(1, -1)))
        d, dp = dout, dop

    return p


# ----------------------------------------------------------------------------
# Forward pass.
# ----------------------------------------------------------------------------
def forward(params, x_ncl, *, n_classes):
    """x_ncl: (B, n_input_channels, input_len) -> (B, n_classes)."""
    B, c_in, L = x_ncl.shape
    # single entry transpose to channel-last, rows ordered (batch, time)
    x2d = x_ncl.transpose(0, 2, 1).reshape(B * L, c_in)

    # temporal compressor: one fused kernel per block (conv stack + skip + concat + reduce)
    for bp in params["conv"]:
        x2d = pallas_conv_block(x2d, bp, batch=B, length=L)
        L //= 2

    # one reorder to time-major + batch padded to 8 sublanes for the GRU stack
    T = L
    C = x2d.shape[1]
    BP = _rpad(B, _SUBLANE)
    xs = x2d.reshape(B, T, C).transpose(1, 0, 2)           # (T, B, C)
    xs = jnp.pad(xs, ((0, 0), (0, BP - B), (0, 0)))
    seq2d = xs.reshape(T * BP, C)

    # GRU stack (batch_first handled above; h0 = 0; inter-layer dropout inert)
    n_gru = len(params["gru"])
    h_last = None
    for li, gp in enumerate(params["gru"]):
        gi = pallas_linear(seq2d, gp["w_ih"], gp["b_comb"])        # (T*BP, 3*HP)
        HP = gp["w_hh"].shape[0]
        gi = gi.reshape(T, BP, 3 * HP)                             # free: already time-major
        last = li == n_gru - 1
        out = pallas_gru(gi, gp["w_hh"], gp["b_hn"], return_seq=not last)
        if last:
            h_last = out                                           # (BP, HP) == h_n[-1]
        else:
            seq2d = out.reshape(T * BP, HP)

    # classifier (single fused MLP kernel), then strip lane/sublane padding
    logits = pallas_mlp(h_last, params["classifier"])
    return logits[:B, :n_classes]


if __name__ == "__main__":
    CFG = dict(
        n_blocks=2,
        n_layers_per_block=[2, 2],
        n_filters_per_block=[8, 8],
        n_filters_per_skip=[4, 4],
        reduction_strat="conv",
        input_len=16,
        n_input_channels=4,
        n_seq_encoder_layers=2,
        hidden_size=32,
        seq_encoder_dropout=0.0,
        layer_type="gru",
        n_classifier_layers=2,
        n_units_per_classifier_layer=[32, 16],
        n_classes=5,
    )

    key = jax.random.PRNGKey(0)
    k_x, k_p = jax.random.split(key)
    x = jax.random.normal(
        k_x, (2, CFG["n_input_channels"], CFG["input_len"]), dtype=jnp.float32)
    params = init_params(k_p, CFG)

    fwd = jax.jit(functools.partial(forward, n_classes=CFG["n_classes"]))
    y = jax.block_until_ready(fwd(params, x))
    assert y.shape == (2, CFG["n_classes"]), y.shape
    assert bool(jnp.all(jnp.isfinite(y)))
    print("KERNEL_OK")
</pallas_src>

<mosaic_0001>
module attributes {stable_mosaic.version = 11 : i64} {
  func.func @_conv_block_kernel(%arg0: i32, %arg1: memref<16x128xf32, #tpu.memory_space<vmem>>, %arg2: memref<256x128xbf16, #tpu.memory_space<vmem>>, %arg3: memref<1x128xf32, #tpu.memory_space<vmem>>, %arg4: memref<256x128xbf16, #tpu.memory_space<vmem>>, %arg5: memref<1x128xf32, #tpu.memory_space<vmem>>, %arg6: memref<128x128xbf16, #tpu.memory_space<vmem>>, %arg7: memref<1x128xf32, #tpu.memory_space<vmem>>, %arg8: memref<256x128xbf16, #tpu.memory_space<vmem>>, %arg9: memref<256x128xbf16, #tpu.memory_space<vmem>>, %arg10: memref<1x128xf32, #tpu.memory_space<vmem>>, %arg11: memref<8x128xf32, #tpu.memory_space<vmem>>, %arg12: memref<16x128xf32, #tpu.memory_space<vmem>>) attributes {dimension_semantics = [#tpu.dimension_semantics<parallel>], iteration_bounds = array<i64: 1>, scalar_prefetch = 0 : i64, scratch_operands = 1 : i64, tpu.core_type = #tpu.core_type<tc>, window_params = [{transform_indices = @transform_0, window_bounds = array<i64: 16, 128>}, {pipeline_mode = #tpu.pipeline_mode<synchronous>, transform_indices = @transform_1, window_bounds = array<i64: 256, 128>}, {pipeline_mode = #tpu.pipeline_mode<synchronous>, transform_indices = @transform_2, window_bounds = array<i64: 1, 128>}, {pipeline_mode = #tpu.pipeline_mode<synchronous>, transform_indices = @transform_3, window_bounds = array<i64: 256, 128>}, {pipeline_mode = #tpu.pipeline_mode<synchronous>, transform_indices = @transform_4, window_bounds = array<i64: 1, 128>}, {pipeline_mode = #tpu.pipeline_mode<synchronous>, transform_indices = @transform_5, window_bounds = array<i64: 128, 128>}, {pipeline_mode = #tpu.pipeline_mode<synchronous>, transform_indices = @transform_6, window_bounds = array<i64: 1, 128>}, {pipeline_mode = #tpu.pipeline_mode<synchronous>, transform_indices = @transform_7, window_bounds = array<i64: 256, 128>}, {pipeline_mode = #tpu.pipeline_mode<synchronous>, transform_indices = @transform_8, window_bounds = array<i64: 256, 128>}, {pipeline_mode = #tpu.pipeline_mode<synchronous>, transform_indices = @transform_9, window_bounds = array<i64: 1, 128>}, {transform_indices = @transform_10, window_bounds = array<i64: 8, 128>}]} {
    %c0 = arith.constant 0 : index
    %c0_0 = arith.constant 0 : index
    %0 = vector.load %arg1[%c0, %c0_0] : memref<16x128xf32, #tpu.memory_space<vmem>>, vector<16x128xf32>
    %1 = tpu.iota {dimensions = array<i32: 0>} : vector<16x1xi32>
    %c8_i32 = arith.constant 8 : i32
    %c0_i32 = arith.constant 0 : i32
    %2 = arith.cmpi eq, %c8_i32, %c0_i32 : i32
    %c1_i32 = arith.constant 1 : i32
    %3 = arith.select %2, %c1_i32, %c8_i32 : i32
    %4 = vector.broadcast %3 : i32 to vector<16x1xi32>
    %5 = arith.remsi %1, %4 : vector<16x1xi32>
    %c0_i32_1 = arith.constant 0 : i32
    %6 = vector.broadcast %c0_i32_1 : i32 to vector<16x1xi32>
    %7 = arith.cmpi ne, %5, %6 : vector<16x1xi32>
    %c0_i32_2 = arith.constant 0 : i32
    %8 = vector.broadcast %c0_i32_2 : i32 to vector<16x1xi32>
    %9 = arith.cmpi slt, %5, %8 : vector<16x1xi32>
    %c0_i32_3 = arith.constant 0 : i32
    %10 = arith.cmpi slt, %3, %c0_i32_3 : i32
    %11 = vector.broadcast %10 : i1 to vector<16x1xi1>
    %12 = vector.broadcast %11 : vector<16x1xi1> to vector<16x1xi1>
    %13 = arith.xori %9, %12 : vector<16x1xi1>
    %14 = arith.andi %13, %7 : vector<16x1xi1>
    %15 = vector.broadcast %3 : i32 to vector<16x1xi32>
    %16 = arith.addi %5, %15 : vector<16x1xi32>
    %17 = arith.select %14, %16, %5 : vector<16x1xi1>, vector<16x1xi32>
    %c0_i32_4 = arith.constant 0 : i32
    %18 = vector.broadcast %c0_i32_4 : i32 to vector<16x1xi32>
    %19 = arith.cmpi ne, %17, %18 : vector<16x1xi32>
    %c0_5 = arith.constant 0 : index
    %c0_6 = arith.constant 0 : index
    %20 = vector.load %arg2[%c0_5, %c0_6] : memref<256x128xbf16, #tpu.memory_space<vmem>>, vector<256x128xbf16>
    %c0_7 = arith.constant 0 : index
    %c0_8 = arith.constant 0 : index
    %21 = vector.load %arg3[%c0_7, %c0_8] : memref<1x128xf32, #tpu.memory_space<vmem>>, vector<1x128xf32>
    %c1_i32_9 = arith.constant 1 : i32
    %22 = tpu.dynamic_rotate %0 by %c1_i32_9 dim 0 : vector<16x128xf32>, i32 -> vector<16x128xf32>
    %cst = arith.constant 0.000000e+00 : f32
    %23 = vector.shape_cast %19 : vector<16x1xi1> to vector<16x1xi1>
    %24 = vector.broadcast %23 : vector<16x1xi1> to vector<16x128xi1>
    %25 = vector.broadcast %cst : f32 to vector<16x128xf32>
    %26 = arith.select %24, %22, %25 : vector<16x128xi1>, vector<16x128xf32>
    %27 = tpu.concatenate %26, %0 in 1 : vector<16x128xf32>, vector<16x128xf32> -> vector<16x256xf32>
    %28 = arith.truncf %27 : vector<16x256xf32> to vector<16x256xbf16>
    %cst_10 = arith.constant dense<0.000000e+00> : vector<16x128xf32>
    %29 = tpu.matmul %28, %20, %cst_10 {dimension_numbers = #tpu.dot_dimension_numbers<[1], [0], [0], [1], [0, 0, 1, 1], [], []>} : vector<16x256xbf16>, vector<256x128xbf16>, vector<16x128xf32> -> vector<16x128xf32>
    %30 = vector.broadcast %21 : vector<1x128xf32> to vector<16x128xf32>
    %31 = arith.addf %29, %30 : vector<16x128xf32>
    %cst_11 = arith.constant 0.000000e+00 : f32
    %32 = vector.broadcast %cst_11 : f32 to vector<16x128xf32>
    %33 = arith.maximumf %31, %32 : vector<16x128xf32>
    %c0_12 = arith.constant 0 : index
    %c0_13 = arith.constant 0 : index
    %34 = vector.load %arg4[%c0_12, %c0_13] : memref<256x128xbf16, #tpu.memory_space<vmem>>, vector<256x128xbf16>
    %c0_14 = arith.constant 0 : index
    %c0_15 = arith.constant 0 : index
    %35 = vector.load %arg5[%c0_14, %c0_15] : memref<1x128xf32, #tpu.memory_space<vmem>>, vector<1x128xf32>
    %c1_i32_16 = arith.constant 1 : i32
    %36 = tpu.dynamic_rotate %33 by %c1_i32_16 dim 0 : vector<16x128xf32>, i32 -> vector<16x128xf32>
    %cst_17 = arith.constant 0.000000e+00 : f32
    %37 = vector.shape_cast %19 : vector<16x1xi1> to vector<16x1xi1>
    %38 = vector.broadcast %37 : vector<16x1xi1> to vector<16x128xi1>
    %39 = vector.broadcast %cst_17 : f32 to vector<16x128xf32>
    %40 = arith.select %38, %36, %39 : vector<16x128xi1>, vector<16x128xf32>
    %41 = tpu.concatenate %40, %33 in 1 : vector<16x128xf32>, vector<16x128xf32> -> vector<16x256xf32>
    %42 = arith.truncf %41 : vector<16x256xf32> to vector<16x256xbf16>
    %cst_18 = arith.constant dense<0.000000e+00> : vector<16x128xf32>
    %43 = tpu.matmul %42, %34, %cst_18 {dimension_numbers = #tpu.dot_dimension_numbers<[1], [0], [0], [1], [0, 0, 1, 1], [], []>} : vector<16x256xbf16>, vector<256x128xbf16>, vector<16x128xf32> -> vector<16x128xf32>
    %44 = vector.broadcast %35 : vector<1x128xf32> to vector<16x128xf32>
    %45 = arith.addf %43, %44 : vector<16x128xf32>
    %cst_19 = arith.constant 0.000000e+00 : f32
    %46 = vector.broadcast %cst_19 : f32 to vector<16x128xf32>
    %47 = arith.maximumf %45, %46 : vector<16x128xf32>
    %48 = arith.truncf %0 : vector<16x128xf32> to vector<16x128xbf16>
    %c0_20 = arith.constant 0 : index
    %c0_21 = arith.constant 0 : index
    %49 = vector.load %arg6[%c0_20, %c0_21] : memref<128x128xbf16, #tpu.memory_space<vmem>>, vector<128x128xbf16>
    %cst_22 = arith.constant dense<0.000000e+00> : vector<16x128xf32>
    %50 = tpu.matmul %48, %49, %cst_22 {dimension_numbers = #tpu.dot_dimension_numbers<[1], [0], [0], [1], [0, 0, 1, 1], [], []>} : vector<16x128xbf16>, vector<128x128xbf16>, vector<16x128xf32> -> vector<16x128xf32>
    %c0_23 = arith.constant 0 : index
    %c0_24 = arith.constant 0 : index
    %51 = vector.load %arg7[%c0_23, %c0_24] : memref<1x128xf32, #tpu.memory_space<vmem>>, vector<1x128xf32>
    %52 = vector.broadcast %51 : vector<1x128xf32> to vector<16x128xf32>
    %53 = arith.addf %50, %52 : vector<16x128xf32>
    %cst_25 = arith.constant 0.000000e+00 : f32
    %54 = vector.broadcast %cst_25 : f32 to vector<16x128xf32>
    %55 = arith.maximumf %53, %54 : vector<16x128xf32>
    %56 = tpu.concatenate %47, %55 in 1 : vector<16x128xf32>, vector<16x128xf32> -> vector<16x256xf32>
    %c15_i32 = arith.constant 15 : i32
    %57 = tpu.dynamic_rotate %56 by %c15_i32 dim 0 : vector<16x256xf32>, i32 -> vector<16x256xf32>
    %58 = arith.truncf %56 : vector<16x256xf32> to vector<16x256xbf16>
    %c0_26 = arith.constant 0 : index
    %c0_27 = arith.constant 0 : index
    %59 = vector.load %arg8[%c0_26, %c0_27] : memref<256x128xbf16, #tpu.memory_space<vmem>>, vector<256x128xbf16>
    %cst_28 = arith.constant dense<0.000000e+00> : vector<16x128xf32>
    %60 = tpu.matmul %58, %59, %cst_28 {dimension_numbers = #tpu.dot_dimension_numbers<[1], [0], [0], [1], [0, 0, 1, 1], [], []>} : vector<16x256xbf16>, vector<256x128xbf16>, vector<16x128xf32> -> vector<16x128xf32>
    %61 = arith.truncf %57 : vector<16x256xf32> to vector<16x256xbf16>
    %c0_29 = arith.constant 0 : index
    %c0_30 = arith.constant 0 : index
    %62 = vector.load %arg9[%c0_29, %c0_30] : memref<256x128xbf16, #tpu.memory_space<vmem>>, vector<256x128xbf16>
    %cst_31 = arith.constant dense<0.000000e+00> : vector<16x128xf32>
    %63 = tpu.matmul %61, %62, %cst_31 {dimension_numbers = #tpu.dot_dimension_numbers<[1], [0], [0], [1], [0, 0, 1, 1], [], []>} : vector<16x256xbf16>, vector<256x128xbf16>, vector<16x128xf32> -> vector<16x128xf32>
    %64 = arith.addf %60, %63 : vector<16x128xf32>
    %c0_32 = arith.constant 0 : index
    %c0_33 = arith.constant 0 : index
    %65 = vector.load %arg10[%c0_32, %c0_33] : memref<1x128xf32, #tpu.memory_space<vmem>>, vector<1x128xf32>
    %66 = vector.broadcast %65 : vector<1x128xf32> to vector<16x128xf32>
    %67 = arith.addf %64, %66 : vector<16x128xf32>
    %c0_34 = arith.constant 0 : index
    %c0_35 = arith.constant 0 : index
    %68 = vector.load %arg12[%c0_34, %c0_35] : memref<16x128xf32, #tpu.memory_space<vmem>>, vector<16x128xf32>
    tpu.vector_store %arg12[%c0_34, %c0_35], %67 {strides = array<i32>} : memref<16x128xf32, #tpu.memory_space<vmem>>, vector<16x128xf32>,
    %c0_36 = arith.constant 0 : index
    %c0_37 = arith.constant 0 : index
    %69 = tpu.strided_load %arg12[%c0_36, %c0_37] {strides = array<i32: 2, 1>} : memref<16x128xf32, #tpu.memory_space<vmem>>, vector<8x128xf32>
    %c0_38 = arith.constant 0 : index
    %c0_39 = arith.constant 0 : index
    %70 = vector.load %arg11[%c0_38, %c0_39] : memref<8x128xf32, #tpu.memory_space<vmem>>, vector<8x128xf32>
    tpu.vector_store %arg11[%c0_38, %c0_39], %69 {strides = array<i32>} : memref<8x128xf32, #tpu.memory_space<vmem>>, vector<8x128xf32>,
    return
  }
  func.func @transform_0(%arg0: i32) -> (i32, i32) {
    %c0_i32 = arith.constant 0 : i32
    %c0_i32_0 = arith.constant 0 : i32
    return %arg0, %c0_i32 : i32, i32
  }
  func.func @transform_1(%arg0: i32) -> (i32, i32) {
    %c0_i32 = arith.constant 0 : i32
    %c0_i32_0 = arith.constant 0 : i32
    %c0_i32_1 = arith.constant 0 : i32
    return %c0_i32, %c0_i32_0 : i32, i32
  }
  func.func @transform_2(%arg0: i32) -> (i32, i32) {
    %c0_i32 = arith.constant 0 : i32
    %c0_i32_0 = arith.constant 0 : i32
    %c0_i32_1 = arith.constant 0 : i32
    return %c0_i32, %c0_i32_0 : i32, i32
  }
  func.func @transform_3(%arg0: i32) -> (i32, i32) {
    %c0_i32 = arith.constant 0 : i32
    %c0_i32_0 = arith.constant 0 : i32
    %c0_i32_1 = arith.constant 0 : i32
    return %c0_i32, %c0_i32_0 : i32, i32
  }
  func.func @transform_4(%arg0: i32) -> (i32, i32) {
    %c0_i32 = arith.constant 0 : i32
    %c0_i32_0 = arith.constant 0 : i32
    %c0_i32_1 = arith.constant 0 : i32
    return %c0_i32, %c0_i32_0 : i32, i32
  }
  func.func @transform_5(%arg0: i32) -> (i32, i32) {
    %c0_i32 = arith.constant 0 : i32
    %c0_i32_0 = arith.constant 0 : i32
    %c0_i32_1 = arith.constant 0 : i32
    return %c0_i32, %c0_i32_0 : i32, i32
  }
  func.func @transform_6(%arg0: i32) -> (i32, i32) {
    %c0_i32 = arith.constant 0 : i32
    %c0_i32_0 = arith.constant 0 : i32
    %c0_i32_1 = arith.constant 0 : i32
    return %c0_i32, %c0_i32_0 : i32, i32
  }
  func.func @transform_7(%arg0: i32) -> (i32, i32) {
    %c0_i32 = arith.constant 0 : i32
    %c0_i32_0 = arith.constant 0 : i32
    %c0_i32_1 = arith.constant 0 : i32
    return %c0_i32, %c0_i32_0 : i32, i32
  }
  func.func @transform_8(%arg0: i32) -> (i32, i32) {
    %c0_i32 = arith.constant 0 : i32
    %c0_i32_0 = arith.constant 0 : i32
    %c0_i32_1 = arith.constant 0 : i32
    return %c0_i32, %c0_i32_0 : i32, i32
  }
  func.func @transform_9(%arg0: i32) -> (i32, i32) {
    %c0_i32 = arith.constant 0 : i32
    %c0_i32_0 = arith.constant 0 : i32
    %c0_i32_1 = arith.constant 0 : i32
    return %c0_i32, %c0_i32_0 : i32, i32
  }
  func.func @transform_10(%arg0: i32) -> (i32, i32) {
    %c0_i32 = arith.constant 0 : i32
    %c0_i32_0 = arith.constant 0 : i32
    return %arg0, %c0_i32 : i32, i32
  }
}

module attributes {stable_mosaic.version = 11 : i64} {
  func.func @_conv_block_kernel(%arg0: i32, %arg1: memref<16x4xf32, #tpu.memory_space<vmem>>, %arg2: memref<8x128xbf16, #tpu.memory_space<vmem>>, %arg3: memref<1x128xf32, #tpu.memory_space<vmem>>, %arg4: memref<256x128xbf16, #tpu.memory_space<vmem>>, %arg5: memref<1x128xf32, #tpu.memory_space<vmem>>, %arg6: memref<4x128xbf16, #tpu.memory_space<vmem>>, %arg7: memref<1x128xf32, #tpu.memory_space<vmem>>, %arg8: memref<256x128xbf16, #tpu.memory_space<vmem>>, %arg9: memref<256x128xbf16, #tpu.memory_space<vmem>>, %arg10: memref<1x128xf32, #tpu.memory_space<vmem>>, %arg11: memref<8x128xf32, #tpu.memory_space<vmem>>, %arg12: memref<16x128xf32, #tpu.memory_space<vmem>>) attributes {dimension_semantics = [#tpu.dimension_semantics<parallel>], iteration_bounds = array<i64: 2>, scalar_prefetch = 0 : i64, scratch_operands = 1 : i64, tpu.core_type = #tpu.core_type<tc>, window_params = [{transform_indices = @transform_0, window_bounds = array<i64: 16, 4>}, {pipeline_mode = #tpu.pipeline_mode<synchronous>, transform_indices = @transform_1, window_bounds = array<i64: 8, 128>}, {pipeline_mode = #tpu.pipeline_mode<synchronous>, transform_indices = @transform_2, window_bounds = array<i64: 1, 128>}, {pipeline_mode = #tpu.pipeline_mode<synchronous>, transform_indices = @transform_3, window_bounds = array<i64: 256, 128>}, {pipeline_mode = #tpu.pipeline_mode<synchronous>, transform_indices = @transform_4, window_bounds = array<i64: 1, 128>}, {pipeline_mode = #tpu.pipeline_mode<synchronous>, transform_indices = @transform_5, window_bounds = array<i64: 4, 128>}, {pipeline_mode = #tpu.pipeline_mode<synchronous>, transform_indices = @transform_6, window_bounds = array<i64: 1, 128>}, {pipeline_mode = #tpu.pipeline_mode<synchronous>, transform_indices = @transform_7, window_bounds = array<i64: 256, 128>}, {pipeline_mode = #tpu.pipeline_mode<synchronous>, transform_indices = @transform_8, window_bounds = array<i64: 256, 128>}, {pipeline_mode = #tpu.pipeline_mode<synchronous>, transform_indices = @transform_9, window_bounds = array<i64: 1, 128>}, {transform_indices = @transform_10, window_bounds = array<i64: 8, 128>}]} {
    %c0 = arith.constant 0 : index
    %c0_0 = arith.constant 0 : index
    %0 = vector.load %arg1[%c0, %c0_0] : memref<16x4xf32, #tpu.memory_space<vmem>>, vector<16x4xf32>
    %1 = tpu.iota {dimensions = array<i32: 0>} : vector<16x1xi32>
    %c16_i32 = arith.constant 16 : i32
    %c0_i32 = arith.constant 0 : i32
    %2 = arith.cmpi eq, %c16_i32, %c0_i32 : i32
    %c1_i32 = arith.constant 1 : i32
    %3 = arith.select %2, %c1_i32, %c16_i32 : i32
    %4 = vector.broadcast %3 : i32 to vector<16x1xi32>
    %5 = arith.remsi %1, %4 : vector<16x1xi32>
    %c0_i32_1 = arith.constant 0 : i32
    %6 = vector.broadcast %c0_i32_1 : i32 to vector<16x1xi32>
    %7 = arith.cmpi ne, %5, %6 : vector<16x1xi32>
    %c0_i32_2 = arith.constant 0 : i32
    %8 = vector.broadcast %c0_i32_2 : i32 to vector<16x1xi32>
    %9 = arith.cmpi slt, %5, %8 : vector<16x1xi32>
    %c0_i32_3 = arith.constant 0 : i32
    %10 = arith.cmpi slt, %3, %c0_i32_3 : i32
    %11 = vector.broadcast %10 : i1 to vector<16x1xi1>
    %12 = vector.broadcast %11 : vector<16x1xi1> to vector<16x1xi1>
    %13 = arith.xori %9, %12 : vector<16x1xi1>
    %14 = arith.andi %13, %7 : vector<16x1xi1>
    %15 = vector.broadcast %3 : i32 to vector<16x1xi32>
    %16 = arith.addi %5, %15 : vector<16x1xi32>
    %17 = arith.select %14, %16, %5 : vector<16x1xi1>, vector<16x1xi32>
    %c0_i32_4 = arith.constant 0 : i32
    %18 = vector.broadcast %c0_i32_4 : i32 to vector<16x1xi32>
    %19 = arith.cmpi ne, %17, %18 : vector<16x1xi32>
    %c0_5 = arith.constant 0 : index
    %c0_6 = arith.constant 0 : index
    %20 = vector.load %arg2[%c0_5, %c0_6] : memref<8x128xbf16, #tpu.memory_space<vmem>>, vector<8x128xbf16>
    %c0_7 = arith.constant 0 : index
    %c0_8 = arith.constant 0 : index
    %21 = vector.load %arg3[%c0_7, %c0_8] : memref<1x128xf32, #tpu.memory_space<vmem>>, vector<1x128xf32>
    %c1_i32_9 = arith.constant 1 : i32
    %22 = tpu.dynamic_rotate %0 by %c1_i32_9 dim 0 : vector<16x4xf32>, i32 -> vector<16x4xf32>
    %cst = arith.constant 0.000000e+00 : f32
    %23 = vector.shape_cast %19 : vector<16x1xi1> to vector<16x1xi1>
    %24 = vector.broadcast %23 : vector<16x1xi1> to vector<16x4xi1>
    %25 = vector.broadcast %cst : f32 to vector<16x4xf32>
    %26 = arith.select %24, %22, %25 : vector<16x4xi1>, vector<16x4xf32>
    %27 = tpu.concatenate %26, %0 in 1 : vector<16x4xf32>, vector<16x4xf32> -> vector<16x8xf32>
    %28 = arith.truncf %27 : vector<16x8xf32> to vector<16x8xbf16>
    %cst_10 = arith.constant dense<0.000000e+00> : vector<16x128xf32>
    %29 = tpu.matmul %28, %20, %cst_10 {dimension_numbers = #tpu.dot_dimension_numbers<[1], [0], [0], [1], [0, 0, 1, 1], [], []>} : vector<16x8xbf16>, vector<8x128xbf16>, vector<16x128xf32> -> vector<16x128xf32>
    %30 = vector.broadcast %21 : vector<1x128xf32> to vector<16x128xf32>
    %31 = arith.addf %29, %30 : vector<16x128xf32>
    %cst_11 = arith.constant 0.000000e+00 : f32
    %32 = vector.broadcast %cst_11 : f32 to vector<16x128xf32>
    %33 = arith.maximumf %31, %32 : vector<16x128xf32>
    %c0_12 = arith.constant 0 : index
    %c0_13 = arith.constant 0 : index
    %34 = vector.load %arg4[%c0_12, %c0_13] : memref<256x128xbf16, #tpu.memory_space<vmem>>, vector<256x128xbf16>
    %c0_14 = arith.constant 0 : index
    %c0_15 = arith.constant 0 : index
    %35 = vector.load %arg5[%c0_14, %c0_15] : memref<1x128xf32, #tpu.memory_space<vmem>>, vector<1x128xf32>
    %c1_i32_16 = arith.constant 1 : i32
    %36 = tpu.dynamic_rotate %33 by %c1_i32_16 dim 0 : vector<16x128xf32>, i32 -> vector<16x128xf32>
    %cst_17 = arith.constant 0.000000e+00 : f32
    %37 = vector.shape_cast %19 : vector<16x1xi1> to vector<16x1xi1>
    %38 = vector.broadcast %37 : vector<16x1xi1> to vector<16x128xi1>
    %39 = vector.broadcast %cst_17 : f32 to vector<16x128xf32>
    %40 = arith.select %38, %36, %39 : vector<16x128xi1>, vector<16x128xf32>
    %41 = tpu.concatenate %40, %33 in 1 : vector<16x128xf32>, vector<16x128xf32> -> vector<16x256xf32>
    %42 = arith.truncf %41 : vector<16x256xf32> to vector<16x256xbf16>
    %cst_18 = arith.constant dense<0.000000e+00> : vector<16x128xf32>
    %43 = tpu.matmul %42, %34, %cst_18 {dimension_numbers = #tpu.dot_dimension_numbers<[1], [0], [0], [1], [0, 0, 1, 1], [], []>} : vector<16x256xbf16>, vector<256x128xbf16>, vector<16x128xf32> -> vector<16x128xf32>
    %44 = vector.broadcast %35 : vector<1x128xf32> to vector<16x128xf32>
    %45 = arith.addf %43, %44 : vector<16x128xf32>
    %cst_19 = arith.constant 0.000000e+00 : f32
    %46 = vector.broadcast %cst_19 : f32 to vector<16x128xf32>
    %47 = arith.maximumf %45, %46 : vector<16x128xf32>
    %48 = arith.truncf %0 : vector<16x4xf32> to vector<16x4xbf16>
    %c0_20 = arith.constant 0 : index
    %c0_21 = arith.constant 0 : index
    %49 = vector.load %arg6[%c0_20, %c0_21] : memref<4x128xbf16, #tpu.memory_space<vmem>>, vector<4x128xbf16>
    %cst_22 = arith.constant dense<0.000000e+00> : vector<16x128xf32>
    %50 = tpu.matmul %48, %49, %cst_22 {dimension_numbers = #tpu.dot_dimension_numbers<[1], [0], [0], [1], [0, 0, 1, 1], [], []>} : vector<16x4xbf16>, vector<4x128xbf16>, vector<16x128xf32> -> vector<16x128xf32>
    %c0_23 = arith.constant 0 : index
    %c0_24 = arith.constant 0 : index
    %51 = vector.load %arg7[%c0_23, %c0_24] : memref<1x128xf32, #tpu.memory_space<vmem>>, vector<1x128xf32>
    %52 = vector.broadcast %51 : vector<1x128xf32> to vector<16x128xf32>
    %53 = arith.addf %50, %52 : vector<16x128xf32>
    %cst_25 = arith.constant 0.000000e+00 : f32
    %54 = vector.broadcast %cst_25 : f32 to vector<16x128xf32>
    %55 = arith.maximumf %53, %54 : vector<16x128xf32>
    %56 = tpu.concatenate %47, %55 in 1 : vector<16x128xf32>, vector<16x128xf32> -> vector<16x256xf32>
    %c15_i32 = arith.constant 15 : i32
    %57 = tpu.dynamic_rotate %56 by %c15_i32 dim 0 : vector<16x256xf32>, i32 -> vector<16x256xf32>
    %58 = arith.truncf %56 : vector<16x256xf32> to vector<16x256xbf16>
    %c0_26 = arith.constant 0 : index
    %c0_27 = arith.constant 0 : index
    %59 = vector.load %arg8[%c0_26, %c0_27] : memref<256x128xbf16, #tpu.memory_space<vmem>>, vector<256x128xbf16>
    %cst_28 = arith.constant dense<0.000000e+00> : vector<16x128xf32>
    %60 = tpu.matmul %58, %59, %cst_28 {dimension_numbers = #tpu.dot_dimension_numbers<[1], [0], [0], [1], [0, 0, 1, 1], [], []>} : vector<16x256xbf16>, vector<256x128xbf16>, vector<16x128xf32> -> vector<16x128xf32>
    %61 = arith.truncf %57 : vector<16x256xf32> to vector<16x256xbf16>
    %c0_29 = arith.constant 0 : index
    %c0_30 = arith.constant 0 : index
    %62 = vector.load %arg9[%c0_29, %c0_30] : memref<256x128xbf16, #tpu.memory_space<vmem>>, vector<256x128xbf16>
    %cst_31 = arith.constant dense<0.000000e+00> : vector<16x128xf32>
    %63 = tpu.matmul %61, %62, %cst_31 {dimension_numbers = #tpu.dot_dimension_numbers<[1], [0], [0], [1], [0, 0, 1, 1], [], []>} : vector<16x256xbf16>, vector<256x128xbf16>, vector<16x128xf32> -> vector<16x128xf32>
    %64 = arith.addf %60, %63 : vector<16x128xf32>
    %c0_32 = arith.constant 0 : index
    %c0_33 = arith.constant 0 : index
    %65 = vector.load %arg10[%c0_32, %c0_33] : memref<1x128xf32, #tpu.memory_space<vmem>>, vector<1x128xf32>
    %66 = vector.broadcast %65 : vector<1x128xf32> to vector<16x128xf32>
    %67 = arith.addf %64, %66 : vector<16x128xf32>
    %c0_34 = arith.constant 0 : index
    %c0_35 = arith.constant 0 : index
    %68 = vector.load %arg12[%c0_34, %c0_35] : memref<16x128xf32, #tpu.memory_space<vmem>>, vector<16x128xf32>
    tpu.vector_store %arg12[%c0_34, %c0_35], %67 {strides = array<i32>} : memref<16x128xf32, #tpu.memory_space<vmem>>, vector<16x128xf32>,
    %c0_36 = arith.constant 0 : index
    %c0_37 = arith.constant 0 : index
    %69 = tpu.strided_load %arg12[%c0_36, %c0_37] {strides = array<i32: 2, 1>} : memref<16x128xf32, #tpu.memory_space<vmem>>, vector<8x128xf32>
    %c0_38 = arith.constant 0 : index
    %c0_39 = arith.constant 0 : index
    %70 = vector.load %arg11[%c0_38, %c0_39] : memref<8x128xf32, #tpu.memory_space<vmem>>, vector<8x128xf32>
    tpu.vector_store %arg11[%c0_38, %c0_39], %69 {strides = array<i32>} : memref<8x128xf32, #tpu.memory_space<vmem>>, vector<8x128xf32>,
    return
  }
  func.func @transform_0(%arg0: i32) -> (i32, i32) {
    %c0_i32 = arith.constant 0 : i32
    %c0_i32_0 = arith.constant 0 : i32
    return %arg0, %c0_i32 : i32, i32
  }
  func.func @transform_1(%arg0: i32) -> (i32, i32) {
    %c0_i32 = arith.constant 0 : i32
    %c0_i32_0 = arith.constant 0 : i32
    %c0_i32_1 = arith.constant 0 : i32
    return %c0_i32, %c0_i32_0 : i32, i32
  }
  func.func @transform_2(%arg0: i32) -> (i32, i32) {
    %c0_i32 = arith.constant 0 : i32
    %c0_i32_0 = arith.constant 0 : i32
    %c0_i32_1 = arith.constant 0 : i32
    return %c0_i32, %c0_i32_0 : i32, i32
  }
  func.func @transform_3(%arg0: i32) -> (i32, i32) {
    %c0_i32 = arith.constant 0 : i32
    %c0_i32_0 = arith.constant 0 : i32
    %c0_i32_1 = arith.constant 0 : i32
    return %c0_i32, %c0_i32_0 : i32, i32
  }
  func.func @transform_4(%arg0: i32) -> (i32, i32) {
    %c0_i32 = arith.constant 0 : i32
    %c0_i32_0 = arith.constant 0 : i32
    %c0_i32_1 = arith.constant 0 : i32
    return %c0_i32, %c0_i32_0 : i32, i32
  }
  func.func @transform_5(%arg0: i32) -> (i32, i32) {
    %c0_i32 = arith.constant 0 : i32
    %c0_i32_0 = arith.constant 0 : i32
    %c0_i32_1 = arith.constant 0 : i32
    return %c0_i32, %c0_i32_0 : i32, i32
  }
  func.func @transform_6(%arg0: i32) -> (i32, i32) {
    %c0_i32 = arith.constant 0 : i32
    %c0_i32_0 = arith.constant 0 : i32
    %c0_i32_1 = arith.constant 0 : i32
    return %c0_i32, %c0_i32_0 : i32, i32
  }
  func.func @transform_7(%arg0: i32) -> (i32, i32) {
    %c0_i32 = arith.constant 0 : i32
    %c0_i32_0 = arith.constant 0 : i32
    %c0_i32_1 = arith.constant 0 : i32
    return %c0_i32, %c0_i32_0 : i32, i32
  }
  func.func @transform_8(%arg0: i32) -> (i32, i32) {
    %c0_i32 = arith.constant 0 : i32
    %c0_i32_0 = arith.constant 0 : i32
    %c0_i32_1 = arith.constant 0 : i32
    return %c0_i32, %c0_i32_0 : i32, i32
  }
  func.func @transform_9(%arg0: i32) -> (i32, i32) {
    %c0_i32 = arith.constant 0 : i32
    %c0_i32_0 = arith.constant 0 : i32
    %c0_i32_1 = arith.constant 0 : i32
    return %c0_i32, %c0_i32_0 : i32, i32
  }
  func.func @transform_10(%arg0: i32) -> (i32, i32) {
    %c0_i32 = arith.constant 0 : i32
    %c0_i32_0 = arith.constant 0 : i32
    return %arg0, %c0_i32 : i32, i32
  }
}

module attributes {stable_mosaic.version = 11 : i64} {
  func.func @_linear_kernel(%arg0: i32, %arg1: memref<32x128xf32, #tpu.memory_space<vmem>>, %arg2: memref<128x384xbf16, #tpu.memory_space<vmem>>, %arg3: memref<1x384xf32, #tpu.memory_space<vmem>>, %arg4: memref<32x384xf32, #tpu.memory_space<vmem>>) attributes {dimension_semantics = [#tpu.dimension_semantics<parallel>], iteration_bounds = array<i64: 1>, scalar_prefetch = 0 : i64, scratch_operands = 0 : i64, tpu.core_type = #tpu.core_type<tc>, window_params = [{transform_indices = @transform_0, window_bounds = array<i64: 32, 128>}, {pipeline_mode = #tpu.pipeline_mode<synchronous>, transform_indices = @transform_1, window_bounds = array<i64: 128, 384>}, {pipeline_mode = #tpu.pipeline_mode<synchronous>, transform_indices = @transform_2, window_bounds = array<i64: 1, 384>}, {transform_indices = @transform_3, window_bounds = array<i64: 32, 384>}]} {
    %c0 = arith.constant 0 : index
    %c0_0 = arith.constant 0 : index
    %0 = vector.load %arg1[%c0, %c0_0] : memref<32x128xf32, #tpu.memory_space<vmem>>, vector<32x128xf32>
    %1 = arith.truncf %0 : vector<32x128xf32> to vector<32x128xbf16>
    %c0_1 = arith.constant 0 : index
    %c0_2 = arith.constant 0 : index
    %2 = vector.load %arg2[%c0_1, %c0_2] : memref<128x384xbf16, #tpu.memory_space<vmem>>, vector<128x384xbf16>
    %cst = arith.constant dense<0.000000e+00> : vector<32x384xf32>
    %3 = tpu.matmul %1, %2, %cst {dimension_numbers = #tpu.dot_dimension_numbers<[1], [0], [0], [1], [0, 0, 1, 1], [], []>} : vector<32x128xbf16>, vector<128x384xbf16>, vector<32x384xf32> -> vector<32x384xf32>
    %c0_3 = arith.constant 0 : index
    %c0_4 = arith.constant 0 : index
    %4 = vector.load %arg3[%c0_3, %c0_4] : memref<1x384xf32, #tpu.memory_space<vmem>>, vector<1x384xf32>
    %5 = vector.broadcast %4 : vector<1x384xf32> to vector<32x384xf32>
    %6 = arith.addf %3, %5 : vector<32x384xf32>
    %c0_5 = arith.constant 0 : index
    %c0_6 = arith.constant 0 : index
    %7 = vector.load %arg4[%c0_5, %c0_6] : memref<32x384xf32, #tpu.memory_space<vmem>>, vector<32x384xf32>
    tpu.vector_store %arg4[%c0_5, %c0_6], %6 {strides = array<i32>} : memref<32x384xf32, #tpu.memory_space<vmem>>, vector<32x384xf32>,
    return
  }
  func.func @transform_0(%arg0: i32) -> (i32, i32) {
    %c0_i32 = arith.constant 0 : i32
    %c0_i32_0 = arith.constant 0 : i32
    return %arg0, %c0_i32 : i32, i32
  }
  func.func @transform_1(%arg0: i32) -> (i32, i32) {
    %c0_i32 = arith.constant 0 : i32
    %c0_i32_0 = arith.constant 0 : i32
    %c0_i32_1 = arith.constant 0 : i32
    return %c0_i32, %c0_i32_0 : i32, i32
  }
  func.func @transform_2(%arg0: i32) -> (i32, i32) {
    %c0_i32 = arith.constant 0 : i32
    %c0_i32_0 = arith.constant 0 : i32
    %c0_i32_1 = arith.constant 0 : i32
    return %c0_i32, %c0_i32_0 : i32, i32
  }
  func.func @transform_3(%arg0: i32) -> (i32, i32) {
    %c0_i32 = arith.constant 0 : i32
    %c0_i32_0 = arith.constant 0 : i32
    return %arg0, %c0_i32 : i32, i32
  }
}

module attributes {stable_mosaic.version = 11 : i64} {
  func.func @_gru_kernel(%arg0: i32, %arg1: memref<4x8x384xf32, #tpu.memory_space<vmem>>, %arg2: memref<128x384xbf16, #tpu.memory_space<vmem>>, %arg3: memref<1x128xf32, #tpu.memory_space<vmem>>, %arg4: memref<4x8x128xf32, #tpu.memory_space<vmem>>, %arg5: memref<8x128xf32, #tpu.memory_space<vmem>>) attributes {dimension_semantics = [#tpu.dimension_semantics<arbitrary>], iteration_bounds = array<i64: 1>, scalar_prefetch = 0 : i64, scratch_operands = 1 : i64, tpu.core_type = #tpu.core_type<tc>, window_params = [{transform_indices = @transform_0, window_bounds = array<i64: 4, 8, 384>}, {pipeline_mode = #tpu.pipeline_mode<synchronous>, transform_indices = @transform_1, window_bounds = array<i64: 128, 384>}, {pipeline_mode = #tpu.pipeline_mode<synchronous>, transform_indices = @transform_2, window_bounds = array<i64: 1, 128>}, {transform_indices = @transform_3, window_bounds = array<i64: 4, 8, 128>}]} {
    %c0_i32 = arith.constant 0 : i32
    %0 = arith.cmpi eq, %arg0, %c0_i32 : i32
    %1 = arith.extui %0 : i1 to i32
    %c0_i32_0 = arith.constant 0 : i32
    %2 = arith.cmpi ne, %1, %c0_i32_0 : i32
    scf.if %2 {
      %cst_44 = arith.constant 0.000000e+00 : f32
      %147 = vector.broadcast %cst_44 : f32 to vector<8x128xf32>
      %c0_45 = arith.constant 0 : index
      %c0_46 = arith.constant 0 : index
      %148 = vector.load %arg5[%c0_45, %c0_46] : memref<8x128xf32, #tpu.memory_space<vmem>>, vector<8x128xf32>
      tpu.vector_store %arg5[%c0_45, %c0_46], %147 {strides = array<i32>} : memref<8x128xf32, #tpu.memory_space<vmem>>, vector<8x128xf32>,
    } else {
    }
    %c0 = arith.constant 0 : index
    %c0_1 = arith.constant 0 : index
    %3 = vector.load %arg2[%c0, %c0_1] : memref<128x384xbf16, #tpu.memory_space<vmem>>, vector<128x384xbf16>
    %c0_2 = arith.constant 0 : index
    %c0_3 = arith.constant 0 : index
    %4 = vector.load %arg3[%c0_2, %c0_3] : memref<1x128xf32, #tpu.memory_space<vmem>>, vector<1x128xf32>
    %c0_4 = arith.constant 0 : index
    %c0_5 = arith.constant 0 : index
    %5 = vector.load %arg5[%c0_4, %c0_5] : memref<8x128xf32, #tpu.memory_space<vmem>>, vector<8x128xf32>
    %c0_6 = arith.constant 0 : index
    %c0_7 = arith.constant 0 : index
    %c0_8 = arith.constant 0 : index
    %6 = vector.load %arg1[%c0_6, %c0_7, %c0_8] : memref<4x8x384xf32, #tpu.memory_space<vmem>>, vector<1x8x384xf32>
    %7 = vector.shape_cast %6 : vector<1x8x384xf32> to vector<8x384xf32>
    %8 = arith.truncf %5 : vector<8x128xf32> to vector<8x128xbf16>
    %cst = arith.constant dense<0.000000e+00> : vector<8x384xf32>
    %9 = tpu.matmul %8, %3, %cst {dimension_numbers = #tpu.dot_dimension_numbers<[1], [0], [0], [1], [0, 0, 1, 1], [], []>} : vector<8x128xbf16>, vector<128x384xbf16>, vector<8x384xf32> -> vector<8x384xf32>
    %10 = vector.extract_strided_slice %7 {offsets = [0, 0], sizes = [8, 128], strides = [1, 1]} : vector<8x384xf32> to vector<8x128xf32>
    %11 = vector.extract_strided_slice %9 {offsets = [0, 0], sizes = [8, 128], strides = [1, 1]} : vector<8x384xf32> to vector<8x128xf32>
    %12 = arith.addf %10, %11 : vector<8x128xf32>
    %13 = arith.negf %12 : vector<8x128xf32>
    %14 = math.exp %13 : vector<8x128xf32>
    %cst_9 = arith.constant 1.000000e+00 : f32
    %15 = vector.broadcast %cst_9 : f32 to vector<8x128xf32>
    %16 = arith.addf %15, %14 : vector<8x128xf32>
    %17 = arith.divf %15, %16 : vector<8x128xf32>
    %18 = vector.extract_strided_slice %7 {offsets = [0, 128], sizes = [8, 128], strides = [1, 1]} : vector<8x384xf32> to vector<8x128xf32>
    %19 = vector.extract_strided_slice %9 {offsets = [0, 128], sizes = [8, 128], strides = [1, 1]} : vector<8x384xf32> to vector<8x128xf32>
    %20 = arith.addf %18, %19 : vector<8x128xf32>
    %21 = arith.negf %20 : vector<8x128xf32>
    %22 = math.exp %21 : vector<8x128xf32>
    %cst_10 = arith.constant 1.000000e+00 : f32
    %23 = vector.broadcast %cst_10 : f32 to vector<8x128xf32>
    %24 = arith.addf %23, %22 : vector<8x128xf32>
    %25 = arith.divf %23, %24 : vector<8x128xf32>
    %26 = vector.extract_strided_slice %7 {offsets = [0, 256], sizes = [8, 128], strides = [1, 1]} : vector<8x384xf32> to vector<8x128xf32>
    %27 = vector.extract_strided_slice %9 {offsets = [0, 256], sizes = [8, 128], strides = [1, 1]} : vector<8x384xf32> to vector<8x128xf32>
    %28 = vector.broadcast %4 : vector<1x128xf32> to vector<8x128xf32>
    %29 = arith.addf %27, %28 : vector<8x128xf32>
    %30 = arith.mulf %17, %29 : vector<8x128xf32>
    %31 = arith.addf %26, %30 : vector<8x128xf32>
    %32 = math.tanh %31 : vector<8x128xf32>
    %cst_11 = arith.constant 1.000000e+00 : f32
    %33 = vector.broadcast %cst_11 : f32 to vector<8x128xf32>
    %34 = arith.subf %33, %25 : vector<8x128xf32>
    %35 = arith.mulf %34, %32 : vector<8x128xf32>
    %36 = arith.mulf %25, %5 : vector<8x128xf32>
    %37 = arith.addf %35, %36 : vector<8x128xf32>
    %c0_12 = arith.constant 0 : index
    %c0_13 = arith.constant 0 : index
    %c0_14 = arith.constant 0 : index
    %38 = vector.load %arg4[%c0_12, %c0_13, %c0_14] : memref<4x8x128xf32, #tpu.memory_space<vmem>>, vector<1x8x128xf32>
    %39 = vector.shape_cast %38 : vector<1x8x128xf32> to vector<8x128xf32>
    %40 = vector.shape_cast %37 : vector<8x128xf32> to vector<1x8x128xf32>
    tpu.vector_store %arg4[%c0_12, %c0_13, %c0_14], %40 {strides = array<i32>} : memref<4x8x128xf32, #tpu.memory_space<vmem>>, vector<1x8x128xf32>,
    %c1 = arith.constant 1 : index
    %c0_15 = arith.constant 0 : index
    %c0_16 = arith.constant 0 : index
    %41 = vector.load %arg1[%c1, %c0_15, %c0_16] : memref<4x8x384xf32, #tpu.memory_space<vmem>>, vector<1x8x384xf32>
    %42 = vector.shape_cast %41 : vector<1x8x384xf32> to vector<8x384xf32>
    %43 = arith.truncf %37 : vector<8x128xf32> to vector<8x128xbf16>
    %cst_17 = arith.constant dense<0.000000e+00> : vector<8x384xf32>
    %44 = tpu.matmul %43, %3, %cst_17 {dimension_numbers = #tpu.dot_dimension_numbers<[1], [0], [0], [1], [0, 0, 1, 1], [], []>} : vector<8x128xbf16>, vector<128x384xbf16>, vector<8x384xf32> -> vector<8x384xf32>
    %45 = vector.extract_strided_slice %42 {offsets = [0, 0], sizes = [8, 128], strides = [1, 1]} : vector<8x384xf32> to vector<8x128xf32>
    %46 = vector.extract_strided_slice %44 {offsets = [0, 0], sizes = [8, 128], strides = [1, 1]} : vector<8x384xf32> to vector<8x128xf32>
    %47 = arith.addf %45, %46 : vector<8x128xf32>
    %48 = arith.negf %47 : vector<8x128xf32>
    %49 = math.exp %48 : vector<8x128xf32>
    %cst_18 = arith.constant 1.000000e+00 : f32
    %50 = vector.broadcast %cst_18 : f32 to vector<8x128xf32>
    %51 = arith.addf %50, %49 : vector<8x128xf32>
    %52 = arith.divf %50, %51 : vector<8x128xf32>
    %53 = vector.extract_strided_slice %42 {offsets = [0, 128], sizes = [8, 128], strides = [1, 1]} : vector<8x384xf32> to vector<8x128xf32>
    %54 = vector.extract_strided_slice %44 {offsets = [0, 128], sizes = [8, 128], strides = [1, 1]} : vector<8x384xf32> to vector<8x128xf32>
    %55 = arith.addf %53, %54 : vector<8x128xf32>
    %56 = arith.negf %55 : vector<8x128xf32>
    %57 = math.exp %56 : vector<8x128xf32>
    %cst_19 = arith.constant 1.000000e+00 : f32
    %58 = vector.broadcast %cst_19 : f32 to vector<8x128xf32>
    %59 = arith.addf %58, %57 : vector<8x128xf32>
    %60 = arith.divf %58, %59 : vector<8x128xf32>
    %61 = vector.extract_strided_slice %42 {offsets = [0, 256], sizes = [8, 128], strides = [1, 1]} : vector<8x384xf32> to vector<8x128xf32>
    %62 = vector.extract_strided_slice %44 {offsets = [0, 256], sizes = [8, 128], strides = [1, 1]} : vector<8x384xf32> to vector<8x128xf32>
    %63 = vector.broadcast %4 : vector<1x128xf32> to vector<8x128xf32>
    %64 = arith.addf %62, %63 : vector<8x128xf32>
    %65 = arith.mulf %52, %64 : vector<8x128xf32>
    %66 = arith.addf %61, %65 : vector<8x128xf32>
    %67 = math.tanh %66 : vector<8x128xf32>
    %cst_20 = arith.constant 1.000000e+00 : f32
    %68 = vector.broadcast %cst_20 : f32 to vector<8x128xf32>
    %69 = arith.subf %68, %60 : vector<8x128xf32>
    %70 = arith.mulf %69, %67 : vector<8x128xf32>
    %71 = arith.mulf %60, %37 : vector<8x128xf32>
    %72 = arith.addf %70, %71 : vector<8x128xf32>
    %c1_21 = arith.constant 1 : index
    %c0_22 = arith.constant 0 : index
    %c0_23 = arith.constant 0 : index
    %73 = vector.load %arg4[%c1_21, %c0_22, %c0_23] : memref<4x8x128xf32, #tpu.memory_space<vmem>>, vector<1x8x128xf32>
    %74 = vector.shape_cast %73 : vector<1x8x128xf32> to vector<8x128xf32>
    %75 = vector.shape_cast %72 : vector<8x128xf32> to vector<1x8x128xf32>
    tpu.vector_store %arg4[%c1_21, %c0_22, %c0_23], %75 {strides = array<i32>} : memref<4x8x128xf32, #tpu.memory_space<vmem>>, vector<1x8x128xf32>,
    %c2 = arith.constant 2 : index
    %c0_24 = arith.constant 0 : index
    %c0_25 = arith.constant 0 : index
    %76 = vector.load %arg1[%c2, %c0_24, %c0_25] : memref<4x8x384xf32, #tpu.memory_space<vmem>>, vector<1x8x384xf32>
    %77 = vector.shape_cast %76 : vector<1x8x384xf32> to vector<8x384xf32>
    %78 = arith.truncf %72 : vector<8x128xf32> to vector<8x128xbf16>
    %cst_26 = arith.constant dense<0.000000e+00> : vector<8x384xf32>
    %79 = tpu.matmul %78, %3, %cst_26 {dimension_numbers = #tpu.dot_dimension_numbers<[1], [0], [0], [1], [0, 0, 1, 1], [], []>} : vector<8x128xbf16>, vector<128x384xbf16>, vector<8x384xf32> -> vector<8x384xf32>
    %80 = vector.extract_strided_slice %77 {offsets = [0, 0], sizes = [8, 128], strides = [1, 1]} : vector<8x384xf32> to vector<8x128xf32>
    %81 = vector.extract_strided_slice %79 {offsets = [0, 0], sizes = [8, 128], strides = [1, 1]} : vector<8x384xf32> to vector<8x128xf32>
    %82 = arith.addf %80, %81 : vector<8x128xf32>
    %83 = arith.negf %82 : vector<8x128xf32>
    %84 = math.exp %83 : vector<8x128xf32>
    %cst_27 = arith.constant 1.000000e+00 : f32
    %85 = vector.broadcast %cst_27 : f32 to vector<8x128xf32>
    %86 = arith.addf %85, %84 : vector<8x128xf32>
    %87 = arith.divf %85, %86 : vector<8x128xf32>
    %88 = vector.extract_strided_slice %77 {offsets = [0, 128], sizes = [8, 128], strides = [1, 1]} : vector<8x384xf32> to vector<8x128xf32>
    %89 = vector.extract_strided_slice %79 {offsets = [0, 128], sizes = [8, 128], strides = [1, 1]} : vector<8x384xf32> to vector<8x128xf32>
    %90 = arith.addf %88, %89 : vector<8x128xf32>
    %91 = arith.negf %90 : vector<8x128xf32>
    %92 = math.exp %91 : vector<8x128xf32>
    %cst_28 = arith.constant 1.000000e+00 : f32
    %93 = vector.broadcast %cst_28 : f32 to vector<8x128xf32>
    %94 = arith.addf %93, %92 : vector<8x128xf32>
    %95 = arith.divf %93, %94 : vector<8x128xf32>
    %96 = vector.extract_strided_slice %77 {offsets = [0, 256], sizes = [8, 128], strides = [1, 1]} : vector<8x384xf32> to vector<8x128xf32>
    %97 = vector.extract_strided_slice %79 {offsets = [0, 256], sizes = [8, 128], strides = [1, 1]} : vector<8x384xf32> to vector<8x128xf32>
    %98 = vector.broadcast %4 : vector<1x128xf32> to vector<8x128xf32>
    %99 = arith.addf %97, %98 : vector<8x128xf32>
    %100 = arith.mulf %87, %99 : vector<8x128xf32>
    %101 = arith.addf %96, %100 : vector<8x128xf32>
    %102 = math.tanh %101 : vector<8x128xf32>
    %cst_29 = arith.constant 1.000000e+00 : f32
    %103 = vector.broadcast %cst_29 : f32 to vector<8x128xf32>
    %104 = arith.subf %103, %95 : vector<8x128xf32>
    %105 = arith.mulf %104, %102 : vector<8x128xf32>
    %106 = arith.mulf %95, %72 : vector<8x128xf32>
    %107 = arith.addf %105, %106 : vector<8x128xf32>
    %c2_30 = arith.constant 2 : index
    %c0_31 = arith.constant 0 : index
    %c0_32 = arith.constant 0 : index
    %108 = vector.load %arg4[%c2_30, %c0_31, %c0_32] : memref<4x8x128xf32, #tpu.memory_space<vmem>>, vector<1x8x128xf32>
    %109 = vector.shape_cast %108 : vector<1x8x128xf32> to vector<8x128xf32>
    %110 = vector.shape_cast %107 : vector<8x128xf32> to vector<1x8x128xf32>
    tpu.vector_store %arg4[%c2_30, %c0_31, %c0_32], %110 {strides = array<i32>} : memref<4x8x128xf32, #tpu.memory_space<vmem>>, vector<1x8x128xf32>,
    %c3 = arith.constant 3 : index
    %c0_33 = arith.constant 0 : index
    %c0_34 = arith.constant 0 : index
    %111 = vector.load %arg1[%c3, %c0_33, %c0_34] : memref<4x8x384xf32, #tpu.memory_space<vmem>>, vector<1x8x384xf32>
    %112 = vector.shape_cast %111 : vector<1x8x384xf32> to vector<8x384xf32>
    %113 = arith.truncf %107 : vector<8x128xf32> to vector<8x128xbf16>
    %cst_35 = arith.constant dense<0.000000e+00> : vector<8x384xf32>
    %114 = tpu.matmul %113, %3, %cst_35 {dimension_numbers = #tpu.dot_dimension_numbers<[1], [0], [0], [1], [0, 0, 1, 1], [], []>} : vector<8x128xbf16>, vector<128x384xbf16>, vector<8x384xf32> -> vector<8x384xf32>
    %115 = vector.extract_strided_slice %112 {offsets = [0, 0], sizes = [8, 128], strides = [1, 1]} : vector<8x384xf32> to vector<8x128xf32>
    %116 = vector.extract_strided_slice %114 {offsets = [0, 0], sizes = [8, 128], strides = [1, 1]} : vector<8x384xf32> to vector<8x128xf32>
    %117 = arith.addf %115, %116 : vector<8x128xf32>
    %118 = arith.negf %117 : vector<8x128xf32>
    %119 = math.exp %118 : vector<8x128xf32>
    %cst_36 = arith.constant 1.000000e+00 : f32
    %120 = vector.broadcast %cst_36 : f32 to vector<8x128xf32>
    %121 = arith.addf %120, %119 : vector<8x128xf32>
    %122 = arith.divf %120, %121 : vector<8x128xf32>
    %123 = vector.extract_strided_slice %112 {offsets = [0, 128], sizes = [8, 128], strides = [1, 1]} : vector<8x384xf32> to vector<8x128xf32>
    %124 = vector.extract_strided_slice %114 {offsets = [0, 128], sizes = [8, 128], strides = [1, 1]} : vector<8x384xf32> to vector<8x128xf32>
    %125 = arith.addf %123, %124 : vector<8x128xf32>
    %126 = arith.negf %125 : vector<8x128xf32>
    %127 = math.exp %126 : vector<8x128xf32>
    %cst_37 = arith.constant 1.000000e+00 : f32
    %128 = vector.broadcast %cst_37 : f32 to vector<8x128xf32>
    %129 = arith.addf %128, %127 : vector<8x128xf32>
    %130 = arith.divf %128, %129 : vector<8x128xf32>
    %131 = vector.extract_strided_slice %112 {offsets = [0, 256], sizes = [8, 128], strides = [1, 1]} : vector<8x384xf32> to vector<8x128xf32>
    %132 = vector.extract_strided_slice %114 {offsets = [0, 256], sizes = [8, 128], strides = [1, 1]} : vector<8x384xf32> to vector<8x128xf32>
    %133 = vector.broadcast %4 : vector<1x128xf32> to vector<8x128xf32>
    %134 = arith.addf %132, %133 : vector<8x128xf32>
    %135 = arith.mulf %122, %134 : vector<8x128xf32>
    %136 = arith.addf %131, %135 : vector<8x128xf32>
    %137 = math.tanh %136 : vector<8x128xf32>
    %cst_38 = arith.constant 1.000000e+00 : f32
    %138 = vector.broadcast %cst_38 : f32 to vector<8x128xf32>
    %139 = arith.subf %138, %130 : vector<8x128xf32>
    %140 = arith.mulf %139, %137 : vector<8x128xf32>
    %141 = arith.mulf %130, %107 : vector<8x128xf32>
    %142 = arith.addf %140, %141 : vector<8x128xf32>
    %c3_39 = arith.constant 3 : index
    %c0_40 = arith.constant 0 : index
    %c0_41 = arith.constant 0 : index
    %143 = vector.load %arg4[%c3_39, %c0_40, %c0_41] : memref<4x8x128xf32, #tpu.memory_space<vmem>>, vector<1x8x128xf32>
    %144 = vector.shape_cast %143 : vector<1x8x128xf32> to vector<8x128xf32>
    %145 = vector.shape_cast %142 : vector<8x128xf32> to vector<1x8x128xf32>
    tpu.vector_store %arg4[%c3_39, %c0_40, %c0_41], %145 {strides = array<i32>} : memref<4x8x128xf32, #tpu.memory_space<vmem>>, vector<1x8x128xf32>,
    %c0_42 = arith.constant 0 : index
    %c0_43 = arith.constant 0 : index
    %146 = vector.load %arg5[%c0_42, %c0_43] : memref<8x128xf32, #tpu.memory_space<vmem>>, vector<8x128xf32>
    tpu.vector_store %arg5[%c0_42, %c0_43], %142 {strides = array<i32>} : memref<8x128xf32, #tpu.memory_space<vmem>>, vector<8x128xf32>,
    return
  }
  func.func @transform_0(%arg0: i32) -> (i32, i32, i32) {
    %c0_i32 = arith.constant 0 : i32
    %c0_i32_0 = arith.constant 0 : i32
    %c0_i32_1 = arith.constant 0 : i32
    return %arg0, %c0_i32, %c0_i32_0 : i32, i32, i32
  }
  func.func @transform_1(%arg0: i32) -> (i32, i32) {
    %c0_i32 = arith.constant 0 : i32
    %c0_i32_0 = arith.constant 0 : i32
    %c0_i32_1 = arith.constant 0 : i32
    return %c0_i32, %c0_i32_0 : i32, i32
  }
  func.func @transform_2(%arg0: i32) -> (i32, i32) {
    %c0_i32 = arith.constant 0 : i32
    %c0_i32_0 = arith.constant 0 : i32
    %c0_i32_1 = arith.constant 0 : i32
    return %c0_i32, %c0_i32_0 : i32, i32
  }
  func.func @transform_3(%arg0: i32) -> (i32, i32, i32) {
    %c0_i32 = arith.constant 0 : i32
    %c0_i32_0 = arith.constant 0 : i32
    %c0_i32_1 = arith.constant 0 : i32
    return %arg0, %c0_i32, %c0_i32_0 : i32, i32, i32
  }
}

module attributes {stable_mosaic.version = 11 : i64} {
  func.func @_gru_kernel(%arg0: i32, %arg1: memref<4x8x384xf32, #tpu.memory_space<vmem>>, %arg2: memref<128x384xbf16, #tpu.memory_space<vmem>>, %arg3: memref<1x128xf32, #tpu.memory_space<vmem>>, %arg4: memref<8x128xf32, #tpu.memory_space<vmem>>, %arg5: memref<8x128xf32, #tpu.memory_space<vmem>>) attributes {dimension_semantics = [#tpu.dimension_semantics<arbitrary>], iteration_bounds = array<i64: 1>, scalar_prefetch = 0 : i64, scratch_operands = 1 : i64, tpu.core_type = #tpu.core_type<tc>, window_params = [{transform_indices = @transform_0, window_bounds = array<i64: 4, 8, 384>}, {pipeline_mode = #tpu.pipeline_mode<synchronous>, transform_indices = @transform_1, window_bounds = array<i64: 128, 384>}, {pipeline_mode = #tpu.pipeline_mode<synchronous>, transform_indices = @transform_2, window_bounds = array<i64: 1, 128>}, {pipeline_mode = #tpu.pipeline_mode<synchronous>, transform_indices = @transform_3, window_bounds = array<i64: 8, 128>}]} {
    %c0_i32 = arith.constant 0 : i32
    %0 = arith.cmpi eq, %arg0, %c0_i32 : i32
    %1 = arith.extui %0 : i1 to i32
    %c0_i32_0 = arith.constant 0 : i32
    %2 = arith.cmpi ne, %1, %c0_i32_0 : i32
    scf.if %2 {
      %cst_34 = arith.constant 0.000000e+00 : f32
      %136 = vector.broadcast %cst_34 : f32 to vector<8x128xf32>
      %c0_35 = arith.constant 0 : index
      %c0_36 = arith.constant 0 : index
      %137 = vector.load %arg5[%c0_35, %c0_36] : memref<8x128xf32, #tpu.memory_space<vmem>>, vector<8x128xf32>
      tpu.vector_store %arg5[%c0_35, %c0_36], %136 {strides = array<i32>} : memref<8x128xf32, #tpu.memory_space<vmem>>, vector<8x128xf32>,
    } else {
    }
    %c0 = arith.constant 0 : index
    %c0_1 = arith.constant 0 : index
    %3 = vector.load %arg2[%c0, %c0_1] : memref<128x384xbf16, #tpu.memory_space<vmem>>, vector<128x384xbf16>
    %c0_2 = arith.constant 0 : index
    %c0_3 = arith.constant 0 : index
    %4 = vector.load %arg3[%c0_2, %c0_3] : memref<1x128xf32, #tpu.memory_space<vmem>>, vector<1x128xf32>
    %c0_4 = arith.constant 0 : index
    %c0_5 = arith.constant 0 : index
    %5 = vector.load %arg5[%c0_4, %c0_5] : memref<8x128xf32, #tpu.memory_space<vmem>>, vector<8x128xf32>
    %c0_6 = arith.constant 0 : index
    %c0_7 = arith.constant 0 : index
    %c0_8 = arith.constant 0 : index
    %6 = vector.load %arg1[%c0_6, %c0_7, %c0_8] : memref<4x8x384xf32, #tpu.memory_space<vmem>>, vector<1x8x384xf32>
    %7 = vector.shape_cast %6 : vector<1x8x384xf32> to vector<8x384xf32>
    %8 = arith.truncf %5 : vector<8x128xf32> to vector<8x128xbf16>
    %cst = arith.constant dense<0.000000e+00> : vector<8x384xf32>
    %9 = tpu.matmul %8, %3, %cst {dimension_numbers = #tpu.dot_dimension_numbers<[1], [0], [0], [1], [0, 0, 1, 1], [], []>} : vector<8x128xbf16>, vector<128x384xbf16>, vector<8x384xf32> -> vector<8x384xf32>
    %10 = vector.extract_strided_slice %7 {offsets = [0, 0], sizes = [8, 128], strides = [1, 1]} : vector<8x384xf32> to vector<8x128xf32>
    %11 = vector.extract_strided_slice %9 {offsets = [0, 0], sizes = [8, 128], strides = [1, 1]} : vector<8x384xf32> to vector<8x128xf32>
    %12 = arith.addf %10, %11 : vector<8x128xf32>
    %13 = arith.negf %12 : vector<8x128xf32>
    %14 = math.exp %13 : vector<8x128xf32>
    %cst_9 = arith.constant 1.000000e+00 : f32
    %15 = vector.broadcast %cst_9 : f32 to vector<8x128xf32>
    %16 = arith.addf %15, %14 : vector<8x128xf32>
    %17 = arith.divf %15, %16 : vector<8x128xf32>
    %18 = vector.extract_strided_slice %7 {offsets = [0, 128], sizes = [8, 128], strides = [1, 1]} : vector<8x384xf32> to vector<8x128xf32>
    %19 = vector.extract_strided_slice %9 {offsets = [0, 128], sizes = [8, 128], strides = [1, 1]} : vector<8x384xf32> to vector<8x128xf32>
    %20 = arith.addf %18, %19 : vector<8x128xf32>
    %21 = arith.negf %20 : vector<8x128xf32>
    %22 = math.exp %21 : vector<8x128xf32>
    %cst_10 = arith.constant 1.000000e+00 : f32
    %23 = vector.broadcast %cst_10 : f32 to vector<8x128xf32>
    %24 = arith.addf %23, %22 : vector<8x128xf32>
    %25 = arith.divf %23, %24 : vector<8x128xf32>
    %26 = vector.extract_strided_slice %7 {offsets = [0, 256], sizes = [8, 128], strides = [1, 1]} : vector<8x384xf32> to vector<8x128xf32>
    %27 = vector.extract_strided_slice %9 {offsets = [0, 256], sizes = [8, 128], strides = [1, 1]} : vector<8x384xf32> to vector<8x128xf32>
    %28 = vector.broadcast %4 : vector<1x128xf32> to vector<8x128xf32>
    %29 = arith.addf %27, %28 : vector<8x128xf32>
    %30 = arith.mulf %17, %29 : vector<8x128xf32>
    %31 = arith.addf %26, %30 : vector<8x128xf32>
    %32 = math.tanh %31 : vector<8x128xf32>
    %cst_11 = arith.constant 1.000000e+00 : f32
    %33 = vector.broadcast %cst_11 : f32 to vector<8x128xf32>
    %34 = arith.subf %33, %25 : vector<8x128xf32>
    %35 = arith.mulf %34, %32 : vector<8x128xf32>
    %36 = arith.mulf %25, %5 : vector<8x128xf32>
    %37 = arith.addf %35, %36 : vector<8x128xf32>
    %c1 = arith.constant 1 : index
    %c0_12 = arith.constant 0 : index
    %c0_13 = arith.constant 0 : index
    %38 = vector.load %arg1[%c1, %c0_12, %c0_13] : memref<4x8x384xf32, #tpu.memory_space<vmem>>, vector<1x8x384xf32>
    %39 = vector.shape_cast %38 : vector<1x8x384xf32> to vector<8x384xf32>
    %40 = arith.truncf %37 : vector<8x128xf32> to vector<8x128xbf16>
    %cst_14 = arith.constant dense<0.000000e+00> : vector<8x384xf32>
    %41 = tpu.matmul %40, %3, %cst_14 {dimension_numbers = #tpu.dot_dimension_numbers<[1], [0], [0], [1], [0, 0, 1, 1], [], []>} : vector<8x128xbf16>, vector<128x384xbf16>, vector<8x384xf32> -> vector<8x384xf32>
    %42 = vector.extract_strided_slice %39 {offsets = [0, 0], sizes = [8, 128], strides = [1, 1]} : vector<8x384xf32> to vector<8x128xf32>
    %43 = vector.extract_strided_slice %41 {offsets = [0, 0], sizes = [8, 128], strides = [1, 1]} : vector<8x384xf32> to vector<8x128xf32>
    %44 = arith.addf %42, %43 : vector<8x128xf32>
    %45 = arith.negf %44 : vector<8x128xf32>
    %46 = math.exp %45 : vector<8x128xf32>
    %cst_15 = arith.constant 1.000000e+00 : f32
    %47 = vector.broadcast %cst_15 : f32 to vector<8x128xf32>
    %48 = arith.addf %47, %46 : vector<8x128xf32>
    %49 = arith.divf %47, %48 : vector<8x128xf32>
    %50 = vector.extract_strided_slice %39 {offsets = [0, 128], sizes = [8, 128], strides = [1, 1]} : vector<8x384xf32> to vector<8x128xf32>
    %51 = vector.extract_strided_slice %41 {offsets = [0, 128], sizes = [8, 128], strides = [1, 1]} : vector<8x384xf32> to vector<8x128xf32>
    %52 = arith.addf %50, %51 : vector<8x128xf32>
    %53 = arith.negf %52 : vector<8x128xf32>
    %54 = math.exp %53 : vector<8x128xf32>
    %cst_16 = arith.constant 1.000000e+00 : f32
    %55 = vector.broadcast %cst_16 : f32 to vector<8x128xf32>
    %56 = arith.addf %55, %54 : vector<8x128xf32>
    %57 = arith.divf %55, %56 : vector<8x128xf32>
    %58 = vector.extract_strided_slice %39 {offsets = [0, 256], sizes = [8, 128], strides = [1, 1]} : vector<8x384xf32> to vector<8x128xf32>
    %59 = vector.extract_strided_slice %41 {offsets = [0, 256], sizes = [8, 128], strides = [1, 1]} : vector<8x384xf32> to vector<8x128xf32>
    %60 = vector.broadcast %4 : vector<1x128xf32> to vector<8x128xf32>
    %61 = arith.addf %59, %60 : vector<8x128xf32>
    %62 = arith.mulf %49, %61 : vector<8x128xf32>
    %63 = arith.addf %58, %62 : vector<8x128xf32>
    %64 = math.tanh %63 : vector<8x128xf32>
    %cst_17 = arith.constant 1.000000e+00 : f32
    %65 = vector.broadcast %cst_17 : f32 to vector<8x128xf32>
    %66 = arith.subf %65, %57 : vector<8x128xf32>
    %67 = arith.mulf %66, %64 : vector<8x128xf32>
    %68 = arith.mulf %57, %37 : vector<8x128xf32>
    %69 = arith.addf %67, %68 : vector<8x128xf32>
    %c2 = arith.constant 2 : index
    %c0_18 = arith.constant 0 : index
    %c0_19 = arith.constant 0 : index
    %70 = vector.load %arg1[%c2, %c0_18, %c0_19] : memref<4x8x384xf32, #tpu.memory_space<vmem>>, vector<1x8x384xf32>
    %71 = vector.shape_cast %70 : vector<1x8x384xf32> to vector<8x384xf32>
    %72 = arith.truncf %69 : vector<8x128xf32> to vector<8x128xbf16>
    %cst_20 = arith.constant dense<0.000000e+00> : vector<8x384xf32>
    %73 = tpu.matmul %72, %3, %cst_20 {dimension_numbers = #tpu.dot_dimension_numbers<[1], [0], [0], [1], [0, 0, 1, 1], [], []>} : vector<8x128xbf16>, vector<128x384xbf16>, vector<8x384xf32> -> vector<8x384xf32>
    %74 = vector.extract_strided_slice %71 {offsets = [0, 0], sizes = [8, 128], strides = [1, 1]} : vector<8x384xf32> to vector<8x128xf32>
    %75 = vector.extract_strided_slice %73 {offsets = [0, 0], sizes = [8, 128], strides = [1, 1]} : vector<8x384xf32> to vector<8x128xf32>
    %76 = arith.addf %74, %75 : vector<8x128xf32>
    %77 = arith.negf %76 : vector<8x128xf32>
    %78 = math.exp %77 : vector<8x128xf32>
    %cst_21 = arith.constant 1.000000e+00 : f32
    %79 = vector.broadcast %cst_21 : f32 to vector<8x128xf32>
    %80 = arith.addf %79, %78 : vector<8x128xf32>
    %81 = arith.divf %79, %80 : vector<8x128xf32>
    %82 = vector.extract_strided_slice %71 {offsets = [0, 128], sizes = [8, 128], strides = [1, 1]} : vector<8x384xf32> to vector<8x128xf32>
    %83 = vector.extract_strided_slice %73 {offsets = [0, 128], sizes = [8, 128], strides = [1, 1]} : vector<8x384xf32> to vector<8x128xf32>
    %84 = arith.addf %82, %83 : vector<8x128xf32>
    %85 = arith.negf %84 : vector<8x128xf32>
    %86 = math.exp %85 : vector<8x128xf32>
    %cst_22 = arith.constant 1.000000e+00 : f32
    %87 = vector.broadcast %cst_22 : f32 to vector<8x128xf32>
    %88 = arith.addf %87, %86 : vector<8x128xf32>
    %89 = arith.divf %87, %88 : vector<8x128xf32>
    %90 = vector.extract_strided_slice %71 {offsets = [0, 256], sizes = [8, 128], strides = [1, 1]} : vector<8x384xf32> to vector<8x128xf32>
    %91 = vector.extract_strided_slice %73 {offsets = [0, 256], sizes = [8, 128], strides = [1, 1]} : vector<8x384xf32> to vector<8x128xf32>
    %92 = vector.broadcast %4 : vector<1x128xf32> to vector<8x128xf32>
    %93 = arith.addf %91, %92 : vector<8x128xf32>
    %94 = arith.mulf %81, %93 : vector<8x128xf32>
    %95 = arith.addf %90, %94 : vector<8x128xf32>
    %96 = math.tanh %95 : vector<8x128xf32>
    %cst_23 = arith.constant 1.000000e+00 : f32
    %97 = vector.broadcast %cst_23 : f32 to vector<8x128xf32>
    %98 = arith.subf %97, %89 : vector<8x128xf32>
    %99 = arith.mulf %98, %96 : vector<8x128xf32>
    %100 = arith.mulf %89, %69 : vector<8x128xf32>
    %101 = arith.addf %99, %100 : vector<8x128xf32>
    %c3 = arith.constant 3 : index
    %c0_24 = arith.constant 0 : index
    %c0_25 = arith.constant 0 : index
    %102 = vector.load %arg1[%c3, %c0_24, %c0_25] : memref<4x8x384xf32, #tpu.memory_space<vmem>>, vector<1x8x384xf32>
    %103 = vector.shape_cast %102 : vector<1x8x384xf32> to vector<8x384xf32>
    %104 = arith.truncf %101 : vector<8x128xf32> to vector<8x128xbf16>
    %cst_26 = arith.constant dense<0.000000e+00> : vector<8x384xf32>
    %105 = tpu.matmul %104, %3, %cst_26 {dimension_numbers = #tpu.dot_dimension_numbers<[1], [0], [0], [1], [0, 0, 1, 1], [], []>} : vector<8x128xbf16>, vector<128x384xbf16>, vector<8x384xf32> -> vector<8x384xf32>
    %106 = vector.extract_strided_slice %103 {offsets = [0, 0], sizes = [8, 128], strides = [1, 1]} : vector<8x384xf32> to vector<8x128xf32>
    %107 = vector.extract_strided_slice %105 {offsets = [0, 0], sizes = [8, 128], strides = [1, 1]} : vector<8x384xf32> to vector<8x128xf32>
    %108 = arith.addf %106, %107 : vector<8x128xf32>
    %109 = arith.negf %108 : vector<8x128xf32>
    %110 = math.exp %109 : vector<8x128xf32>
    %cst_27 = arith.constant 1.000000e+00 : f32
    %111 = vector.broadcast %cst_27 : f32 to vector<8x128xf32>
    %112 = arith.addf %111, %110 : vector<8x128xf32>
    %113 = arith.divf %111, %112 : vector<8x128xf32>
    %114 = vector.extract_strided_slice %103 {offsets = [0, 128], sizes = [8, 128], strides = [1, 1]} : vector<8x384xf32> to vector<8x128xf32>
    %115 = vector.extract_strided_slice %105 {offsets = [0, 128], sizes = [8, 128], strides = [1, 1]} : vector<8x384xf32> to vector<8x128xf32>
    %116 = arith.addf %114, %115 : vector<8x128xf32>
    %117 = arith.negf %116 : vector<8x128xf32>
    %118 = math.exp %117 : vector<8x128xf32>
    %cst_28 = arith.constant 1.000000e+00 : f32
    %119 = vector.broadcast %cst_28 : f32 to vector<8x128xf32>
    %120 = arith.addf %119, %118 : vector<8x128xf32>
    %121 = arith.divf %119, %120 : vector<8x128xf32>
    %122 = vector.extract_strided_slice %103 {offsets = [0, 256], sizes = [8, 128], strides = [1, 1]} : vector<8x384xf32> to vector<8x128xf32>
    %123 = vector.extract_strided_slice %105 {offsets = [0, 256], sizes = [8, 128], strides = [1, 1]} : vector<8x384xf32> to vector<8x128xf32>
    %124 = vector.broadcast %4 : vector<1x128xf32> to vector<8x128xf32>
    %125 = arith.addf %123, %124 : vector<8x128xf32>
    %126 = arith.mulf %113, %125 : vector<8x128xf32>
    %127 = arith.addf %122, %126 : vector<8x128xf32>
    %128 = math.tanh %127 : vector<8x128xf32>
    %cst_29 = arith.constant 1.000000e+00 : f32
    %129 = vector.broadcast %cst_29 : f32 to vector<8x128xf32>
    %130 = arith.subf %129, %121 : vector<8x128xf32>
    %131 = arith.mulf %130, %128 : vector<8x128xf32>
    %132 = arith.mulf %121, %101 : vector<8x128xf32>
    %133 = arith.addf %131, %132 : vector<8x128xf32>
    %c0_30 = arith.constant 0 : index
    %c0_31 = arith.constant 0 : index
    %134 = vector.load %arg5[%c0_30, %c0_31] : memref<8x128xf32, #tpu.memory_space<vmem>>, vector<8x128xf32>
    tpu.vector_store %arg5[%c0_30, %c0_31], %133 {strides = array<i32>} : memref<8x128xf32, #tpu.memory_space<vmem>>, vector<8x128xf32>,
    %c0_32 = arith.constant 0 : index
    %c0_33 = arith.constant 0 : index
    %135 = vector.load %arg4[%c0_32, %c0_33] : memref<8x128xf32, #tpu.memory_space<vmem>>, vector<8x128xf32>
    tpu.vector_store %arg4[%c0_32, %c0_33], %133 {strides = array<i32>} : memref<8x128xf32, #tpu.memory_space<vmem>>, vector<8x128xf32>,
    return
  }
  func.func @transform_0(%arg0: i32) -> (i32, i32, i32) {
    %c0_i32 = arith.constant 0 : i32
    %c0_i32_0 = arith.constant 0 : i32
    %c0_i32_1 = arith.constant 0 : i32
    return %arg0, %c0_i32, %c0_i32_0 : i32, i32, i32
  }
  func.func @transform_1(%arg0: i32) -> (i32, i32) {
    %c0_i32 = arith.constant 0 : i32
    %c0_i32_0 = arith.constant 0 : i32
    %c0_i32_1 = arith.constant 0 : i32
    return %c0_i32, %c0_i32_0 : i32, i32
  }
  func.func @transform_2(%arg0: i32) -> (i32, i32) {
    %c0_i32 = arith.constant 0 : i32
    %c0_i32_0 = arith.constant 0 : i32
    %c0_i32_1 = arith.constant 0 : i32
    return %c0_i32, %c0_i32_0 : i32, i32
  }
  func.func @transform_3(%arg0: i32) -> (i32, i32) {
    %c0_i32 = arith.constant 0 : i32
    %c0_i32_0 = arith.constant 0 : i32
    %c0_i32_1 = arith.constant 0 : i32
    return %c0_i32, %c0_i32_0 : i32, i32
  }
}

module attributes {stable_mosaic.version = 11 : i64} {
  func.func @_mlp_kernel(%arg0: i32, %arg1: memref<8x128xf32, #tpu.memory_space<vmem>>, %arg2: memref<128x128xbf16, #tpu.memory_space<vmem>>, %arg3: memref<1x128xf32, #tpu.memory_space<vmem>>, %arg4: memref<128x128xbf16, #tpu.memory_space<vmem>>, %arg5: memref<1x128xf32, #tpu.memory_space<vmem>>, %arg6: memref<128x128xbf16, #tpu.memory_space<vmem>>, %arg7: memref<1x128xf32, #tpu.memory_space<vmem>>, %arg8: memref<8x128xf32, #tpu.memory_space<vmem>>) attributes {dimension_semantics = [#tpu.dimension_semantics<parallel>], iteration_bounds = array<i64: 1>, scalar_prefetch = 0 : i64, scratch_operands = 0 : i64, tpu.core_type = #tpu.core_type<tc>, window_params = [{transform_indices = @transform_0, window_bounds = array<i64: 8, 128>}, {pipeline_mode = #tpu.pipeline_mode<synchronous>, transform_indices = @transform_1, window_bounds = array<i64: 128, 128>}, {pipeline_mode = #tpu.pipeline_mode<synchronous>, transform_indices = @transform_2, window_bounds = array<i64: 1, 128>}, {pipeline_mode = #tpu.pipeline_mode<synchronous>, transform_indices = @transform_3, window_bounds = array<i64: 128, 128>}, {pipeline_mode = #tpu.pipeline_mode<synchronous>, transform_indices = @transform_4, window_bounds = array<i64: 1, 128>}, {pipeline_mode = #tpu.pipeline_mode<synchronous>, transform_indices = @transform_5, window_bounds = array<i64: 128, 128>}, {pipeline_mode = #tpu.pipeline_mode<synchronous>, transform_indices = @transform_6, window_bounds = array<i64: 1, 128>}, {transform_indices = @transform_7, window_bounds = array<i64: 8, 128>}]} {
    %c0 = arith.constant 0 : index
    %c0_0 = arith.constant 0 : index
    %0 = vector.load %arg1[%c0, %c0_0] : memref<8x128xf32, #tpu.memory_space<vmem>>, vector<8x128xf32>
    %c0_1 = arith.constant 0 : index
    %c0_2 = arith.constant 0 : index
    %1 = vector.load %arg2[%c0_1, %c0_2] : memref<128x128xbf16, #tpu.memory_space<vmem>>, vector<128x128xbf16>
    %c0_3 = arith.constant 0 : index
    %c0_4 = arith.constant 0 : index
    %2 = vector.load %arg3[%c0_3, %c0_4] : memref<1x128xf32, #tpu.memory_space<vmem>>, vector<1x128xf32>
    %3 = arith.truncf %0 : vector<8x128xf32> to vector<8x128xbf16>
    %cst = arith.constant dense<0.000000e+00> : vector<8x128xf32>
    %4 = tpu.matmul %3, %1, %cst {dimension_numbers = #tpu.dot_dimension_numbers<[1], [0], [0], [1], [0, 0, 1, 1], [], []>} : vector<8x128xbf16>, vector<128x128xbf16>, vector<8x128xf32> -> vector<8x128xf32>
    %5 = vector.broadcast %2 : vector<1x128xf32> to vector<8x128xf32>
    %6 = arith.addf %4, %5 : vector<8x128xf32>
    %cst_5 = arith.constant 0.000000e+00 : f32
    %7 = vector.broadcast %cst_5 : f32 to vector<8x128xf32>
    %8 = arith.maximumf %6, %7 : vector<8x128xf32>
    %c0_6 = arith.constant 0 : index
    %c0_7 = arith.constant 0 : index
    %9 = vector.load %arg4[%c0_6, %c0_7] : memref<128x128xbf16, #tpu.memory_space<vmem>>, vector<128x128xbf16>
    %c0_8 = arith.constant 0 : index
    %c0_9 = arith.constant 0 : index
    %10 = vector.load %arg5[%c0_8, %c0_9] : memref<1x128xf32, #tpu.memory_space<vmem>>, vector<1x128xf32>
    %11 = arith.truncf %8 : vector<8x128xf32> to vector<8x128xbf16>
    %cst_10 = arith.constant dense<0.000000e+00> : vector<8x128xf32>
    %12 = tpu.matmul %11, %9, %cst_10 {dimension_numbers = #tpu.dot_dimension_numbers<[1], [0], [0], [1], [0, 0, 1, 1], [], []>} : vector<8x128xbf16>, vector<128x128xbf16>, vector<8x128xf32> -> vector<8x128xf32>
    %13 = vector.broadcast %10 : vector<1x128xf32> to vector<8x128xf32>
    %14 = arith.addf %12, %13 : vector<8x128xf32>
    %cst_11 = arith.constant 0.000000e+00 : f32
    %15 = vector.broadcast %cst_11 : f32 to vector<8x128xf32>
    %16 = arith.maximumf %14, %15 : vector<8x128xf32>
    %c0_12 = arith.constant 0 : index
    %c0_13 = arith.constant 0 : index
    %17 = vector.load %arg6[%c0_12, %c0_13] : memref<128x128xbf16, #tpu.memory_space<vmem>>, vector<128x128xbf16>
    %c0_14 = arith.constant 0 : index
    %c0_15 = arith.constant 0 : index
    %18 = vector.load %arg7[%c0_14, %c0_15] : memref<1x128xf32, #tpu.memory_space<vmem>>, vector<1x128xf32>
    %19 = arith.truncf %16 : vector<8x128xf32> to vector<8x128xbf16>
    %cst_16 = arith.constant dense<0.000000e+00> : vector<8x128xf32>
    %20 = tpu.matmul %19, %17, %cst_16 {dimension_numbers = #tpu.dot_dimension_numbers<[1], [0], [0], [1], [0, 0, 1, 1], [], []>} : vector<8x128xbf16>, vector<128x128xbf16>, vector<8x128xf32> -> vector<8x128xf32>
    %21 = vector.broadcast %18 : vector<1x128xf32> to vector<8x128xf32>
    %22 = arith.addf %20, %21 : vector<8x128xf32>
    %c0_17 = arith.constant 0 : index
    %c0_18 = arith.constant 0 : index
    %23 = vector.load %arg8[%c0_17, %c0_18] : memref<8x128xf32, #tpu.memory_space<vmem>>, vector<8x128xf32>
    tpu.vector_store %arg8[%c0_17, %c0_18], %22 {strides = array<i32>} : memref<8x128xf32, #tpu.memory_space<vmem>>, vector<8x128xf32>,
    return
  }
  func.func @transform_0(%arg0: i32) -> (i32, i32) {
    %c0_i32 = arith.constant 0 : i32
    %c0_i32_0 = arith.constant 0 : i32
    return %arg0, %c0_i32 : i32, i32
  }
  func.func @transform_1(%arg0: i32) -> (i32, i32) {
    %c0_i32 = arith.constant 0 : i32
    %c0_i32_0 = arith.constant 0 : i32
    %c0_i32_1 = arith.constant 0 : i32
    return %c0_i32, %c0_i32_0 : i32, i32
  }
  func.func @transform_2(%arg0: i32) -> (i32, i32) {
    %c0_i32 = arith.constant 0 : i32
    %c0_i32_0 = arith.constant 0 : i32
    %c0_i32_1 = arith.constant 0 : i32
    return %c0_i32, %c0_i32_0 : i32, i32
  }
  func.func @transform_3(%arg0: i32) -> (i32, i32) {
    %c0_i32 = arith.constant 0 : i32
    %c0_i32_0 = arith.constant 0 : i32
    %c0_i32_1 = arith.constant 0 : i32
    return %c0_i32, %c0_i32_0 : i32, i32
  }
  func.func @transform_4(%arg0: i32) -> (i32, i32) {
    %c0_i32 = arith.constant 0 : i32
    %c0_i32_0 = arith.constant 0 : i32
    %c0_i32_1 = arith.constant 0 : i32
    return %c0_i32, %c0_i32_0 : i32, i32
  }
  func.func @transform_5(%arg0: i32) -> (i32, i32) {
    %c0_i32 = arith.constant 0 : i32
    %c0_i32_0 = arith.constant 0 : i32
    %c0_i32_1 = arith.constant 0 : i32
    return %c0_i32, %c0_i32_0 : i32, i32
  }
  func.func @transform_6(%arg0: i32) -> (i32, i32) {
    %c0_i32 = arith.constant 0 : i32
    %c0_i32_0 = arith.constant 0 : i32
    %c0_i32_1 = arith.constant 0 : i32
    return %c0_i32, %c0_i32_0 : i32, i32
  }
  func.func @transform_7(%arg0: i32) -> (i32, i32) {
    %c0_i32 = arith.constant 0 : i32
    %c0_i32_0 = arith.constant 0 : i32
    return %arg0, %c0_i32 : i32, i32
  }
}

</mosaic_0001>

<llo_original>
// kernel: forward.9
$region0: #{forward.9}
  #allocation0 [shape = 'u32[]', space=smem, size = 0x4, offset = 0x4, fixed_abs, tag = 'smem constant byte address 0x4 - core index']
  #allocation1 [shape = 'u32[144,128]{1,0:T(1,128)}', space=vmem, size = 0x12000, scoped, tag = 'internal scratch']
  %s0 = inlined_call_operand.vmem [shape: f32[32,128], index: 0, kind: input, shape index: {}]
  %s1 = inlined_call_operand.vmem [shape: bf16[128,384], index: 1, kind: input, shape index: {}]
  %s2 = inlined_call_operand.vmem [shape: f32[1,384], index: 2, kind: input, shape index: {}]
  %s3 = inlined_call_operand.vmem [shape: f32[32,384], index: 3, kind: output, shape index: {}]
  %s4 = sld [smem:[#allocation0]]
  $region22: #{forward.9} parent=0
    _
  %s6 = ssub.s32 1, %s4
  %s7 = scalar_select 0, %s6, %s4
  // Predicated region
  $region2: #{forward.9} parent=0 // pred_check
    _
  $region3: #{forward.9} parent=0 // pred_check_branch
    %9 = sbr.rel (0) target = $region5
  $region4: #{forward.9} parent=0 // pred_region
    _
  $region5: #{forward.9} parent=0 // pred_fallthru
    _
  // Predicated region
  $region6: #{forward.9} parent=0 // pred_check
    _
  $region7: #{forward.9} parent=0 // pred_check_branch
    %11 = sbr.rel (0) target = $region9
  $region8: #{forward.9} parent=0 // pred_region
    _
  $region9: #{forward.9} parent=0 // pred_fallthru
    _
  // Predicated region
  $region10: #{forward.9} parent=0 // pred_check
    _
  $region11: #{forward.9} parent=0 // pred_check_branch
    %13 = sbr.rel (0) target = $region13
  $region12: #{forward.9} parent=0 // pred_region
    _
  $region13: #{forward.9} parent=0 // pred_fallthru
    _
  %v15 = vld [vmem:[%s0] sm:$0xff]
  %v16 = vld [vmem:[%s0 + $0x8] sm:$0xff]
  %v17 = vld [vmem:[%s0 + $0x10] sm:$0xff]
  %v18 = vld [vmem:[%s0 + $0x18] sm:$0xff]
  %v19 = vpack.c.bf16 %v16, %v15
  %v20 = vpack.c.bf16 %v18, %v17
  %v21 = vld [vmem:[%s1] sm:$0xff]
  %v22 = vld [vmem:[%s1 + $0x8] sm:$0xf]
  %v23 = vld [vmem:[%s1 + $0xc] sm:$0xff]
  %v24 = vld [vmem:[%s1 + $0x14] sm:$0xf]
  %v25 = vld [vmem:[%s1 + $0x18] sm:$0xff]
  %v26 = vld [vmem:[%s1 + $0x20] sm:$0xf]
  %v27 = vld [vmem:[%s1 + $0x24] sm:$0xff]
  %v28 = vld [vmem:[%s1 + $0x2c] sm:$0xf]
  %v29 = vld [vmem:[%s1 + $0x30] sm:$0xff]
  %v30 = vld [vmem:[%s1 + $0x38] sm:$0xf]
  %v31 = vld [vmem:[%s1 + $0x3c] sm:$0xff]
  %v32 = vld [vmem:[%s1 + $0x44] sm:$0xf]
  %v33 = vld [vmem:[%s1 + $0x48] sm:$0xff]
  %v34 = vld [vmem:[%s1 + $0x50] sm:$0xf]
  %v35 = vld [vmem:[%s1 + $0x54] sm:$0xff]
  %v36 = vld [vmem:[%s1 + $0x5c] sm:$0xf]
  %v37 = vld [vmem:[%s1 + $0x60] sm:$0xff]
  %v38 = vld [vmem:[%s1 + $0x68] sm:$0xf]
  %v39 = vld [vmem:[%s1 + $0x6c] sm:$0xff]
  %v40 = vld [vmem:[%s1 + $0x74] sm:$0xf]
  %v41 = vld [vmem:[%s1 + $0x78] sm:$0xff]
  %v42 = vld [vmem:[%s1 + $0x80] sm:$0xf]
  %v43 = vld [vmem:[%s1 + $0x84] sm:$0xff]
  %v44 = vld [vmem:[%s1 + $0x8c] sm:$0xf]
  %v45 = vld [vmem:[%s1 + $0x90] sm:$0xff]
  %v46 = vld [vmem:[%s1 + $0x98] sm:$0xf]
  %v47 = vld [vmem:[%s1 + $0x9c] sm:$0xff]
  %v48 = vld [vmem:[%s1 + $0xa4] sm:$0xf]
  %v49 = vld [vmem:[%s1 + $0xa8] sm:$0xff]
  %v50 = vld [vmem:[%s1 + $0xb0] sm:$0xf]
  %v51 = vld [vmem:[%s1 + $0xb4] sm:$0xff]
  %v52 = vld [vmem:[%s1 + $0xbc] sm:$0xf]
  %v53 = vld [vmem:[%s2] sm:$0x7]
  %v55 = vlaneseq
  %v56 = vshrl.u32 %v55, 7
  %v57 = vsub.s32 0, %v56
  %v58 = vrot.slane %v53, %v57
  %v59 = vlaneseq
  %v60 = vshrl.u32 %v59, 7
  %v61 = vsub.s32 1, %v60
  %v62 = vrot.slane %v53, %v61
  %v63 = vlaneseq
  %v64 = vshrl.u32 %v63, 7
  %v65 = vsub.s32 2, %v64
  %v66 = vrot.slane %v53, %v65
  %v102 = vunpack.c.l.b16 %v21
  %v103 = vunpack.c.h.b16 %v21
  %v104 = vunpack.c.l.b16 %v22
  %v105 = vunpack.c.l.b16 %v23
  %v106 = vunpack.c.h.b16 %v23
  %v107 = vunpack.c.l.b16 %v24
  %v108 = vunpack.c.l.b16 %v25
  %v109 = vunpack.c.h.b16 %v25
  %v110 = vunpack.c.l.b16 %v26
  %v111 = vunpack.c.l.b16 %v27
  %v112 = vunpack.c.h.b16 %v27
  %v113 = vunpack.c.l.b16 %v28
  %v114 = vunpack.c.l.b16 %v29
  %v115 = vunpack.c.h.b16 %v29
  %v116 = vunpack.c.l.b16 %v30
  %v117 = vunpack.c.l.b16 %v31
  %v118 = vunpack.c.h.b16 %v31
  %v119 = vunpack.c.l.b16 %v32
  %v120 = vunpack.c.l.b16 %v33
  %v121 = vunpack.c.h.b16 %v33
  %v122 = vunpack.c.l.b16 %v34
  %v123 = vunpack.c.l.b16 %v35
  %v124 = vunpack.c.h.b16 %v35
  %v125 = vunpack.c.l.b16 %v36
  %v126 = vunpack.c.l.b16 %v37
  %v127 = vunpack.c.h.b16 %v37
  %v128 = vunpack.c.l.b16 %v38
  %v129 = vunpack.c.l.b16 %v39
  %v130 = vunpack.c.h.b16 %v39
  %v131 = vunpack.c.l.b16 %v40
  %v132 = vunpack.c.l.b16 %v41
  %v133 = vunpack.c.h.b16 %v41
  %v134 = vunpack.c.l.b16 %v42
  %v135 = vunpack.c.l.b16 %v43
  %v136 = vunpack.c.h.b16 %v43
  %v137 = vunpack.c.l.b16 %v44
  %v138 = vunpack.c.l.b16 %v45
  %v139 = vunpack.c.h.b16 %v45
  %v140 = vunpack.c.l.b16 %v46
  %v141 = vunpack.c.l.b16 %v47
  %v142 = vunpack.c.h.b16 %v47
  %v143 = vunpack.c.l.b16 %v48
  %v144 = vunpack.c.l.b16 %v49
  %v145 = vunpack.c.h.b16 %v49
  %v146 = vunpack.c.l.b16 %v50
  %v147 = vunpack.c.l.b16 %v51
  %v148 = vunpack.c.h.b16 %v51
  %v149 = vunpack.c.l.b16 %v52
  %v150 = vpack.c.b16 %v105, %v102
  %v151 = vpack.c.b16 %v106, %v103
  %v152 = vpack.c.b16 %v107, %v104
  %v153 = vpack.c.b16 %v111, %v108
  %v154 = vpack.c.b16 %v112, %v109
  %v155 = vpack.c.b16 %v113, %v110
  %v156 = vpack.c.b16 %v117, %v114
  %v157 = vpack.c.b16 %v118, %v115
  %v158 = vpack.c.b16 %v119, %v116
  %v159 = vpack.c.b16 %v123, %v120
  %v160 = vpack.c.b16 %v124, %v121
  %v161 = vpack.c.b16 %v125, %v122
  %v162 = vpack.c.b16 %v129, %v126
  %v163 = vpack.c.b16 %v130, %v127
  %v164 = vpack.c.b16 %v131, %v128
  %v165 = vpack.c.b16 %v135, %v132
  %v166 = vpack.c.b16 %v136, %v133
  %v167 = vpack.c.b16 %v137, %v134
  %v168 = vpack.c.b16 %v141, %v138
  %v169 = vpack.c.b16 %v142, %v139
  %v170 = vpack.c.b16 %v143, %v140
  %v171 = vpack.c.b16 %v147, %v144
  %v172 = vpack.c.b16 %v148, %v145
  %v173 = vpack.c.b16 %v149, %v146
  %198 = vmatprep.subr.bf16.mxu0 %v172
  %199 = vmatpush1.bf16.msra.mxu0 %v171
  %200 = vmatprep.subr.bf16.mxu0 %v169
  %201 = vmatpush1.bf16.msra.mxu0 %v168
  %202 = vmatprep.subr.bf16.mxu0 %v166
  %203 = vmatpush1.bf16.msra.mxu0 %v165
  %204 = vmatprep.subr.bf16.mxu0 %v163
  %205 = vmatpush1.bf16.msra.mxu0 %v162
  %206 = vmatprep.subr.bf16.mxu0 %v160
  %207 = vmatpush1.bf16.msra.mxu0 %v159
  %208 = vmatprep.subr.bf16.mxu0 %v157
  %209 = vmatpush1.bf16.msra.mxu0 %v156
  %210 = vmatprep.subr.bf16.mxu0 %v154
  %211 = vmatpush1.bf16.msra.mxu0 %v153
  %212 = vmatprep.subr.bf16.mxu0 %v151
  %213 = vmatpush1.bf16.msra.mxu0 %v150
  %214 = vmatprep.subr.bf16.mxu0 0
  %215 = vmatpush2.bf16.msra.mxu0 0
  %216 = vmatprep.subr.bf16.mxu0 0
  %217 = vmatpush2.bf16.msra.mxu0 0
  %218 = vmatprep.subr.bf16.mxu0 0
  %219 = vmatpush2.bf16.msra.mxu0 0
  %220 = vmatprep.subr.bf16.mxu0 0
  %221 = vmatpush2.bf16.msra.mxu0 0
  %222 = vmatprep.subr.bf16.mxu0 0
  %223 = vmatpush2.bf16.msra.mxu0 0
  %224 = vmatprep.subr.bf16.mxu0 0
  %225 = vmatpush2.bf16.msra.mxu0 0
  %226 = vmatprep.subr.bf16.mxu0 0
  %227 = vmatpush2.bf16.msra.mxu0 0
  %228 = vmatprep.subr.bf16.mxu0 0
  %229 = vmatpush2.bf16.msra.mxu0 0
  %230 = vmatprep.mubr.bf16.mxu0 0
  %231 = vmatmul.mubr.bf16.gmra.mxu0 %v19
  %v232 = vpop.f32.mrf.mxu0
  %v233 = vadd.f32 %v58, %v232
  %v234 = vpop.f32.mrf.mxu0
  %v235 = vadd.f32 %v62, %v234
  %v236 = vpop.f32.mrf.mxu0
  %v237 = vadd.f32 %v58, %v236
  %v238 = vpop.f32.mrf.mxu0
  %v239 = vadd.f32 %v62, %v238
  %240 = vmatprep.mubr.bf16.mxu0 0
  %241 = vmatmul.mubr.bf16.gmra.mxu0 %v20
  %v242 = vpop.f32.mrf.mxu0
  %v243 = vadd.f32 %v58, %v242
  %v244 = vpop.f32.mrf.mxu0
  %v245 = vadd.f32 %v62, %v244
  %v246 = vpop.f32.mrf.mxu0
  %v247 = vadd.f32 %v58, %v246
  %v248 = vpop.f32.mrf.mxu0
  %v249 = vadd.f32 %v62, %v248
  %250 = vdwg.mxu0
  %251 = vmatprep.subr.bf16.mxu0 0
  %252 = vmatpush1.bf16.msra.mxu0 %v173
  %253 = vmatprep.subr.bf16.mxu0 0
  %254 = vmatpush1.bf16.msra.mxu0 %v170
  %255 = vmatprep.subr.bf16.mxu0 0
  %256 = vmatpush1.bf16.msra.mxu0 %v167
  %257 = vmatprep.subr.bf16.mxu0 0
  %258 = vmatpush1.bf16.msra.mxu0 %v164
  %259 = vmatprep.subr.bf16.mxu0 0
  %260 = vmatpush1.bf16.msra.mxu0 %v161
  %261 = vmatprep.subr.bf16.mxu0 0
  %262 = vmatpush1.bf16.msra.mxu0 %v158
  %263 = vmatprep.subr.bf16.mxu0 0
  %264 = vmatpush1.bf16.msra.mxu0 %v155
  %265 = vmatprep.subr.bf16.mxu0 0
  %266 = vmatpush1.bf16.msra.mxu0 %v152
  %267 = vmatprep.subr.bf16.mxu0 0
  %268 = vmatpush2.bf16.msra.mxu0 0
  %269 = vmatprep.subr.bf16.mxu0 0
  %270 = vmatpush2.bf16.msra.mxu0 0
  %271 = vmatprep.subr.bf16.mxu0 0
  %272 = vmatpush2.bf16.msra.mxu0 0
  %273 = vmatprep.subr.bf16.mxu0 0
  %274 = vmatpush2.bf16.msra.mxu0 0
  %275 = vmatprep.subr.bf16.mxu0 0
  %276 = vmatpush2.bf16.msra.mxu0 0
  %277 = vmatprep.subr.bf16.mxu0 0
  %278 = vmatpush2.bf16.msra.mxu0 0
  %279 = vmatprep.subr.bf16.mxu0 0
  %280 = vmatpush2.bf16.msra.mxu0 0
  %281 = vmatprep.subr.bf16.mxu0 0
  %282 = vmatpush2.bf16.msra.mxu0 0
  %283 = vmatprep.mubr.bf16.mxu0 0
  %284 = vmatmul.mubr.bf16.gmra.mxu0 %v19
  %v285 = vpop.f32.mrf.mxu0
  %v286 = vadd.f32 %v66, %v285
  %v287 = vpop.f32.mrf.mxu0
  %v288 = vpop.f32.mrf.mxu0
  %v289 = vadd.f32 %v66, %v288
  %v290 = vpop.f32.mrf.mxu0
  %291 = vmatprep.mubr.bf16.mxu0 0
  %292 = vmatmul.mubr.bf16.gmra.mxu0 %v20
  %v293 = vpop.f32.mrf.mxu0
  %v294 = vadd.f32 %v66, %v293
  %v295 = vpop.f32.mrf.mxu0
  %v296 = vpop.f32.mrf.mxu0
  %v297 = vadd.f32 %v66, %v296
  %v298 = vpop.f32.mrf.mxu0
  %299 = vdwg.mxu0
  %300 = vst [vmem:[%s3] sm:$0xff] %v233
  %301 = vst [vmem:[%s3 + $0x8] sm:$0xff] %v235
  %302 = vst [vmem:[%s3 + $0x10] sm:$0xff] %v286
  %303 = vst [vmem:[%s3 + $0x18] sm:$0xff] %v237
  %304 = vst [vmem:[%s3 + $0x20] sm:$0xff] %v239
  %305 = vst [vmem:[%s3 + $0x28] sm:$0xff] %v289
  %306 = vst [vmem:[%s3 + $0x30] sm:$0xff] %v243
  %307 = vst [vmem:[%s3 + $0x38] sm:$0xff] %v245
  %308 = vst [vmem:[%s3 + $0x40] sm:$0xff] %v294
  %309 = vst [vmem:[%s3 + $0x48] sm:$0xff] %v247
  %310 = vst [vmem:[%s3 + $0x50] sm:$0xff] %v249
  %311 = vst [vmem:[%s3 + $0x58] sm:$0xff] %v297
  // Predicated region
  $region14: #{forward.9} parent=0 // pred_check
    _
  $region15: #{forward.9} parent=0 // pred_check_branch
    %313 = sbr.rel (0) target = $region17
  $region16: #{forward.9} parent=0 // pred_region
    _
  $region17: #{forward.9} parent=0 // pred_fallthru
    _
  // Predicated region
  $region18: #{forward.9} parent=0 // pred_check
    _
  $region19: #{forward.9} parent=0 // pred_check_branch
    %315 = sbr.rel (0) target = $region21
  $region20: #{forward.9} parent=0 // pred_region
    _
  $region21: #{forward.9} parent=0 // pred_fallthru
    _

// kernel: forward.7
$region0: #{forward.7}
  #allocation0 [shape = 'u32[]', space=smem, size = 0x4, offset = 0x4, fixed_abs, tag = 'smem constant byte address 0x4 - core index']
  #allocation1 [shape = 'u32[144,128]{1,0:T(1,128)}', space=vmem, size = 0x12000, scoped, tag = 'internal scratch']
  #allocation2 [shape = 'f32[16,128]{1,0:T(8,128)}', space=vmem, size = 0x2000, scoped, tag = 'scratch operand']
  %s0 = inlined_call_operand.vmem [shape: f32[32,4], index: 0, kind: input, shape index: {}]
  %s1 = inlined_call_operand.hbm [shape: bf16[8,128], index: 1, kind: input, shape index: {}]
  %s2 = inlined_call_operand.hbm [shape: f32[1,128], index: 2, kind: input, shape index: {}]
  %s3 = inlined_call_operand.hbm [shape: bf16[256,128], index: 3, kind: input, shape index: {}]
  %s4 = inlined_call_operand.hbm [shape: f32[1,128], index: 4, kind: input, shape index: {}]
  %s5 = inlined_call_operand.hbm [shape: bf16[4,128], index: 5, kind: input, shape index: {}]
  %s6 = inlined_call_operand.hbm [shape: f32[1,128], index: 6, kind: input, shape index: {}]
  %s7 = inlined_call_operand.hbm [shape: bf16[256,128], index: 7, kind: input, shape index: {}]
  %s8 = inlined_call_operand.hbm [shape: bf16[256,128], index: 8, kind: input, shape index: {}]
  %s9 = inlined_call_operand.hbm [shape: f32[1,128], index: 9, kind: input, shape index: {}]
  %s10 = inlined_call_operand.vmem [shape: f32[16,128], index: 10, kind: output, shape index: {}]
  %s11 = sld [smem:[#allocation0]]
  $region109: #{forward.7} parent=0
    _
  %s13 = ssub.s32 1, %s11
  %s14 = scalar_select 0, %s13, %s11
  $region1: #{forward.7} parent=0
    #allocation3 [shape = 'u8[2048]{0}', space=vmem, size = 0x800, scoped, tag = 'input window, operand 1, single buffered']
    #allocation4 [shape = 's32[2]{0}', space=sflag, size = 0x8, scoped, tag = 'scoped memory for forward.7']
    #allocation5 [shape = 'u8[512]{0}', space=vmem, size = 0x400, scoped, tag = 'input window, operand 2, single buffered']
    #allocation6 [shape = 's32[1]{0}', space=sflag, size = 0x4, scoped, tag = 'scoped memory for forward.7']
    #allocation7 [shape = 'u8[65536]{0}', space=vmem, size = 0x10000, scoped, tag = 'input window, operand 3, single buffered']
    #allocation8 [shape = 'u8[512]{0}', space=vmem, size = 0x400, scoped, tag = 'input window, operand 4, single buffered']
    #allocation9 [shape = 's32[1]{0}', space=sflag, size = 0x4, scoped, tag = 'scoped memory for forward.7']
    #allocation10 [shape = 'u8[1024]{0}', space=vmem, size = 0x400, scoped, tag = 'input window, operand 5, single buffered']
    #allocation11 [shape = 'u8[512]{0}', space=vmem, size = 0x400, scoped, tag = 'input window, operand 6, single buffered']
    #allocation12 [shape = 's32[1]{0}', space=sflag, size = 0x4, scoped, tag = 'scoped memory for forward.7']
    #allocation13 [shape = 'u8[65536]{0}', space=vmem, size = 0x10000, scoped, tag = 'input window, operand 7, single buffered']
    #allocation14 [shape = 'u8[65536]{0}', space=vmem, size = 0x10000, scoped, tag = 'input window, operand 8, single buffered']
    #allocation15 [shape = 's32[1]{0}', space=sflag, size = 0x4, scoped, tag = 'scoped memory for forward.7']
    #allocation16 [shape = 'u8[512]{0}', space=vmem, size = 0x400, scoped, tag = 'input window, operand 9, single buffered']
    %15 = vsyncpa [#allocation4], 0
    %16 = vsyncpa [#allocation6], 0
    %17 = vsyncpa [#allocation9], 0
    %18 = vsyncpa [#allocation12], 0
    %19 = vsyncpa [#allocation15], 0
    loop: start=0, step=1, limit=4
    $region2: #{forward.7} parent=1 // loop_pre_header
      _
    $region3: #{forward.7} parent=1 // loop_header
      %s21 = sphi 0, %s25
      %p22 = scmp.ge.s32.totalorder %s21, 4
      %s31 = sphi 0, %s33
      %s34 = sphi 0, %s31
      %s35 = sphi 0, %s34
      %s51 = sphi 0, %s35
      %s55 = sphi 0, %s55
      %s57 = sphi 0, %s55
      %s58 = sphi 0, %s57
      %s72 = sphi 0, %s58
      %s76 = sphi 0, %s76
      %s78 = sphi 0, %s76
      %s79 = sphi 0, %s78
      %s93 = sphi 0, %s79
      %s97 = sphi 0, %s97
      %s99 = sphi 0, %s97
      %s100 = sphi 0, %s99
      %s114 = sphi 0, %s100
      %s118 = sphi 0, %s118
      %s120 = sphi 0, %s118
      %s121 = sphi 0, %s120
      %s135 = sphi 0, %s121
      %s139 = sphi 0, %s139
      %s141 = sphi 0, %s139
      %s142 = sphi 0, %s141
      %s156 = sphi 0, %s142
      %s160 = sphi 0, %s160
      %s162 = sphi 0, %s160
      %s163 = sphi 0, %s162
      %s177 = sphi 0, %s163
      %s181 = sphi 0, %s181
      %s183 = sphi 0, %s181
      %s184 = sphi 0, %s183
      %s198 = sphi 0, %s184
      %s202 = sphi 0, %s202
      %s204 = sphi 0, %s202
      %s205 = sphi 0, %s204
      %s219 = sphi 0, %s205
      %s223 = sphi 0, %s223
      %s225 = sphi 0, %s223
      %s226 = sphi 0, %s225
      %s240 = sphi 0, %s226
      %s246 = sphi 0, %s248
      %s249 = sphi 0, %s246
      %s250 = sphi 0, %s249
      %s266 = sphi 0, %s250
    $region4: #{forward.7} parent=1 // loop_header_branch
      %24 = sbr.rel (%p22) target = $region8
    $region5: #{forward.7} parent=1 // loop_body
      %s26 = ssub.s32 %s21, 1
      %s27 = ssub.s32 %s21, 2
      %s28 = sadd.s32 %s21, 1
      %s29 = ssub.s32 %s21, %s28
      %p30 = scmp.eq.s32.totalorder %s29, 0
      %s32 = sadd.s32 %s31, 1
      %s33 = scalar_select %p30, %s31, %s32
      %p36 = pneg %p30
      %p37 = scmp.eq.s32.totalorder %s21, 1
      %p38 = por %p36, %p37
      %p39 = scmp.ne.s32.totalorder %s31, %s34
      %p40 = scmp.eq.s32.totalorder %s21, 0
      %p41 = por %p39, %p40
      %p42 = scmp.ne.s32.totalorder %s31, %s34
      %p43 = scmp.eq.s32.totalorder %s26, 1
      %p44 = por %p42, %p43
      %p45 = scmp.ne.s32.totalorder %s34, %s35
      %p46 = scmp.eq.s32.totalorder %s26, 0
      %p47 = por %p45, %p46
      %p48 = scmp.ne.s32.totalorder %s34, %s35
      %p49 = scmp.eq.s32.totalorder %s27, 1
      %p50 = por %p48, %p49
      %p52 = scmp.ne.s32.totalorder %s35, %s51
      %p53 = scmp.eq.s32.totalorder %s27, 0
      %p54 = por %p52, %p53
      %s56 = sadd.s32 %s55, 1
      %p59 = scmp.eq.s32.totalorder %s21, 1
      %p60 = scmp.ne.s32.totalorder %s55, %s57
      %p61 = scmp.eq.s32.totalorder %s21, 0
      %p62 = por %p60, %p61
      %p63 = scmp.ne.s32.totalorder %s55, %s57
      %p64 = scmp.eq.s32.totalorder %s26, 1
      %p65 = por %p63, %p64
      %p66 = scmp.ne.s32.totalorder %s57, %s58
      %p67 = scmp.eq.s32.totalorder %s26, 0
      %p68 = por %p66, %p67
      %p69 = scmp.ne.s32.totalorder %s57, %s58
      %p70 = scmp.eq.s32.totalorder %s27, 1
      %p71 = por %p69, %p70
      %p73 = scmp.ne.s32.totalorder %s58, %s72
      %p74 = scmp.eq.s32.totalorder %s27, 0
      %p75 = por %p73, %p74
      %s77 = sadd.s32 %s76, 1
      %p80 = scmp.eq.s32.totalorder %s21, 1
      %p81 = scmp.ne.s32.totalorder %s76, %s78
      %p82 = scmp.eq.s32.totalorder %s21, 0
      %p83 = por %p81, %p82
      %p84 = scmp.ne.s32.totalorder %s76, %s78
      %p85 = scmp.eq.s32.totalorder %s26, 1
      %p86 = por %p84, %p85
      %p87 = scmp.ne.s32.totalorder %s78, %s79
      %p88 = scmp.eq.s32.totalorder %s26, 0
      %p89 = por %p87, %p88
      %p90 = scmp.ne.s32.totalorder %s78, %s79
      %p91 = scmp.eq.s32.totalorder %s27, 1
      %p92 = por %p90, %p91
      %p94 = scmp.ne.s32.totalorder %s79, %s93
      %p95 = scmp.eq.s32.totalorder %s27, 0
      %p96 = por %p94, %p95
      %s98 = sadd.s32 %s97, 1
      %p101 = scmp.eq.s32.totalorder %s21, 1
      %p102 = scmp.ne.s32.totalorder %s97, %s99
      %p103 = scmp.eq.s32.totalorder %s21, 0
      %p104 = por %p102, %p103
      %p105 = scmp.ne.s32.totalorder %s97, %s99
      %p106 = scmp.eq.s32.totalorder %s26, 1
      %p107 = por %p105, %p106
      %p108 = scmp.ne.s32.totalorder %s99, %s100
      %p109 = scmp.eq.s32.totalorder %s26, 0
      %p110 = por %p108, %p109
      %p111 = scmp.ne.s32.totalorder %s99, %s100
      %p112 = scmp.eq.s32.totalorder %s27, 1
      %p113 = por %p111, %p112
      %p115 = scmp.ne.s32.totalorder %s100, %s114
      %p116 = scmp.eq.s32.totalorder %s27, 0
      %p117 = por %p115, %p116
      %s119 = sadd.s32 %s118, 1
      %p122 = scmp.eq.s32.totalorder %s21, 1
      %p123 = scmp.ne.s32.totalorder %s118, %s120
      %p124 = scmp.eq.s32.totalorder %s21, 0
      %p125 = por %p123, %p124
      %p126 = scmp.ne.s32.totalorder %s118, %s120
      %p127 = scmp.eq.s32.totalorder %s26, 1
      %p128 = por %p126, %p127
      %p129 = scmp.ne.s32.totalorder %s120, %s121
      %p130 = scmp.eq.s32.totalorder %s26, 0
      %p131 = por %p129, %p130
      %p132 = scmp.ne.s32.totalorder %s120, %s121
      %p133 = scmp.eq.s32.totalorder %s27, 1
      %p134 = por %p132, %p133
      %p136 = scmp.ne.s32.totalorder %s121, %s135
      %p137 = scmp.eq.s32.totalorder %s27, 0
      %p138 = por %p136, %p137
      %s140 = sadd.s32 %s139, 1
      %p143 = scmp.eq.s32.totalorder %s21, 1
      %p144 = scmp.ne.s32.totalorder %s139, %s141
      %p145 = scmp.eq.s32.totalorder %s21, 0
      %p146 = por %p144, %p145
      %p147 = scmp.ne.s32.totalorder %s139, %s141
      %p148 = scmp.eq.s32.totalorder %s26, 1
      %p149 = por %p147, %p148
      %p150 = scmp.ne.s32.totalorder %s141, %s142
      %p151 = scmp.eq.s32.totalorder %s26, 0
      %p152 = por %p150, %p151
      %p153 = scmp.ne.s32.totalorder %s141, %s142
      %p154 = scmp.eq.s32.totalorder %s27, 1
      %p155 = por %p153, %p154
      %p157 = scmp.ne.s32.totalorder %s142, %s156
      %p158 = scmp.eq.s32.totalorder %s27, 0
      %p159 = por %p157, %p158
      %s161 = sadd.s32 %s160, 1
      %p164 = scmp.eq.s32.totalorder %s21, 1
      %p165 = scmp.ne.s32.totalorder %s160, %s162
      %p166 = scmp.eq.s32.totalorder %s21, 0
      %p167 = por %p165, %p166
      %p168 = scmp.ne.s32.totalorder %s160, %s162
      %p169 = scmp.eq.s32.totalorder %s26, 1
      %p170 = por %p168, %p169
      %p171 = scmp.ne.s32.totalorder %s162, %s163
      %p172 = scmp.eq.s32.totalorder %s26, 0
      %p173 = por %p171, %p172
      %p174 = scmp.ne.s32.totalorder %s162, %s163
      %p175 = scmp.eq.s32.totalorder %s27, 1
      %p176 = por %p174, %p175
      %p178 = scmp.ne.s32.totalorder %s163, %s177
      %p179 = scmp.eq.s32.totalorder %s27, 0
      %p180 = por %p178, %p179
      %s182 = sadd.s32 %s181, 1
      %p185 = scmp.eq.s32.totalorder %s21, 1
      %p186 = scmp.ne.s32.totalorder %s181, %s183
      %p187 = scmp.eq.s32.totalorder %s21, 0
      %p188 = por %p186, %p187
      %p189 = scmp.ne.s32.totalorder %s181, %s183
      %p190 = scmp.eq.s32.totalorder %s26, 1
      %p191 = por %p189, %p190
      %p192 = scmp.ne.s32.totalorder %s183, %s184
      %p193 = scmp.eq.s32.totalorder %s26, 0
      %p194 = por %p192, %p193
      %p195 = scmp.ne.s32.totalorder %s183, %s184
      %p196 = scmp.eq.s32.totalorder %s27, 1
      %p197 = por %p195, %p196
      %p199 = scmp.ne.s32.totalorder %s184, %s198
      %p200 = scmp.eq.s32.totalorder %s27, 0
      %p201 = por %p199, %p200
      %s203 = sadd.s32 %s202, 1
      %p206 = scmp.eq.s32.totalorder %s21, 1
      %p207 = scmp.ne.s32.totalorder %s202, %s204
      %p208 = scmp.eq.s32.totalorder %s21, 0
      %p209 = por %p207, %p208
      %p210 = scmp.ne.s32.totalorder %s202, %s204
      %p211 = scmp.eq.s32.totalorder %s26, 1
      %p212 = por %p210, %p211
      %p213 = scmp.ne.s32.totalorder %s204, %s205
      %p214 = scmp.eq.s32.totalorder %s26, 0
      %p215 = por %p213, %p214
      %p216 = scmp.ne.s32.totalorder %s204, %s205
      %p217 = scmp.eq.s32.totalorder %s27, 1
      %p218 = por %p216, %p217
      %p220 = scmp.ne.s32.totalorder %s205, %s219
      %p221 = scmp.eq.s32.totalorder %s27, 0
      %p222 = por %p220, %p221
      %s224 = sadd.s32 %s223, 1
      %p227 = scmp.eq.s32.totalorder %s21, 1
      %p228 = scmp.ne.s32.totalorder %s223, %s225
      %p229 = scmp.eq.s32.totalorder %s21, 0
      %p230 = por %p228, %p229
      %p231 = scmp.ne.s32.totalorder %s223, %s225
      %p232 = scmp.eq.s32.totalorder %s26, 1
      %p233 = por %p231, %p232
      %p234 = scmp.ne.s32.totalorder %s225, %s226
      %p235 = scmp.eq.s32.totalorder %s26, 0
      %p236 = por %p234, %p235
      %p237 = scmp.ne.s32.totalorder %s225, %s226
      %p238 = scmp.eq.s32.totalorder %s27, 1
      %p239 = por %p237, %p238
      %p241 = scmp.ne.s32.totalorder %s226, %s240
      %p242 = scmp.eq.s32.totalorder %s27, 0
      %p243 = por %p241, %p242
      %s244 = ssub.s32 %s21, %s28
      %p245 = scmp.eq.s32.totalorder %s244, 0
      %s247 = sadd.s32 %s246, 1
      %s248 = scalar_select %p245, %s246, %s247
      %p251 = pneg %p245
      %p252 = scmp.eq.s32.totalorder %s21, 1
      %p253 = por %p251, %p252
      %p254 = scmp.ne.s32.totalorder %s246, %s249
      %p255 = scmp.eq.s32.totalorder %s21, 0
      %p256 = por %p254, %p255
      %p257 = scmp.ne.s32.totalorder %s246, %s249
      %p258 = scmp.eq.s32.totalorder %s26, 1
      %p259 = por %p257, %p258
      %p260 = scmp.ne.s32.totalorder %s249, %s250
      %p261 = scmp.eq.s32.totalorder %s26, 0
      %p262 = por %p260, %p261
      %p263 = scmp.ne.s32.totalorder %s249, %s250
      %p264 = scmp.eq.s32.totalorder %s27, 1
      %p265 = por %p263, %p264
      %p267 = scmp.ne.s32.totalorder %s250, %s266
      %p268 = scmp.eq.s32.totalorder %s27, 0
      %p269 = por %p267, %p268
      %p270 = scmp.le.s32.totalorder 1, %s21
      %p271 = scmp.lt.s32.totalorder %s21, 3
      %p272 = pnand %p270, %p271
      %p273 = pneg %p272
      // Predicated region
      $region9: #{forward.7} parent=5 // pred_check
        _
      $region10: #{forward.7} parent=5 // pred_check_branch
        %275 = sbr.rel (%p272) target = $region12
      $region11: #{forward.7} parent=5 // pred_region
        %s276 = ssub.s32 %s21, 1
        // Predicated region
        $region13: #{forward.7} parent=11 // pred_check
          %p277 = pneg %p68
        $region14: #{forward.7} parent=11 // pred_check_branch
          %279 = sbr.rel (%p277) target = $region16
        $region15: #{forward.7} parent=11 // pred_region
          %s281 = ssub.s32 64, 64
          %282 = vsyncadd [#allocation4], %s281
          %s284 = sshll.u32 [#allocation3], 4
          %s285 = int_to_ptr.vmem [resolvable:$true] %s284
          %287 = dma.hbm_to_vmem [thread:$0]  %s1, 64, %s285, [#allocation4]
        $region16: #{forward.7} parent=11 // pred_fallthru
          _
        // Predicated region
        $region17: #{forward.7} parent=11 // pred_check
          %p288 = pneg %p89
        $region18: #{forward.7} parent=11 // pred_check_branch
          %290 = sbr.rel (%p288) target = $region20
        $region19: #{forward.7} parent=11 // pred_region
          %s292 = ssub.s32 16, 16
          %293 = vsyncadd [#allocation6], %s292
          %s295 = sshll.u32 [#allocation5], 4
          %s296 = int_to_ptr.vmem [resolvable:$true] %s295
          %298 = dma.hbm_to_vmem [thread:$0]  %s2, 16, %s296, [#allocation6]
        $region20: #{forward.7} parent=11 // pred_fallthru
          _
        // Predicated region
        $region21: #{forward.7} parent=11 // pred_check
          %p299 = pneg %p110
        $region22: #{forward.7} parent=11 // pred_check_branch
          %301 = sbr.rel (%p299) target = $region24
        $region23: #{forward.7} parent=11 // pred_region
          %s303 = ssub.s32 2048, 2048
          %304 = vsyncadd [#allocation6], %s303
          %s305 = sshll.u32 [#allocation7], 4
          %s306 = int_to_ptr.vmem [resolvable:$true] %s305
          %311 = dma.hbm_to_vmem [thread:$0]  %s3, 2048, %s306, [#allocation6], 64, 64, 4
        $region24: #{forward.7} parent=11 // pred_fallthru
          _
        // Predicated region
        $region25: #{forward.7} parent=11 // pred_check
          %p312 = pneg %p131
        $region26: #{forward.7} parent=11 // pred_check_branch
          %314 = sbr.rel (%p312) target = $region28
        $region27: #{forward.7} parent=11 // pred_region
          %s316 = ssub.s32 16, 16
          %317 = vsyncadd [#allocation9], %s316
          %s319 = sshll.u32 [#allocation8], 4
          %s320 = int_to_ptr.vmem [resolvable:$true] %s319
          %322 = dma.hbm_to_vmem [thread:$0]  %s4, 16, %s320, [#allocation9]
        $region28: #{forward.7} parent=11 // pred_fallthru
          _
        // Predicated region
        $region29: #{forward.7} parent=11 // pred_check
          %p323 = pneg %p152
        $region30: #{forward.7} parent=11 // pred_check_branch
          %325 = sbr.rel (%p323) target = $region32
        $region31: #{forward.7} parent=11 // pred_region
          %s327 = ssub.s32 32, 32
          %328 = vsyncadd [#allocation9], %s327
          %s330 = sshll.u32 [#allocation10], 4
          %s331 = int_to_ptr.vmem [resolvable:$true] %s330
          %333 = dma.hbm_to_vmem [thread:$0]  %s5, 32, %s331, [#allocation9]
        $region32: #{forward.7} parent=11 // pred_fallthru
          _
        // Predicated region
        $region33: #{forward.7} parent=11 // pred_check
          %p334 = pneg %p173
        $region34: #{forward.7} parent=11 // pred_check_branch
          %336 = sbr.rel (%p334) target = $region36
        $region35: #{forward.7} parent=11 // pred_region
          %s338 = ssub.s32 16, 16
          %339 = vsyncadd [#allocation12], %s338
          %s341 = sshll.u32 [#allocation11], 4
          %s342 = int_to_ptr.vmem [resolvable:$true] %s341
          %344 = dma.hbm_to_vmem [thread:$0]  %s6, 16, %s342, [#allocation12]
        $region36: #{forward.7} parent=11 // pred_fallthru
          _
        // Predicated region
        $region37: #{forward.7} parent=11 // pred_check
          %p345 = pneg %p194
        $region38: #{forward.7} parent=11 // pred_check_branch
          %347 = sbr.rel (%p345) target = $region40
        $region39: #{forward.7} parent=11 // pred_region
          %s349 = ssub.s32 2048, 2048
          %350 = vsyncadd [#allocation12], %s349
          %s351 = sshll.u32 [#allocation13], 4
          %s352 = int_to_ptr.vmem [resolvable:$true] %s351
          %357 = dma.hbm_to_vmem [thread:$0]  %s7, 2048, %s352, [#allocation12], 64, 64, 4
        $region40: #{forward.7} parent=11 // pred_fallthru
          _
        // Predicated region
        $region41: #{forward.7} parent=11 // pred_check
          %p358 = pneg %p215
        $region42: #{forward.7} parent=11 // pred_check_branch
          %360 = sbr.rel (%p358) target = $region44
        $region43: #{forward.7} parent=11 // pred_region
          %s362 = ssub.s32 2048, 2048
          %363 = vsyncadd [#allocation15], %s362
          %s364 = sshll.u32 [#allocation14], 4
          %s365 = int_to_ptr.vmem [resolvable:$true] %s364
          %370 = dma.hbm_to_vmem [thread:$0]  %s8, 2048, %s365, [#allocation15], 64, 64, 4
        $region44: #{forward.7} parent=11 // pred_fallthru
          _
        // Predicated region
        $region45: #{forward.7} parent=11 // pred_check
          %p371 = pneg %p236
        $region46: #{forward.7} parent=11 // pred_check_branch
          %373 = sbr.rel (%p371) target = $region48
        $region47: #{forward.7} parent=11 // pred_region
          %s375 = ssub.s32 16, 16
          %376 = vsyncadd [#allocation15], %s375
          %s378 = sshll.u32 [#allocation16], 4
          %s379 = int_to_ptr.vmem [resolvable:$true] %s378
          %381 = dma.hbm_to_vmem [thread:$0]  %s9, 16, %s379, [#allocation15]
        $region48: #{forward.7} parent=11 // pred_fallthru
          _
      $region12: #{forward.7} parent=5 // pred_fallthru
        _
      %p382 = scmp.lt.s32.totalorder %s21, 2
      // Predicated region
      $region49: #{forward.7} parent=5 // pred_check
        %p383 = pneg %p382
      $region50: #{forward.7} parent=5 // pred_check_branch
        %385 = sbr.rel (%p383) target = $region52
      $region51: #{forward.7} parent=5 // pred_region
        // Predicated region
        $region53: #{forward.7} parent=51 // pred_check
          %p386 = pneg %p41
        $region54: #{forward.7} parent=51 // pred_check_branch
          %388 = sbr.rel (%p386) target = $region56
        $region55: #{forward.7} parent=51 // pred_region
          %s389 = smul.u32 2, %s21
          %p390 = scmp.lt.s32.totalorder %s389, 3
          %s391 = scalar_select %p390, %s389, 3
          %s392 = smul.addr %s391, 8
          %s393 = scalar_lea.vmem %s0, %s392
          %s394 = smul.u32 2, %s21
        $region56: #{forward.7} parent=51 // pred_fallthru
          _
      $region52: #{forward.7} parent=5 // pred_fallthru
        _
      %p395 = scmp.le.s32.totalorder 1, %s21
      %p396 = scmp.lt.s32.totalorder %s21, 3
      %p397 = pnand %p395, %p396
      %p398 = pneg %p397
      // Predicated region
      $region57: #{forward.7} parent=5 // pred_check
        _
      $region58: #{forward.7} parent=5 // pred_check_branch
        %400 = sbr.rel (%p397) target = $region60
      $region59: #{forward.7} parent=5 // pred_region
        %s401 = ssub.s32 %s21, 1
        // Predicated region
        $region61: #{forward.7} parent=59 // pred_check
          %p402 = pneg %p68
        $region62: #{forward.7} parent=59 // pred_check_branch
          %404 = sbr.rel (%p402) target = $region64
        $region63: #{forward.7} parent=59 // pred_region
          %405 = dma.done [#allocation4], 64
        $region64: #{forward.7} parent=59 // pred_fallthru
          _
        // Predicated region
        $region65: #{forward.7} parent=59 // pred_check
          %p406 = pneg %p89
        $region66: #{forward.7} parent=59 // pred_check_branch
          %408 = sbr.rel (%p406) target = $region68
        $region67: #{forward.7} parent=59 // pred_region
          %409 = dma.done [#allocation6], 16
        $region68: #{forward.7} parent=59 // pred_fallthru
          _
        // Predicated region
        $region69: #{forward.7} parent=59 // pred_check
          %p410 = pneg %p110
        $region70: #{forward.7} parent=59 // pred_check_branch
          %412 = sbr.rel (%p410) target = $region72
        $region71: #{forward.7} parent=59 // pred_region
          %413 = dma.done [#allocation6], 2048
        $region72: #{forward.7} parent=59 // pred_fallthru
          _
        // Predicated region
        $region73: #{forward.7} parent=59 // pred_check
          %p414 = pneg %p131
        $region74: #{forward.7} parent=59 // pred_check_branch
          %416 = sbr.rel (%p414) target = $region76
        $region75: #{forward.7} parent=59 // pred_region
          %417 = dma.done [#allocation9], 16
        $region76: #{forward.7} parent=59 // pred_fallthru
          _
        // Predicated region
        $region77: #{forward.7} parent=59 // pred_check
          %p418 = pneg %p152
        $region78: #{forward.7} parent=59 // pred_check_branch
          %420 = sbr.rel (%p418) target = $region80
        $region79: #{forward.7} parent=59 // pred_region
          %421 = dma.done [#allocation9], 32
        $region80: #{forward.7} parent=59 // pred_fallthru
          _
        // Predicated region
        $region81: #{forward.7} parent=59 // pred_check
          %p422 = pneg %p173
        $region82: #{forward.7} parent=59 // pred_check_branch
          %424 = sbr.rel (%p422) target = $region84
        $region83: #{forward.7} parent=59 // pred_region
          %425 = dma.done [#allocation12], 16
        $region84: #{forward.7} parent=59 // pred_fallthru
          _
        // Predicated region
        $region85: #{forward.7} parent=59 // pred_check
          %p426 = pneg %p194
        $region86: #{forward.7} parent=59 // pred_check_branch
          %428 = sbr.rel (%p426) target = $region88
        $region87: #{forward.7} parent=59 // pred_region
          %429 = dma.done [#allocation12], 2048
        $region88: #{forward.7} parent=59 // pred_fallthru
          _
        // Predicated region
        $region89: #{forward.7} parent=59 // pred_check
          %p430 = pneg %p215
        $region90: #{forward.7} parent=59 // pred_check_branch
          %432 = sbr.rel (%p430) target = $region92
        $region91: #{forward.7} parent=59 // pred_region
          %433 = dma.done [#allocation15], 2048
        $region92: #{forward.7} parent=59 // pred_fallthru
          _
        // Predicated region
        $region93: #{forward.7} parent=59 // pred_check
          %p434 = pneg %p236
        $region94: #{forward.7} parent=59 // pred_check_branch
          %436 = sbr.rel (%p434) target = $region96
        $region95: #{forward.7} parent=59 // pred_region
          %437 = dma.done [#allocation15], 16
        $region96: #{forward.7} parent=59 // pred_fallthru
          _
        %s438 = smul.u32 2, %s26
        %p439 = scmp.lt.s32.totalorder %s438, 3
        %s440 = scalar_select %p439, %s438, 3
        %s441 = smul.addr %s440, 8
        %s442 = scalar_lea.vmem %s0, %s441
        %p443 = pneg %p47
        %p444 = pneg %p44
        %p445 = pneg %p68
        %p446 = pneg %p65
        %p447 = pneg %p89
        %p448 = pneg %p86
        %p449 = pneg %p110
        %p450 = pneg %p107
        %p451 = pneg %p131
        %p452 = pneg %p128
        %p453 = pneg %p152
        %p454 = pneg %p149
        %p455 = pneg %p173
        %p456 = pneg %p170
        %p457 = pneg %p194
        %p458 = pneg %p191
        %p459 = pneg %p215
        %p460 = pneg %p212
        %p461 = pneg %p236
        %p462 = pneg %p233
        %p463 = pneg %p262
        %p464 = pneg %p259
        %p465 = scmp.lt.s32.totalorder %s26, 1
        %s466 = scalar_select %p465, %s26, 1
        %s467 = smul.addr %s466, 8
        %s468 = scalar_lea.vmem %s10, %s467
        %s469 = smul.u32 2, %s26
        %p470 = scmp.lt.s32.totalorder %s469, 3
        %s471 = scalar_select %p470, %s469, 3
        %s472 = smul.addr %s471, 8
        %s473 = scalar_lea.vmem %s0, %s472
        %s474 = smul.u32 2, %s26
        %p475 = scmp.lt.s32.totalorder %s26, 1
        %s476 = scalar_select %p475, %s26, 1
        %s477 = smul.addr %s476, 8
        %s478 = scalar_lea.vmem %s10, %s477
        %v480 = vld [vmem:[%s473] sm:$0xff]
        %v481 = vld [vmem:[%s473 + $0x8] sm:$0xff]
        %v482 = vlaneseq
        %v483 = vshrl.u32 %v482, 7
        %v484 = vadd.s32 %v483, 8
        %vm485 = vcmp.lt.s32.totalorder %v483, 0
        %v486 = vsub.s32 0, %v483
        %v487 = vsel %vm485, %v486, %v483
        %v488 = vshrl.u32 %v487, 4
        %v489 = vand.u32 %v487, 15
        %v490 = vsub.s32 0, %v489
        %v491 = vsel %vm485, %v490, %v489
        %vm492 = vcmp.lt.s32.totalorder %v484, 0
        %v493 = vsub.s32 0, %v484
        %v494 = vsel %vm492, %v493, %v484
        %v495 = vshrl.u32 %v494, 4
        %v496 = vand.u32 %v494, 15
        %v497 = vsub.s32 0, %v496
        %v498 = vsel %vm492, %v497, %v496
        %vm499 = vcmp.ne.s32.totalorder %v491, 0
        %vm500 = vcmp.ne.s32.totalorder %v498, 0
        %vm501 = vcmp.lt.s32.totalorder %v491, 0
        %vm502 = vcmp.lt.s32.totalorder %v498, 0
        %vm503 = vmand %vm501, %vm499
        %vm504 = vmand %vm502, %vm500
        %v505 = vadd.s32 %v491, 16
        %v506 = vadd.s32 %v498, 16
        %v507 = vsel %vm503, %v505, %v491
        %v508 = vsel %vm504, %v506, %v498
        %vm509 = vcmp.ne.s32.totalorder %v507, 0
        %vm510 = vcmp.ne.s32.totalorder %v508, 0
        %v511 = vld [vmem:[#allocation3] sm:$0xf]
        %v512 = vld [vmem:[#allocation5] sm:$0x1]
        %v513 = vrot.slane %v480, 7
        %v514 = vrot.slane %v481, 7
        %vm515 = vcmp.lt.s32.totalorder %v483, 1
        %v516 = vsel %vm515, %v513, %v514
        %v517 = vsel %vm515, %v514, %v513
        %v518 = vsel %vm509, 1, 0
        %v519 = vsel %vm510, 1, 0
        %vm520 = vcmp.eq.s32.totalorder %v518, 1
        %vm521 = vcmp.eq.s32.totalorder %v519, 1
        %v522 = vsel %vm520, %v517, 0.0
        %v523 = vsel %vm521, %v516, 0.0
        %526 = vrot.lane.b32.xlu0 %v480, 4
        %v527 = vpop.permute.xlu0 %526
        %528 = vrot.lane.b32.xlu0 %v481, 4
        %v529 = vpop.permute.xlu0 %528
        %vm532 = vcmask 31744
        %v533 = vsel %vm532, %v522, %v527
        %v534 = vsel %vm532, %v523, %v529
        %v535 = vpack.c.bf16 %v534, %v533
        %v537 = vlaneseq
        %v538 = vshrl.u32 %v537, 7
        %v539 = vsub.s32 0, %v538
        %v540 = vrot.slane %v512, %v539
        %vm542 = vcmask 64512
        %v544 = vsel %vm542, %v535, 0
        %vm546 = vcmask 1043456
        %v548 = vsel %vm546, %v511, 0
        %550 = vmatprep.subr.bf16.mxu0 0
        %551 = vmatpush1.bf16.msra.mxu0 0
        %552 = vmatprep.subr.bf16.mxu0 0
        %553 = vmatpush1.bf16.msra.mxu0 0
        %554 = vmatprep.subr.bf16.mxu0 0
        %555 = vmatpush1.bf16.msra.mxu0 0
        %556 = vmatprep.subr.bf16.mxu0 0
        %557 = vmatpush1.bf16.msra.mxu0 0
        %558 = vmatprep.subr.bf16.mxu0 0
        %559 = vmatpush1.bf16.msra.mxu0 0
        %560 = vmatprep.subr.bf16.mxu0 0
        %561 = vmatpush1.bf16.msra.mxu0 0
        %562 = vmatprep.subr.bf16.mxu0 0
        %563 = vmatpush1.bf16.msra.mxu0 0
        %564 = vmatprep.subr.bf16.mxu0 0
        %565 = vmatpush1.bf16.msra.mxu0 %v548
        %566 = vmatprep.subr.bf16.mxu0 0
        %567 = vmatpush2.bf16.msra.mxu0 0
        %568 = vmatprep.subr.bf16.mxu0 0
        %569 = vmatpush2.bf16.msra.mxu0 0
        %570 = vmatprep.subr.bf16.mxu0 0
        %571 = vmatpush2.bf16.msra.mxu0 0
        %572 = vmatprep.subr.bf16.mxu0 0
        %573 = vmatpush2.bf16.msra.mxu0 0
        %574 = vmatprep.subr.bf16.mxu0 0
        %575 = vmatpush2.bf16.msra.mxu0 0
        %576 = vmatprep.subr.bf16.mxu0 0
        %577 = vmatpush2.bf16.msra.mxu0 0
        %578 = vmatprep.subr.bf16.mxu0 0
        %579 = vmatpush2.bf16.msra.mxu0 0
        %580 = vmatprep.subr.bf16.mxu0 0
        %581 = vmatpush2.bf16.msra.mxu0 0
        %582 = vmatprep.mubr.bf16.mxu0 0
        %583 = vmatmul.mubr.bf16.gmra.mxu0 %v544
        %v584 = vpop.f32.mrf.mxu0
        %v585 = vadd.f32 %v540, %v584
        %v586 = vpop.f32.mrf.mxu0
        %v587 = vpop.f32.mrf.mxu0
        %v588 = vadd.f32 %v540, %v587
        %v589 = vpop.f32.mrf.mxu0
        %590 = vdwg.mxu0
        %v591 = vmax.f32 %v585, 0.0
        %v592 = vmax.f32 %v588, 0.0
        %v593 = vld [vmem:[#allocation7] sm:$0xf]
        %v594 = vld [vmem:[#allocation7 + $0x4] sm:$0xf]
        %v595 = vld [vmem:[#allocation7 + $0x8] sm:$0xf]
        %v596 = vld [vmem:[#allocation7 + $0xc] sm:$0xf]
        %v597 = vld [vmem:[#allocation7 + $0x10] sm:$0xf]
        %v598 = vld [vmem:[#allocation7 + $0x14] sm:$0xf]
        %v599 = vld [vmem:[#allocation7 + $0x18] sm:$0xf]
        %v600 = vld [vmem:[#allocation7 + $0x1c] sm:$0xf]
        %v601 = vld [vmem:[#allocation7 + $0x20] sm:$0xf]
        %v602 = vld [vmem:[#allocation7 + $0x24] sm:$0xf]
        %v603 = vld [vmem:[#allocation7 + $0x28] sm:$0xf]
        %v604 = vld [vmem:[#allocation7 + $0x2c] sm:$0xf]
        %v605 = vld [vmem:[#allocation7 + $0x30] sm:$0xf]
        %v606 = vld [vmem:[#allocation7 + $0x34] sm:$0xf]
        %v607 = vld [vmem:[#allocation7 + $0x38] sm:$0xf]
        %v608 = vld [vmem:[#allocation7 + $0x3c] sm:$0xf]
        %v609 = vld [vmem:[#allocation7 + $0x40] sm:$0xf]
        %v610 = vld [vmem:[#allocation7 + $0x44] sm:$0xf]
        %v611 = vld [vmem:[#allocation7 + $0x48] sm:$0xf]
        %v612 = vld [vmem:[#allocation7 + $0x4c] sm:$0xf]
        %v613 = vld [vmem:[#allocation7 + $0x50] sm:$0xf]
        %v614 = vld [vmem:[#allocation7 + $0x54] sm:$0xf]
        %v615 = vld [vmem:[#allocation7 + $0x58] sm:$0xf]
        %v616 = vld [vmem:[#allocation7 + $0x5c] sm:$0xf]
        %v617 = vld [vmem:[#allocation7 + $0x60] sm:$0xf]
        %v618 = vld [vmem:[#allocation7 + $0x64] sm:$0xf]
        %v619 = vld [vmem:[#allocation7 + $0x68] sm:$0xf]
        %v620 = vld [vmem:[#allocation7 + $0x6c] sm:$0xf]
        %v621 = vld [vmem:[#allocation7 + $0x70] sm:$0xf]
        %v622 = vld [vmem:[#allocation7 + $0x74] sm:$0xf]
        %v623 = vld [vmem:[#allocation7 + $0x78] sm:$0xf]
        %v624 = vld [vmem:[#allocation7 + $0x7c] sm:$0xf]
        %v625 = vld [vmem:[#allocation8] sm:$0x1]
        %v626 = vrot.slane %v591, 7
        %v627 = vrot.slane %v592, 7
        %v628 = vsel %vm515, %v626, %v627
        %v629 = vsel %vm515, %v627, %v626
        %v630 = vsel %vm520, %v629, 0.0
        %v631 = vsel %vm521, %v628, 0.0
        %v632 = vpack.c.bf16 %v631, %v630
        %v633 = vpack.c.bf16 %v592, %v591
        %v635 = vlaneseq
        %v636 = vshrl.u32 %v635, 7
        %v637 = vsub.s32 0, %v636
        %v638 = vrot.slane %v625, %v637
        %v672 = vunpack.c.l.b16 %v593
        %v673 = vunpack.c.l.b16 %v594
        %v674 = vunpack.c.l.b16 %v595
        %v675 = vunpack.c.l.b16 %v596
        %v676 = vunpack.c.l.b16 %v597
        %v677 = vunpack.c.l.b16 %v598
        %v678 = vunpack.c.l.b16 %v599
        %v679 = vunpack.c.l.b16 %v600
        %v680 = vunpack.c.l.b16 %v601
        %v681 = vunpack.c.l.b16 %v602
        %v682 = vunpack.c.l.b16 %v603
        %v683 = vunpack.c.l.b16 %v604
        %v684 = vunpack.c.l.b16 %v605
        %v685 = vunpack.c.l.b16 %v606
        %v686 = vunpack.c.l.b16 %v607
        %v687 = vunpack.c.l.b16 %v608
        %v688 = vunpack.c.l.b16 %v609
        %v689 = vunpack.c.l.b16 %v610
        %v690 = vunpack.c.l.b16 %v611
        %v691 = vunpack.c.l.b16 %v612
        %v692 = vunpack.c.l.b16 %v613
        %v693 = vunpack.c.l.b16 %v614
        %v694 = vunpack.c.l.b16 %v615
        %v695 = vunpack.c.l.b16 %v616
        %v696 = vunpack.c.l.b16 %v617
        %v697 = vunpack.c.l.b16 %v618
        %v698 = vunpack.c.l.b16 %v619
        %v699 = vunpack.c.l.b16 %v620
        %v700 = vunpack.c.l.b16 %v621
        %v701 = vunpack.c.l.b16 %v622
        %v702 = vunpack.c.l.b16 %v623
        %v703 = vunpack.c.l.b16 %v624
        %v704 = vpack.c.b16 %v673, %v672
        %v705 = vpack.c.b16 %v675, %v674
        %v706 = vpack.c.b16 %v677, %v676
        %v707 = vpack.c.b16 %v679, %v678
        %v708 = vpack.c.b16 %v681, %v680
        %v709 = vpack.c.b16 %v683, %v682
        %v710 = vpack.c.b16 %v685, %v684
        %v711 = vpack.c.b16 %v687, %v686
        %v712 = vpack.c.b16 %v689, %v688
        %v713 = vpack.c.b16 %v691, %v690
        %v714 = vpack.c.b16 %v693, %v692
        %v715 = vpack.c.b16 %v695, %v694
        %v716 = vpack.c.b16 %v697, %v696
        %v717 = vpack.c.b16 %v699, %v698
        %v718 = vpack.c.b16 %v701, %v700
        %v719 = vpack.c.b16 %v703, %v702
        %736 = vmatprep.subr.bf16.mxu0 0
        %737 = vmatpush1.bf16.msra.mxu0 %v711
        %738 = vmatprep.subr.bf16.mxu0 0
        %739 = vmatpush1.bf16.msra.mxu0 %v710
        %740 = vmatprep.subr.bf16.mxu0 0
        %741 = vmatpush1.bf16.msra.mxu0 %v709
        %742 = vmatprep.subr.bf16.mxu0 0
        %743 = vmatpush1.bf16.msra.mxu0 %v708
        %744 = vmatprep.subr.bf16.mxu0 0
        %745 = vmatpush1.bf16.msra.mxu0 %v707
        %746 = vmatprep.subr.bf16.mxu0 0
        %747 = vmatpush1.bf16.msra.mxu0 %v706
        %748 = vmatprep.subr.bf16.mxu0 0
        %749 = vmatpush1.bf16.msra.mxu0 %v705
        %750 = vmatprep.subr.bf16.mxu0 0
        %751 = vmatpush1.bf16.msra.mxu0 %v704
        %752 = vmatprep.subr.bf16.mxu0 0
        %753 = vmatpush2.bf16.msra.mxu0 %v719
        %754 = vmatprep.subr.bf16.mxu0 0
        %755 = vmatpush2.bf16.msra.mxu0 %v718
        %756 = vmatprep.subr.bf16.mxu0 0
        %757 = vmatpush2.bf16.msra.mxu0 %v717
        %758 = vmatprep.subr.bf16.mxu0 0
        %759 = vmatpush2.bf16.msra.mxu0 %v716
        %760 = vmatprep.subr.bf16.mxu0 0
        %761 = vmatpush2.bf16.msra.mxu0 %v715
        %762 = vmatprep.subr.bf16.mxu0 0
        %763 = vmatpush2.bf16.msra.mxu0 %v714
        %764 = vmatprep.subr.bf16.mxu0 0
        %765 = vmatpush2.bf16.msra.mxu0 %v713
        %766 = vmatprep.subr.bf16.mxu0 0
        %767 = vmatpush2.bf16.msra.mxu0 %v712
        %768 = vmatprep.mubr.bf16.mxu0 %v633
        %769 = vmatmul.mubr.bf16.gmra.mxu0 %v632
        %v770 = vpop.f32.mrf.mxu0
        %v771 = vadd.f32 %v638, %v770
        %v772 = vpop.f32.mrf.mxu0
        %v773 = vpop.f32.mrf.mxu0
        %v774 = vadd.f32 %v638, %v773
        %v775 = vpop.f32.mrf.mxu0
        %776 = vdwg.mxu0
        %v777 = vmax.f32 %v771, 0.0
        %v778 = vmax.f32 %v774, 0.0
        %v779 = vpack.c.bf16 %v481, %v480
        %v780 = vld [vmem:[#allocation10] sm:$0x3]
        %v781 = vld [vmem:[#allocation11] sm:$0x1]
        %v783 = vlaneseq
        %v784 = vshrl.u32 %v783, 7
        %v785 = vsub.s32 0, %v784
        %v786 = vrot.slane %v781, %v785
        %v789 = vsel %vm532, %v779, 0
        %vm791 = vcmask 1041408
        %v793 = vsel %vm791, %v780, 0
        %795 = vmatprep.subr.bf16.mxu0 0
        %796 = vmatpush1.bf16.msra.mxu0 0
        %797 = vmatprep.subr.bf16.mxu0 0
        %798 = vmatpush1.bf16.msra.mxu0 0
        %799 = vmatprep.subr.bf16.mxu0 0
        %800 = vmatpush1.bf16.msra.mxu0 0
        %801 = vmatprep.subr.bf16.mxu0 0
        %802 = vmatpush1.bf16.msra.mxu0 0
        %803 = vmatprep.subr.bf16.mxu0 0
        %804 = vmatpush1.bf16.msra.mxu0 0
        %805 = vmatprep.subr.bf16.mxu0 0
        %806 = vmatpush1.bf16.msra.mxu0 0
        %807 = vmatprep.subr.bf16.mxu0 0
        %808 = vmatpush1.bf16.msra.mxu0 0
        %809 = vmatprep.subr.bf16.mxu0 0
        %810 = vmatpush1.bf16.msra.mxu0 %v793
        %811 = vmatprep.subr.bf16.mxu0 0
        %812 = vmatpush2.bf16.msra.mxu0 0
        %813 = vmatprep.subr.bf16.mxu0 0
        %814 = vmatpush2.bf16.msra.mxu0 0
        %815 = vmatprep.subr.bf16.mxu0 0
        %816 = vmatpush2.bf16.msra.mxu0 0
        %817 = vmatprep.subr.bf16.mxu0 0
        %818 = vmatpush2.bf16.msra.mxu0 0
        %819 = vmatprep.subr.bf16.mxu0 0
        %820 = vmatpush2.bf16.msra.mxu0 0
        %821 = vmatprep.subr.bf16.mxu0 0
        %822 = vmatpush2.bf16.msra.mxu0 0
        %823 = vmatprep.subr.bf16.mxu0 0
        %824 = vmatpush2.bf16.msra.mxu0 0
        %825 = vmatprep.subr.bf16.mxu0 0
        %826 = vmatpush2.bf16.msra.mxu0 0
        %827 = vmatprep.mubr.bf16.mxu0 0
        %828 = vmatmul.mubr.bf16.gmra.mxu0 %v789
        %v829 = vpop.f32.mrf.mxu0
        %v830 = vadd.f32 %v786, %v829
        %v831 = vpop.f32.mrf.mxu0
        %v832 = vpop.f32.mrf.mxu0
        %v833 = vadd.f32 %v786, %v832
        %v834 = vpop.f32.mrf.mxu0
        %835 = vdwg.mxu0
        %v836 = vmax.f32 %v830, 0.0
        %v837 = vmax.f32 %v833, 0.0
        %v838 = vrot.slane %v777, 1
        %v839 = vrot.slane %v836, 1
        %v840 = vrot.slane %v778, 1
        %v841 = vrot.slane %v837, 1
        %vm842 = vcmp.lt.s32.totalorder %v483, 7
        %v843 = vsel %vm842, %v838, %v840
        %v844 = vsel %vm842, %v839, %v841
        %v845 = vsel %vm842, %v840, %v838
        %v846 = vsel %vm842, %v841, %v839
        %v847 = vpack.c.bf16 %v778, %v777
        %v848 = vpack.c.bf16 %v837, %v836
        %v849 = vld [vmem:[#allocation13] sm:$0xf]
        %v850 = vld [vmem:[#allocation13 + $0x4] sm:$0xf]
        %v851 = vld [vmem:[#allocation13 + $0x8] sm:$0xf]
        %v852 = vld [vmem:[#allocation13 + $0xc] sm:$0xf]
        %v853 = vld [vmem:[#allocation13 + $0x10] sm:$0xf]
        %v854 = vld [vmem:[#allocation13 + $0x14] sm:$0xf]
        %v855 = vld [vmem:[#allocation13 + $0x18] sm:$0xf]
        %v856 = vld [vmem:[#allocation13 + $0x1c] sm:$0xf]
        %v857 = vld [vmem:[#allocation13 + $0x20] sm:$0xf]
        %v858 = vld [vmem:[#allocation13 + $0x24] sm:$0xf]
        %v859 = vld [vmem:[#allocation13 + $0x28] sm:$0xf]
        %v860 = vld [vmem:[#allocation13 + $0x2c] sm:$0xf]
        %v861 = vld [vmem:[#allocation13 + $0x30] sm:$0xf]
        %v862 = vld [vmem:[#allocation13 + $0x34] sm:$0xf]
        %v863 = vld [vmem:[#allocation13 + $0x38] sm:$0xf]
        %v864 = vld [vmem:[#allocation13 + $0x3c] sm:$0xf]
        %v865 = vld [vmem:[#allocation13 + $0x40] sm:$0xf]
        %v866 = vld [vmem:[#allocation13 + $0x44] sm:$0xf]
        %v867 = vld [vmem:[#allocation13 + $0x48] sm:$0xf]
        %v868 = vld [vmem:[#allocation13 + $0x4c] sm:$0xf]
        %v869 = vld [vmem:[#allocation13 + $0x50] sm:$0xf]
        %v870 = vld [vmem:[#allocation13 + $0x54] sm:$0xf]
        %v871 = vld [vmem:[#allocation13 + $0x58] sm:$0xf]
        %v872 = vld [vmem:[#allocation13 + $0x5c] sm:$0xf]
        %v873 = vld [vmem:[#allocation13 + $0x60] sm:$0xf]
        %v874 = vld [vmem:[#allocation13 + $0x64] sm:$0xf]
        %v875 = vld [vmem:[#allocation13 + $0x68] sm:$0xf]
        %v876 = vld [vmem:[#allocation13 + $0x6c] sm:$0xf]
        %v877 = vld [vmem:[#allocation13 + $0x70] sm:$0xf]
        %v878 = vld [vmem:[#allocation13 + $0x74] sm:$0xf]
        %v879 = vld [vmem:[#allocation13 + $0x78] sm:$0xf]
        %v880 = vld [vmem:[#allocation13 + $0x7c] sm:$0xf]
        %v881 = vpack.c.bf16 %v845, %v843
        %v882 = vpack.c.bf16 %v846, %v844
        %v883 = vld [vmem:[#allocation14] sm:$0xf]
        %v884 = vld [vmem:[#allocation14 + $0x4] sm:$0xf]
        %v885 = vld [vmem:[#allocation14 + $0x8] sm:$0xf]
        %v886 = vld [vmem:[#allocation14 + $0xc] sm:$0xf]
        %v887 = vld [vmem:[#allocation14 + $0x10] sm:$0xf]
        %v888 = vld [vmem:[#allocation14 + $0x14] sm:$0xf]
        %v889 = vld [vmem:[#allocation14 + $0x18] sm:$0xf]
        %v890 = vld [vmem:[#allocation14 + $0x1c] sm:$0xf]
        %v891 = vld [vmem:[#allocation14 + $0x20] sm:$0xf]
        %v892 = vld [vmem:[#allocation14 + $0x24] sm:$0xf]
        %v893 = vld [vmem:[#allocation14 + $0x28] sm:$0xf]
        %v894 = vld [vmem:[#allocation14 + $0x2c] sm:$0xf]
        %v895 = vld [vmem:[#allocation14 + $0x30] sm:$0xf]
        %v896 = vld [vmem:[#allocation14 + $0x34] sm:$0xf]
        %v897 = vld [vmem:[#allocation14 + $0x38] sm:$0xf]
        %v898 = vld [vmem:[#allocation14 + $0x3c] sm:$0xf]
        %v899 = vld [vmem:[#allocation14 + $0x40] sm:$0xf]
        %v900 = vld [vmem:[#allocation14 + $0x44] sm:$0xf]
        %v901 = vld [vmem:[#allocation14 + $0x48] sm:$0xf]
        %v902 = vld [vmem:[#allocation14 + $0x4c] sm:$0xf]
        %v903 = vld [vmem:[#allocation14 + $0x50] sm:$0xf]
        %v904 = vld [vmem:[#allocation14 + $0x54] sm:$0xf]
        %v905 = vld [vmem:[#allocation14 + $0x58] sm:$0xf]
        %v906 = vld [vmem:[#allocation14 + $0x5c] sm:$0xf]
        %v907 = vld [vmem:[#allocation14 + $0x60] sm:$0xf]
        %v908 = vld [vmem:[#allocation14 + $0x64] sm:$0xf]
        %v909 = vld [vmem:[#allocation14 + $0x68] sm:$0xf]
        %v910 = vld [vmem:[#allocation14 + $0x6c] sm:$0xf]
        %v911 = vld [vmem:[#allocation14 + $0x70] sm:$0xf]
        %v912 = vld [vmem:[#allocation14 + $0x74] sm:$0xf]
        %v913 = vld [vmem:[#allocation14 + $0x78] sm:$0xf]
        %v914 = vld [vmem:[#allocation14 + $0x7c] sm:$0xf]
        %v947 = vunpack.c.l.b16 %v883
        %v948 = vunpack.c.l.b16 %v884
        %v949 = vunpack.c.l.b16 %v885
        %v950 = vunpack.c.l.b16 %v886
        %v951 = vunpack.c.l.b16 %v887
        %v952 = vunpack.c.l.b16 %v888
        %v953 = vunpack.c.l.b16 %v889
        %v954 = vunpack.c.l.b16 %v890
        %v955 = vunpack.c.l.b16 %v891
        %v956 = vunpack.c.l.b16 %v892
        %v957 = vunpack.c.l.b16 %v893
        %v958 = vunpack.c.l.b16 %v894
        %v959 = vunpack.c.l.b16 %v895
        %v960 = vunpack.c.l.b16 %v896
        %v961 = vunpack.c.l.b16 %v897
        %v962 = vunpack.c.l.b16 %v898
        %v963 = vunpack.c.l.b16 %v899
        %v964 = vunpack.c.l.b16 %v900
        %v965 = vunpack.c.l.b16 %v901
        %v966 = vunpack.c.l.b16 %v902
        %v967 = vunpack.c.l.b16 %v903
        %v968 = vunpack.c.l.b16 %v904
        %v969 = vunpack.c.l.b16 %v905
        %v970 = vunpack.c.l.b16 %v906
        %v971 = vunpack.c.l.b16 %v907
        %v972 = vunpack.c.l.b16 %v908
        %v973 = vunpack.c.l.b16 %v909
        %v974 = vunpack.c.l.b16 %v910
        %v975 = vunpack.c.l.b16 %v911
        %v976 = vunpack.c.l.b16 %v912
        %v977 = vunpack.c.l.b16 %v913
        %v978 = vunpack.c.l.b16 %v914
        %v979 = vpack.c.b16 %v948, %v947
        %v980 = vpack.c.b16 %v950, %v949
        %v981 = vpack.c.b16 %v952, %v951
        %v982 = vpack.c.b16 %v954, %v953
        %v983 = vpack.c.b16 %v956, %v955
        %v984 = vpack.c.b16 %v958, %v957
        %v985 = vpack.c.b16 %v960, %v959
        %v986 = vpack.c.b16 %v962, %v961
        %v987 = vpack.c.b16 %v964, %v963
        %v988 = vpack.c.b16 %v966, %v965
        %v989 = vpack.c.b16 %v968, %v967
        %v990 = vpack.c.b16 %v970, %v969
        %v991 = vpack.c.b16 %v972, %v971
        %v992 = vpack.c.b16 %v974, %v973
        %v993 = vpack.c.b16 %v976, %v975
        %v994 = vpack.c.b16 %v978, %v977
        %1011 = vmatprep.subr.bf16.mxu0 0
        %1012 = vmatpush1.bf16.msra.mxu0 %v986
        %1013 = vmatprep.subr.bf16.mxu0 0
        %1014 = vmatpush1.bf16.msra.mxu0 %v985
        %1015 = vmatprep.subr.bf16.mxu0 0
        %1016 = vmatpush1.bf16.msra.mxu0 %v984
        %1017 = vmatprep.subr.bf16.mxu0 0
        %1018 = vmatpush1.bf16.msra.mxu0 %v983
        %1019 = vmatprep.subr.bf16.mxu0 0
        %1020 = vmatpush1.bf16.msra.mxu0 %v982
        %1021 = vmatprep.subr.bf16.mxu0 0
        %1022 = vmatpush1.bf16.msra.mxu0 %v981
        %1023 = vmatprep.subr.bf16.mxu0 0
        %1024 = vmatpush1.bf16.msra.mxu0 %v980
        %1025 = vmatprep.subr.bf16.mxu0 0
        %1026 = vmatpush1.bf16.msra.mxu0 %v979
        %1027 = vmatprep.subr.bf16.mxu0 0
        %1028 = vmatpush2.bf16.msra.mxu0 %v994
        %1029 = vmatprep.subr.bf16.mxu0 0
        %1030 = vmatpush2.bf16.msra.mxu0 %v993
        %1031 = vmatprep.subr.bf16.mxu0 0
        %1032 = vmatpush2.bf16.msra.mxu0 %v992
        %1033 = vmatprep.subr.bf16.mxu0 0
        %1034 = vmatpush2.bf16.msra.mxu0 %v991
        %1035 = vmatprep.subr.bf16.mxu0 0
        %1036 = vmatpush2.bf16.msra.mxu0 %v990
        %1037 = vmatprep.subr.bf16.mxu0 0
        %1038 = vmatpush2.bf16.msra.mxu0 %v989
        %1039 = vmatprep.subr.bf16.mxu0 0
        %1040 = vmatpush2.bf16.msra.mxu0 %v988
        %1041 = vmatprep.subr.bf16.mxu0 0
        %1042 = vmatpush2.bf16.msra.mxu0 %v987
        %1043 = vmatprep.mubr.bf16.mxu0 %v882
        %1044 = vmatmul.mubr.bf16.gmra.mxu0 %v881
        %v1045 = vpop.f32.mrf.mxu0
        %v1046 = vadd.f32 0.0, %v1045
        %v1047 = vpop.f32.mrf.mxu0
        %v1048 = vpop.f32.mrf.mxu0
        %v1049 = vadd.f32 0.0, %v1048
        %v1050 = vpop.f32.mrf.mxu0
        %1051 = vdwg.mxu0
        %v1084 = vunpack.c.l.b16 %v849
        %v1085 = vunpack.c.l.b16 %v850
        %v1086 = vunpack.c.l.b16 %v851
        %v1087 = vunpack.c.l.b16 %v852
        %v1088 = vunpack.c.l.b16 %v853
        %v1089 = vunpack.c.l.b16 %v854
        %v1090 = vunpack.c.l.b16 %v855
        %v1091 = vunpack.c.l.b16 %v856
        %v1092 = vunpack.c.l.b16 %v857
        %v1093 = vunpack.c.l.b16 %v858
        %v1094 = vunpack.c.l.b16 %v859
        %v1095 = vunpack.c.l.b16 %v860
        %v1096 = vunpack.c.l.b16 %v861
        %v1097 = vunpack.c.l.b16 %v862
        %v1098 = vunpack.c.l.b16 %v863
        %v1099 = vunpack.c.l.b16 %v864
        %v1100 = vunpack.c.l.b16 %v865
        %v1101 = vunpack.c.l.b16 %v866
        %v1102 = vunpack.c.l.b16 %v867
        %v1103 = vunpack.c.l.b16 %v868
        %v1104 = vunpack.c.l.b16 %v869
        %v1105 = vunpack.c.l.b16 %v870
        %v1106 = vunpack.c.l.b16 %v871
        %v1107 = vunpack.c.l.b16 %v872
        %v1108 = vunpack.c.l.b16 %v873
        %v1109 = vunpack.c.l.b16 %v874
        %v1110 = vunpack.c.l.b16 %v875
        %v1111 = vunpack.c.l.b16 %v876
        %v1112 = vunpack.c.l.b16 %v877
        %v1113 = vunpack.c.l.b16 %v878
        %v1114 = vunpack.c.l.b16 %v879
        %v1115 = vunpack.c.l.b16 %v880
        %v1116 = vpack.c.b16 %v1085, %v1084
        %v1117 = vpack.c.b16 %v1087, %v1086
        %v1118 = vpack.c.b16 %v1089, %v1088
        %v1119 = vpack.c.b16 %v1091, %v1090
        %v1120 = vpack.c.b16 %v1093, %v1092
        %v1121 = vpack.c.b16 %v1095, %v1094
        %v1122 = vpack.c.b16 %v1097, %v1096
        %v1123 = vpack.c.b16 %v1099, %v1098
        %v1124 = vpack.c.b16 %v1101, %v1100
        %v1125 = vpack.c.b16 %v1103, %v1102
        %v1126 = vpack.c.b16 %v1105, %v1104
        %v1127 = vpack.c.b16 %v1107, %v1106
        %v1128 = vpack.c.b16 %v1109, %v1108
        %v1129 = vpack.c.b16 %v1111, %v1110
        %v1130 = vpack.c.b16 %v1113, %v1112
        %v1131 = vpack.c.b16 %v1115, %v1114
        %1148 = vmatprep.subr.bf16.mxu0 0
        %1149 = vmatpush1.bf16.msra.mxu0 %v1123
        %1150 = vmatprep.subr.bf16.mxu0 0
        %1151 = vmatpush1.bf16.msra.mxu0 %v1122
        %1152 = vmatprep.subr.bf16.mxu0 0
        %1153 = vmatpush1.bf16.msra.mxu0 %v1121
        %1154 = vmatprep.subr.bf16.mxu0 0
        %1155 = vmatpush1.bf16.msra.mxu0 %v1120
        %1156 = vmatprep.subr.bf16.mxu0 0
        %1157 = vmatpush1.bf16.msra.mxu0 %v1119
        %1158 = vmatprep.subr.bf16.mxu0 0
        %1159 = vmatpush1.bf16.msra.mxu0 %v1118
        %1160 = vmatprep.subr.bf16.mxu0 0
        %1161 = vmatpush1.bf16.msra.mxu0 %v1117
        %1162 = vmatprep.subr.bf16.mxu0 0
        %1163 = vmatpush1.bf16.msra.mxu0 %v1116
        %1164 = vmatprep.subr.bf16.mxu0 0
        %1165 = vmatpush2.bf16.msra.mxu0 %v1131
        %1166 = vmatprep.subr.bf16.mxu0 0
        %1167 = vmatpush2.bf16.msra.mxu0 %v1130
        %1168 = vmatprep.subr.bf16.mxu0 0
        %1169 = vmatpush2.bf16.msra.mxu0 %v1129
        %1170 = vmatprep.subr.bf16.mxu0 0
        %1171 = vmatpush2.bf16.msra.mxu0 %v1128
        %1172 = vmatprep.subr.bf16.mxu0 0
        %1173 = vmatpush2.bf16.msra.mxu0 %v1127
        %1174 = vmatprep.subr.bf16.mxu0 0
        %1175 = vmatpush2.bf16.msra.mxu0 %v1126
        %1176 = vmatprep.subr.bf16.mxu0 0
        %1177 = vmatpush2.bf16.msra.mxu0 %v1125
        %1178 = vmatprep.subr.bf16.mxu0 0
        %1179 = vmatpush2.bf16.msra.mxu0 %v1124
        %1180 = vmatprep.mubr.bf16.mxu0 %v848
        %1181 = vmatmul.mubr.bf16.gmra.mxu0 %v847
        %v1182 = vpop.f32.mrf.mxu0
        %v1183 = vadd.f32 %v1046, %v1182
        %v1184 = vpop.f32.mrf.mxu0
        %v1185 = vpop.f32.mrf.mxu0
        %v1186 = vadd.f32 %v1049, %v1185
        %v1187 = vpop.f32.mrf.mxu0
        %1188 = vdwg.mxu0
        %v1189 = vld [vmem:[#allocation16] sm:$0x1]
        %v1191 = vlaneseq
        %v1192 = vshrl.u32 %v1191, 7
        %v1193 = vsub.s32 0, %v1192
        %v1194 = vrot.slane %v1189, %v1193
        %v1196 = vadd.f32 %v1183, %v1194
        %v1197 = vadd.f32 %v1186, %v1194
        %1198 = vst [vmem:[#allocation2] sm:$0xff] %v1196
        %1199 = vst [vmem:[#allocation2 + $0x8] sm:$0xff] %v1197
        %v1200 = vld [vmem:[#allocation2] ss:$2 sm:$0xff]
        %1201 = vst [vmem:[%s478] sm:$0xff] %v1200
        %p1202 = scmp.lt.s32.totalorder %s26, 1
        %s1203 = scalar_select %p1202, %s26, 1
        %s1204 = smul.addr %s1203, 8
        %s1205 = scalar_lea.vmem %s10, %s1204
        // Predicated region
        $region97: #{forward.7} parent=59 // pred_check
          %p1206 = pneg %p259
        $region98: #{forward.7} parent=59 // pred_check_branch
          %1208 = sbr.rel (%p1206) target = $region100
        $region99: #{forward.7} parent=59 // pred_region
          _
        $region100: #{forward.7} parent=59 // pred_fallthru
          _
      $region60: #{forward.7} parent=5 // pred_fallthru
        _
      %p1209 = scmp.le.s32.totalorder 2, %s21
      // Predicated region
      $region101: #{forward.7} parent=5 // pred_check
        %p1210 = pneg %p1209
      $region102: #{forward.7} parent=5 // pred_check_branch
        %1212 = sbr.rel (%p1210) target = $region104
      $region103: #{forward.7} parent=5 // pred_region
        %s1213 = ssub.s32 %s21, 2
        // Predicated region
        $region105: #{forward.7} parent=103 // pred_check
          %p1214 = pneg %p265
        $region106: #{forward.7} parent=103 // pred_check_branch
          %1216 = sbr.rel (%p1214) target = $region108
        $region107: #{forward.7} parent=103 // pred_region
          %p1217 = scmp.lt.s32.totalorder %s27, 1
          %s1218 = scalar_select %p1217, %s27, 1
          %s1219 = smul.addr %s1218, 8
          %s1220 = scalar_lea.vmem %s10, %s1219
        $region108: #{forward.7} parent=103 // pred_fallthru
          _
      $region104: #{forward.7} parent=5 // pred_fallthru
        _
    $region6: #{forward.7} parent=1 // loop_footer
      %s25 = sadd.s32 1, %s21
    $region7: #{forward.7} parent=1 // loop_footer_branch
      %20 = sbr.rel target = $region3
    $region8: #{forward.7} parent=1 // loop_exit
      _
    %1221 = vsyncpa [#allocation4], 1
    %s1222 = scalar_lea.sflag [#allocation4], 1
    %1223 = vsyncpa %s1222, 1
    %1224 = vsyncpa [#allocation6], 1
    %1225 = vsyncpa [#allocation9], 1
    %1226 = vsyncpa [#allocation12], 1
    %1227 = vsyncpa [#allocation15], 1

// kernel: forward.8
$region0: #{forward.8}
  #allocation0 [shape = 'u32[]', space=smem, size = 0x4, offset = 0x4, fixed_abs, tag = 'smem constant byte address 0x4 - core index']
  #allocation1 [shape = 'u32[144,128]{1,0:T(1,128)}', space=vmem, size = 0x12000, scoped, tag = 'internal scratch']
  #allocation2 [shape = 'f32[16,128]{1,0:T(8,128)}', space=vmem, size = 0x2000, scoped, tag = 'scratch operand']
  %s0 = inlined_call_operand.vmem [shape: f32[16,128], index: 0, kind: input, shape index: {}]
  %s1 = inlined_call_operand.vmem [shape: bf16[256,128], index: 1, kind: input, shape index: {}]
  %s2 = inlined_call_operand.hbm [shape: f32[1,128], index: 2, kind: input, shape index: {}]
  %s3 = inlined_call_operand.vmem [shape: bf16[256,128], index: 3, kind: input, shape index: {}]
  %s4 = inlined_call_operand.vmem [shape: f32[1,128], index: 4, kind: input, shape index: {}]
  %s5 = inlined_call_operand.hbm [shape: bf16[128,128], index: 5, kind: input, shape index: {}]
  %s6 = inlined_call_operand.hbm [shape: f32[1,128], index: 6, kind: input, shape index: {}]
  %s7 = inlined_call_operand.vmem [shape: bf16[256,128], index: 7, kind: input, shape index: {}]
  %s8 = inlined_call_operand.vmem [shape: bf16[256,128], index: 8, kind: input, shape index: {}]
  %s9 = inlined_call_operand.hbm [shape: f32[1,128], index: 9, kind: input, shape index: {}]
  %s10 = inlined_call_operand.vmem [shape: f32[8,128], index: 10, kind: output, shape index: {}]
  %s11 = sld [smem:[#allocation0]]
  $region66: #{forward.8} parent=0
    _
  %s13 = ssub.s32 1, %s11
  %s14 = scalar_select 0, %s13, %s11
  $region1: #{forward.8} parent=0
    #allocation3 [shape = 'u8[512]{0}', space=vmem, size = 0x400, scoped, tag = 'input window, operand 2, single buffered']
    #allocation4 [shape = 's32[1]{0}', space=sflag, size = 0x4, scoped, tag = 'scoped memory for forward.8']
    #allocation5 [shape = 'u8[32768]{0}', space=vmem, size = 0x8000, scoped, tag = 'input window, operand 5, single buffered']
    #allocation6 [shape = 's32[1]{0}', space=sflag, size = 0x4, scoped, tag = 'scoped memory for forward.8']
    #allocation7 [shape = 'u8[512]{0}', space=vmem, size = 0x400, scoped, tag = 'input window, operand 6, single buffered']
    #allocation8 [shape = 'u8[512]{0}', space=vmem, size = 0x400, scoped, tag = 'input window, operand 9, single buffered']
    #allocation9 [shape = 's32[1]{0}', space=sflag, size = 0x4, scoped, tag = 'scoped memory for forward.8']
    %15 = vsyncpa [#allocation4], 0
    %16 = vsyncpa [#allocation6], 0
    %17 = vsyncpa [#allocation9], 0
    // Predicated region
    $region2: #{forward.8} parent=1 // pred_check
      _
    $region3: #{forward.8} parent=1 // pred_check_branch
      %19 = sbr.rel (0) target = $region5
    $region4: #{forward.8} parent=1 // pred_region
      _
    $region5: #{forward.8} parent=1 // pred_fallthru
      _
    // Predicated region
    $region6: #{forward.8} parent=1 // pred_check
      _
    $region7: #{forward.8} parent=1 // pred_check_branch
      %21 = sbr.rel (0) target = $region9
    $region8: #{forward.8} parent=1 // pred_region
      _
    $region9: #{forward.8} parent=1 // pred_fallthru
      _
    // Predicated region
    $region10: #{forward.8} parent=1 // pred_check
      _
    $region11: #{forward.8} parent=1 // pred_check_branch
      %23 = sbr.rel (0) target = $region13
    $region12: #{forward.8} parent=1 // pred_region
      %s25 = ssub.s32 16, 16
      %26 = vsyncadd [#allocation4], %s25
      %s28 = sshll.u32 [#allocation3], 4
      %s29 = int_to_ptr.vmem [resolvable:$true] %s28
      %31 = dma.hbm_to_vmem [thread:$0]  %s2, 16, %s29, [#allocation4]
    $region13: #{forward.8} parent=1 // pred_fallthru
      _
    // Predicated region
    $region14: #{forward.8} parent=1 // pred_check
      _
    $region15: #{forward.8} parent=1 // pred_check_branch
      %33 = sbr.rel (0) target = $region17
    $region16: #{forward.8} parent=1 // pred_region
      _
    $region17: #{forward.8} parent=1 // pred_fallthru
      _
    // Predicated region
    $region18: #{forward.8} parent=1 // pred_check
      _
    $region19: #{forward.8} parent=1 // pred_check_branch
      %35 = sbr.rel (0) target = $region21
    $region20: #{forward.8} parent=1 // pred_region
      _
    $region21: #{forward.8} parent=1 // pred_fallthru
      _
    // Predicated region
    $region22: #{forward.8} parent=1 // pred_check
      _
    $region23: #{forward.8} parent=1 // pred_check_branch
      %37 = sbr.rel (0) target = $region25
    $region24: #{forward.8} parent=1 // pred_region
      %s39 = ssub.s32 1024, 1024
      %40 = vsyncadd [#allocation6], %s39
      %s41 = sshll.u32 [#allocation5], 4
      %s42 = int_to_ptr.vmem [resolvable:$true] %s41
      %47 = dma.hbm_to_vmem [thread:$0]  %s5, 1024, %s42, [#allocation6], 64, 64, 4
    $region25: #{forward.8} parent=1 // pred_fallthru
      _
    // Predicated region
    $region26: #{forward.8} parent=1 // pred_check
      _
    $region27: #{forward.8} parent=1 // pred_check_branch
      %49 = sbr.rel (0) target = $region29
    $region28: #{forward.8} parent=1 // pred_region
      %s51 = ssub.s32 16, 16
      %52 = vsyncadd [#allocation6], %s51
      %s54 = sshll.u32 [#allocation7], 4
      %s55 = int_to_ptr.vmem [resolvable:$true] %s54
      %57 = dma.hbm_to_vmem [thread:$0]  %s6, 16, %s55, [#allocation6]
    $region29: #{forward.8} parent=1 // pred_fallthru
      _
    // Predicated region
    $region30: #{forward.8} parent=1 // pred_check
      _
    $region31: #{forward.8} parent=1 // pred_check_branch
      %59 = sbr.rel (0) target = $region33
    $region32: #{forward.8} parent=1 // pred_region
      _
    $region33: #{forward.8} parent=1 // pred_fallthru
      _
    // Predicated region
    $region34: #{forward.8} parent=1 // pred_check
      _
    $region35: #{forward.8} parent=1 // pred_check_branch
      %61 = sbr.rel (0) target = $region37
    $region36: #{forward.8} parent=1 // pred_region
      _
    $region37: #{forward.8} parent=1 // pred_fallthru
      _
    // Predicated region
    $region38: #{forward.8} parent=1 // pred_check
      _
    $region39: #{forward.8} parent=1 // pred_check_branch
      %63 = sbr.rel (0) target = $region41
    $region40: #{forward.8} parent=1 // pred_region
      %s65 = ssub.s32 16, 16
      %66 = vsyncadd [#allocation9], %s65
      %s68 = sshll.u32 [#allocation8], 4
      %s69 = int_to_ptr.vmem [resolvable:$true] %s68
      %71 = dma.hbm_to_vmem [thread:$0]  %s9, 16, %s69, [#allocation9]
    $region41: #{forward.8} parent=1 // pred_fallthru
      _
    // Predicated region
    $region42: #{forward.8} parent=1 // pred_check
      _
    $region43: #{forward.8} parent=1 // pred_check_branch
      %73 = sbr.rel (0) target = $region45
    $region44: #{forward.8} parent=1 // pred_region
      %74 = dma.done [#allocation4], 16
    $region45: #{forward.8} parent=1 // pred_fallthru
      _
    // Predicated region
    $region46: #{forward.8} parent=1 // pred_check
      _
    $region47: #{forward.8} parent=1 // pred_check_branch
      %76 = sbr.rel (0) target = $region49
    $region48: #{forward.8} parent=1 // pred_region
      %77 = dma.done [#allocation6], 1024
    $region49: #{forward.8} parent=1 // pred_fallthru
      _
    // Predicated region
    $region50: #{forward.8} parent=1 // pred_check
      _
    $region51: #{forward.8} parent=1 // pred_check_branch
      %79 = sbr.rel (0) target = $region53
    $region52: #{forward.8} parent=1 // pred_region
      %80 = dma.done [#allocation6], 16
    $region53: #{forward.8} parent=1 // pred_fallthru
      _
    // Predicated region
    $region54: #{forward.8} parent=1 // pred_check
      _
    $region55: #{forward.8} parent=1 // pred_check_branch
      %82 = sbr.rel (0) target = $region57
    $region56: #{forward.8} parent=1 // pred_region
      %83 = dma.done [#allocation9], 16
    $region57: #{forward.8} parent=1 // pred_fallthru
      _
    %v85 = vld [vmem:[%s0] sm:$0xff]
    %v86 = vld [vmem:[%s0 + $0x8] sm:$0xff]
    %v87 = vlaneseq
    %v88 = vshrl.u32 %v87, 7
    %v89 = vadd.s32 %v88, 8
    %vm90 = vcmp.lt.s32.totalorder %v88, 0
    %v91 = vsub.s32 0, %v88
    %v92 = vsel %vm90, %v91, %v88
    %v93 = vshrl.u32 %v92, 3
    %v94 = vand.u32 %v92, 7
    %v95 = vsub.s32 0, %v94
    %v96 = vsel %vm90, %v95, %v94
    %vm97 = vcmp.lt.s32.totalorder %v89, 0
    %v98 = vsub.s32 0, %v89
    %v99 = vsel %vm97, %v98, %v89
    %v100 = vshrl.u32 %v99, 3
    %v101 = vand.u32 %v99, 7
    %v102 = vsub.s32 0, %v101
    %v103 = vsel %vm97, %v102, %v101
    %vm104 = vcmp.ne.s32.totalorder %v96, 0
    %vm105 = vcmp.ne.s32.totalorder %v103, 0
    %vm106 = vcmp.lt.s32.totalorder %v96, 0
    %vm107 = vcmp.lt.s32.totalorder %v103, 0
    %vm108 = vmand %vm106, %vm104
    %vm109 = vmand %vm107, %vm105
    %v110 = vadd.s32 %v96, 8
    %v111 = vadd.s32 %v103, 8
    %v112 = vsel %vm108, %v110, %v96
    %v113 = vsel %vm109, %v111, %v103
    %vm114 = vcmp.ne.s32.totalorder %v112, 0
    %vm115 = vcmp.ne.s32.totalorder %v113, 0
    %v116 = vld [vmem:[%s1] sm:$0xf]
    %v117 = vld [vmem:[%s1 + $0x4] sm:$0xf]
    %v118 = vld [vmem:[%s1 + $0x8] sm:$0xf]
    %v119 = vld [vmem:[%s1 + $0xc] sm:$0xf]
    %v120 = vld [vmem:[%s1 + $0x10] sm:$0xf]
    %v121 = vld [vmem:[%s1 + $0x14] sm:$0xf]
    %v122 = vld [vmem:[%s1 + $0x18] sm:$0xf]
    %v123 = vld [vmem:[%s1 + $0x1c] sm:$0xf]
    %v124 = vld [vmem:[%s1 + $0x20] sm:$0xf]
    %v125 = vld [vmem:[%s1 + $0x24] sm:$0xf]
    %v126 = vld [vmem:[%s1 + $0x28] sm:$0xf]
    %v127 = vld [vmem:[%s1 + $0x2c] sm:$0xf]
    %v128 = vld [vmem:[%s1 + $0x30] sm:$0xf]
    %v129 = vld [vmem:[%s1 + $0x34] sm:$0xf]
    %v130 = vld [vmem:[%s1 + $0x38] sm:$0xf]
    %v131 = vld [vmem:[%s1 + $0x3c] sm:$0xf]
    %v132 = vld [vmem:[%s1 + $0x40] sm:$0xf]
    %v133 = vld [vmem:[%s1 + $0x44] sm:$0xf]
    %v134 = vld [vmem:[%s1 + $0x48] sm:$0xf]
    %v135 = vld [vmem:[%s1 + $0x4c] sm:$0xf]
    %v136 = vld [vmem:[%s1 + $0x50] sm:$0xf]
    %v137 = vld [vmem:[%s1 + $0x54] sm:$0xf]
    %v138 = vld [vmem:[%s1 + $0x58] sm:$0xf]
    %v139 = vld [vmem:[%s1 + $0x5c] sm:$0xf]
    %v140 = vld [vmem:[%s1 + $0x60] sm:$0xf]
    %v141 = vld [vmem:[%s1 + $0x64] sm:$0xf]
    %v142 = vld [vmem:[%s1 + $0x68] sm:$0xf]
    %v143 = vld [vmem:[%s1 + $0x6c] sm:$0xf]
    %v144 = vld [vmem:[%s1 + $0x70] sm:$0xf]
    %v145 = vld [vmem:[%s1 + $0x74] sm:$0xf]
    %v146 = vld [vmem:[%s1 + $0x78] sm:$0xf]
    %v147 = vld [vmem:[%s1 + $0x7c] sm:$0xf]
    %v148 = vld [vmem:[#allocation3] sm:$0x1]
    %v149 = vrot.slane %v85, 7
    %v150 = vrot.slane %v86, 7
    %vm151 = vcmp.lt.s32.totalorder %v88, 1
    %v152 = vsel %vm151, %v149, %v150
    %v153 = vsel %vm151, %v150, %v149
    %v154 = vsel %vm114, 1, 0
    %v155 = vsel %vm115, 1, 0
    %vm156 = vcmp.eq.s32.totalorder %v154, 1
    %vm157 = vcmp.eq.s32.totalorder %v155, 1
    %v158 = vsel %vm156, %v153, 0.0
    %v159 = vsel %vm157, %v152, 0.0
    %v160 = vpack.c.bf16 %v159, %v158
    %v161 = vpack.c.bf16 %v86, %v85
    %v163 = vlaneseq
    %v164 = vshrl.u32 %v163, 7
    %v165 = vsub.s32 0, %v164
    %v166 = vrot.slane %v148, %v165
    %v200 = vunpack.c.l.b16 %v116
    %v201 = vunpack.c.l.b16 %v117
    %v202 = vunpack.c.l.b16 %v118
    %v203 = vunpack.c.l.b16 %v119
    %v204 = vunpack.c.l.b16 %v120
    %v205 = vunpack.c.l.b16 %v121
    %v206 = vunpack.c.l.b16 %v122
    %v207 = vunpack.c.l.b16 %v123
    %v208 = vunpack.c.l.b16 %v124
    %v209 = vunpack.c.l.b16 %v125
    %v210 = vunpack.c.l.b16 %v126
    %v211 = vunpack.c.l.b16 %v127
    %v212 = vunpack.c.l.b16 %v128
    %v213 = vunpack.c.l.b16 %v129
    %v214 = vunpack.c.l.b16 %v130
    %v215 = vunpack.c.l.b16 %v131
    %v216 = vunpack.c.l.b16 %v132
    %v217 = vunpack.c.l.b16 %v133
    %v218 = vunpack.c.l.b16 %v134
    %v219 = vunpack.c.l.b16 %v135
    %v220 = vunpack.c.l.b16 %v136
    %v221 = vunpack.c.l.b16 %v137
    %v222 = vunpack.c.l.b16 %v138
    %v223 = vunpack.c.l.b16 %v139
    %v224 = vunpack.c.l.b16 %v140
    %v225 = vunpack.c.l.b16 %v141
    %v226 = vunpack.c.l.b16 %v142
    %v227 = vunpack.c.l.b16 %v143
    %v228 = vunpack.c.l.b16 %v144
    %v229 = vunpack.c.l.b16 %v145
    %v230 = vunpack.c.l.b16 %v146
    %v231 = vunpack.c.l.b16 %v147
    %v232 = vpack.c.b16 %v201, %v200
    %v233 = vpack.c.b16 %v203, %v202
    %v234 = vpack.c.b16 %v205, %v204
    %v235 = vpack.c.b16 %v207, %v206
    %v236 = vpack.c.b16 %v209, %v208
    %v237 = vpack.c.b16 %v211, %v210
    %v238 = vpack.c.b16 %v213, %v212
    %v239 = vpack.c.b16 %v215, %v214
    %v240 = vpack.c.b16 %v217, %v216
    %v241 = vpack.c.b16 %v219, %v218
    %v242 = vpack.c.b16 %v221, %v220
    %v243 = vpack.c.b16 %v223, %v222
    %v244 = vpack.c.b16 %v225, %v224
    %v245 = vpack.c.b16 %v227, %v226
    %v246 = vpack.c.b16 %v229, %v228
    %v247 = vpack.c.b16 %v231, %v230
    %264 = vmatprep.subr.bf16.mxu0 0
    %265 = vmatpush1.bf16.msra.mxu0 %v239
    %266 = vmatprep.subr.bf16.mxu0 0
    %267 = vmatpush1.bf16.msra.mxu0 %v238
    %268 = vmatprep.subr.bf16.mxu0 0
    %269 = vmatpush1.bf16.msra.mxu0 %v237
    %270 = vmatprep.subr.bf16.mxu0 0
    %271 = vmatpush1.bf16.msra.mxu0 %v236
    %272 = vmatprep.subr.bf16.mxu0 0
    %273 = vmatpush1.bf16.msra.mxu0 %v235
    %274 = vmatprep.subr.bf16.mxu0 0
    %275 = vmatpush1.bf16.msra.mxu0 %v234
    %276 = vmatprep.subr.bf16.mxu0 0
    %277 = vmatpush1.bf16.msra.mxu0 %v233
    %278 = vmatprep.subr.bf16.mxu0 0
    %279 = vmatpush1.bf16.msra.mxu0 %v232
    %280 = vmatprep.subr.bf16.mxu0 0
    %281 = vmatpush2.bf16.msra.mxu0 %v247
    %282 = vmatprep.subr.bf16.mxu0 0
    %283 = vmatpush2.bf16.msra.mxu0 %v246
    %284 = vmatprep.subr.bf16.mxu0 0
    %285 = vmatpush2.bf16.msra.mxu0 %v245
    %286 = vmatprep.subr.bf16.mxu0 0
    %287 = vmatpush2.bf16.msra.mxu0 %v244
    %288 = vmatprep.subr.bf16.mxu0 0
    %289 = vmatpush2.bf16.msra.mxu0 %v243
    %290 = vmatprep.subr.bf16.mxu0 0
    %291 = vmatpush2.bf16.msra.mxu0 %v242
    %292 = vmatprep.subr.bf16.mxu0 0
    %293 = vmatpush2.bf16.msra.mxu0 %v241
    %294 = vmatprep.subr.bf16.mxu0 0
    %295 = vmatpush2.bf16.msra.mxu0 %v240
    %296 = vmatprep.mubr.bf16.mxu0 %v161
    %297 = vmatmul.mubr.bf16.gmra.mxu0 %v160
    %v298 = vpop.f32.mrf.mxu0
    %v299 = vadd.f32 %v166, %v298
    %v300 = vpop.f32.mrf.mxu0
    %v301 = vpop.f32.mrf.mxu0
    %v302 = vadd.f32 %v166, %v301
    %v303 = vpop.f32.mrf.mxu0
    %304 = vdwg.mxu0
    %v305 = vmax.f32 %v299, 0.0
    %v306 = vmax.f32 %v302, 0.0
    %v307 = vld [vmem:[%s3] sm:$0xf]
    %v308 = vld [vmem:[%s3 + $0x4] sm:$0xf]
    %v309 = vld [vmem:[%s3 + $0x8] sm:$0xf]
    %v310 = vld [vmem:[%s3 + $0xc] sm:$0xf]
    %v311 = vld [vmem:[%s3 + $0x10] sm:$0xf]
    %v312 = vld [vmem:[%s3 + $0x14] sm:$0xf]
    %v313 = vld [vmem:[%s3 + $0x18] sm:$0xf]
    %v314 = vld [vmem:[%s3 + $0x1c] sm:$0xf]
    %v315 = vld [vmem:[%s3 + $0x20] sm:$0xf]
    %v316 = vld [vmem:[%s3 + $0x24] sm:$0xf]
    %v317 = vld [vmem:[%s3 + $0x28] sm:$0xf]
    %v318 = vld [vmem:[%s3 + $0x2c] sm:$0xf]
    %v319 = vld [vmem:[%s3 + $0x30] sm:$0xf]
    %v320 = vld [vmem:[%s3 + $0x34] sm:$0xf]
    %v321 = vld [vmem:[%s3 + $0x38] sm:$0xf]
    %v322 = vld [vmem:[%s3 + $0x3c] sm:$0xf]
    %v323 = vld [vmem:[%s3 + $0x40] sm:$0xf]
    %v324 = vld [vmem:[%s3 + $0x44] sm:$0xf]
    %v325 = vld [vmem:[%s3 + $0x48] sm:$0xf]
    %v326 = vld [vmem:[%s3 + $0x4c] sm:$0xf]
    %v327 = vld [vmem:[%s3 + $0x50] sm:$0xf]
    %v328 = vld [vmem:[%s3 + $0x54] sm:$0xf]
    %v329 = vld [vmem:[%s3 + $0x58] sm:$0xf]
    %v330 = vld [vmem:[%s3 + $0x5c] sm:$0xf]
    %v331 = vld [vmem:[%s3 + $0x60] sm:$0xf]
    %v332 = vld [vmem:[%s3 + $0x64] sm:$0xf]
    %v333 = vld [vmem:[%s3 + $0x68] sm:$0xf]
    %v334 = vld [vmem:[%s3 + $0x6c] sm:$0xf]
    %v335 = vld [vmem:[%s3 + $0x70] sm:$0xf]
    %v336 = vld [vmem:[%s3 + $0x74] sm:$0xf]
    %v337 = vld [vmem:[%s3 + $0x78] sm:$0xf]
    %v338 = vld [vmem:[%s3 + $0x7c] sm:$0xf]
    %v339 = vld [vmem:[%s4] sm:$0x1]
    %v340 = vrot.slane %v305, 7
    %v341 = vrot.slane %v306, 7
    %v342 = vsel %vm151, %v340, %v341
    %v343 = vsel %vm151, %v341, %v340
    %v344 = vsel %vm156, %v343, 0.0
    %v345 = vsel %vm157, %v342, 0.0
    %v346 = vpack.c.bf16 %v345, %v344
    %v347 = vpack.c.bf16 %v306, %v305
    %v349 = vlaneseq
    %v350 = vshrl.u32 %v349, 7
    %v351 = vsub.s32 0, %v350
    %v352 = vrot.slane %v339, %v351
    %v386 = vunpack.c.l.b16 %v307
    %v387 = vunpack.c.l.b16 %v308
    %v388 = vunpack.c.l.b16 %v309
    %v389 = vunpack.c.l.b16 %v310
    %v390 = vunpack.c.l.b16 %v311
    %v391 = vunpack.c.l.b16 %v312
    %v392 = vunpack.c.l.b16 %v313
    %v393 = vunpack.c.l.b16 %v314
    %v394 = vunpack.c.l.b16 %v315
    %v395 = vunpack.c.l.b16 %v316
    %v396 = vunpack.c.l.b16 %v317
    %v397 = vunpack.c.l.b16 %v318
    %v398 = vunpack.c.l.b16 %v319
    %v399 = vunpack.c.l.b16 %v320
    %v400 = vunpack.c.l.b16 %v321
    %v401 = vunpack.c.l.b16 %v322
    %v402 = vunpack.c.l.b16 %v323
    %v403 = vunpack.c.l.b16 %v324
    %v404 = vunpack.c.l.b16 %v325
    %v405 = vunpack.c.l.b16 %v326
    %v406 = vunpack.c.l.b16 %v327
    %v407 = vunpack.c.l.b16 %v328
    %v408 = vunpack.c.l.b16 %v329
    %v409 = vunpack.c.l.b16 %v330
    %v410 = vunpack.c.l.b16 %v331
    %v411 = vunpack.c.l.b16 %v332
    %v412 = vunpack.c.l.b16 %v333
    %v413 = vunpack.c.l.b16 %v334
    %v414 = vunpack.c.l.b16 %v335
    %v415 = vunpack.c.l.b16 %v336
    %v416 = vunpack.c.l.b16 %v337
    %v417 = vunpack.c.l.b16 %v338
    %v418 = vpack.c.b16 %v387, %v386
    %v419 = vpack.c.b16 %v389, %v388
    %v420 = vpack.c.b16 %v391, %v390
    %v421 = vpack.c.b16 %v393, %v392
    %v422 = vpack.c.b16 %v395, %v394
    %v423 = vpack.c.b16 %v397, %v396
    %v424 = vpack.c.b16 %v399, %v398
    %v425 = vpack.c.b16 %v401, %v400
    %v426 = vpack.c.b16 %v403, %v402
    %v427 = vpack.c.b16 %v405, %v404
    %v428 = vpack.c.b16 %v407, %v406
    %v429 = vpack.c.b16 %v409, %v408
    %v430 = vpack.c.b16 %v411, %v410
    %v431 = vpack.c.b16 %v413, %v412
    %v432 = vpack.c.b16 %v415, %v414
    %v433 = vpack.c.b16 %v417, %v416
    %450 = vmatprep.subr.bf16.mxu0 0
    %451 = vmatpush1.bf16.msra.mxu0 %v425
    %452 = vmatprep.subr.bf16.mxu0 0
    %453 = vmatpush1.bf16.msra.mxu0 %v424
    %454 = vmatprep.subr.bf16.mxu0 0
    %455 = vmatpush1.bf16.msra.mxu0 %v423
    %456 = vmatprep.subr.bf16.mxu0 0
    %457 = vmatpush1.bf16.msra.mxu0 %v422
    %458 = vmatprep.subr.bf16.mxu0 0
    %459 = vmatpush1.bf16.msra.mxu0 %v421
    %460 = vmatprep.subr.bf16.mxu0 0
    %461 = vmatpush1.bf16.msra.mxu0 %v420
    %462 = vmatprep.subr.bf16.mxu0 0
    %463 = vmatpush1.bf16.msra.mxu0 %v419
    %464 = vmatprep.subr.bf16.mxu0 0
    %465 = vmatpush1.bf16.msra.mxu0 %v418
    %466 = vmatprep.subr.bf16.mxu0 0
    %467 = vmatpush2.bf16.msra.mxu0 %v433
    %468 = vmatprep.subr.bf16.mxu0 0
    %469 = vmatpush2.bf16.msra.mxu0 %v432
    %470 = vmatprep.subr.bf16.mxu0 0
    %471 = vmatpush2.bf16.msra.mxu0 %v431
    %472 = vmatprep.subr.bf16.mxu0 0
    %473 = vmatpush2.bf16.msra.mxu0 %v430
    %474 = vmatprep.subr.bf16.mxu0 0
    %475 = vmatpush2.bf16.msra.mxu0 %v429
    %476 = vmatprep.subr.bf16.mxu0 0
    %477 = vmatpush2.bf16.msra.mxu0 %v428
    %478 = vmatprep.subr.bf16.mxu0 0
    %479 = vmatpush2.bf16.msra.mxu0 %v427
    %480 = vmatprep.subr.bf16.mxu0 0
    %481 = vmatpush2.bf16.msra.mxu0 %v426
    %482 = vmatprep.mubr.bf16.mxu0 %v347
    %483 = vmatmul.mubr.bf16.gmra.mxu0 %v346
    %v484 = vpop.f32.mrf.mxu0
    %v485 = vadd.f32 %v352, %v484
    %v486 = vpop.f32.mrf.mxu0
    %v487 = vpop.f32.mrf.mxu0
    %v488 = vadd.f32 %v352, %v487
    %v489 = vpop.f32.mrf.mxu0
    %490 = vdwg.mxu0
    %v491 = vmax.f32 %v485, 0.0
    %v492 = vmax.f32 %v488, 0.0
    %v493 = vld [vmem:[#allocation5] sm:$0xf]
    %v494 = vld [vmem:[#allocation5 + $0x4] sm:$0xf]
    %v495 = vld [vmem:[#allocation5 + $0x8] sm:$0xf]
    %v496 = vld [vmem:[#allocation5 + $0xc] sm:$0xf]
    %v497 = vld [vmem:[#allocation5 + $0x10] sm:$0xf]
    %v498 = vld [vmem:[#allocation5 + $0x14] sm:$0xf]
    %v499 = vld [vmem:[#allocation5 + $0x18] sm:$0xf]
    %v500 = vld [vmem:[#allocation5 + $0x1c] sm:$0xf]
    %v501 = vld [vmem:[#allocation5 + $0x20] sm:$0xf]
    %v502 = vld [vmem:[#allocation5 + $0x24] sm:$0xf]
    %v503 = vld [vmem:[#allocation5 + $0x28] sm:$0xf]
    %v504 = vld [vmem:[#allocation5 + $0x2c] sm:$0xf]
    %v505 = vld [vmem:[#allocation5 + $0x30] sm:$0xf]
    %v506 = vld [vmem:[#allocation5 + $0x34] sm:$0xf]
    %v507 = vld [vmem:[#allocation5 + $0x38] sm:$0xf]
    %v508 = vld [vmem:[#allocation5 + $0x3c] sm:$0xf]
    %v509 = vld [vmem:[#allocation7] sm:$0x1]
    %v511 = vlaneseq
    %v512 = vshrl.u32 %v511, 7
    %v513 = vsub.s32 0, %v512
    %v514 = vrot.slane %v509, %v513
    %v532 = vunpack.c.l.b16 %v493
    %v533 = vunpack.c.l.b16 %v494
    %v534 = vunpack.c.l.b16 %v495
    %v535 = vunpack.c.l.b16 %v496
    %v536 = vunpack.c.l.b16 %v497
    %v537 = vunpack.c.l.b16 %v498
    %v538 = vunpack.c.l.b16 %v499
    %v539 = vunpack.c.l.b16 %v500
    %v540 = vunpack.c.l.b16 %v501
    %v541 = vunpack.c.l.b16 %v502
    %v542 = vunpack.c.l.b16 %v503
    %v543 = vunpack.c.l.b16 %v504
    %v544 = vunpack.c.l.b16 %v505
    %v545 = vunpack.c.l.b16 %v506
    %v546 = vunpack.c.l.b16 %v507
    %v547 = vunpack.c.l.b16 %v508
    %v548 = vpack.c.b16 %v533, %v532
    %v549 = vpack.c.b16 %v535, %v534
    %v550 = vpack.c.b16 %v537, %v536
    %v551 = vpack.c.b16 %v539, %v538
    %v552 = vpack.c.b16 %v541, %v540
    %v553 = vpack.c.b16 %v543, %v542
    %v554 = vpack.c.b16 %v545, %v544
    %v555 = vpack.c.b16 %v547, %v546
    %564 = vmatprep.subr.bf16.mxu0 0
    %565 = vmatpush1.bf16.msra.mxu0 %v555
    %566 = vmatprep.subr.bf16.mxu0 0
    %567 = vmatpush1.bf16.msra.mxu0 %v554
    %568 = vmatprep.subr.bf16.mxu0 0
    %569 = vmatpush1.bf16.msra.mxu0 %v553
    %570 = vmatprep.subr.bf16.mxu0 0
    %571 = vmatpush1.bf16.msra.mxu0 %v552
    %572 = vmatprep.subr.bf16.mxu0 0
    %573 = vmatpush1.bf16.msra.mxu0 %v551
    %574 = vmatprep.subr.bf16.mxu0 0
    %575 = vmatpush1.bf16.msra.mxu0 %v550
    %576 = vmatprep.subr.bf16.mxu0 0
    %577 = vmatpush1.bf16.msra.mxu0 %v549
    %578 = vmatprep.subr.bf16.mxu0 0
    %579 = vmatpush1.bf16.msra.mxu0 %v548
    %580 = vmatprep.subr.bf16.mxu0 0
    %581 = vmatpush2.bf16.msra.mxu0 0
    %582 = vmatprep.subr.bf16.mxu0 0
    %583 = vmatpush2.bf16.msra.mxu0 0
    %584 = vmatprep.subr.bf16.mxu0 0
    %585 = vmatpush2.bf16.msra.mxu0 0
    %586 = vmatprep.subr.bf16.mxu0 0
    %587 = vmatpush2.bf16.msra.mxu0 0
    %588 = vmatprep.subr.bf16.mxu0 0
    %589 = vmatpush2.bf16.msra.mxu0 0
    %590 = vmatprep.subr.bf16.mxu0 0
    %591 = vmatpush2.bf16.msra.mxu0 0
    %592 = vmatprep.subr.bf16.mxu0 0
    %593 = vmatpush2.bf16.msra.mxu0 0
    %594 = vmatprep.subr.bf16.mxu0 0
    %595 = vmatpush2.bf16.msra.mxu0 0
    %596 = vmatprep.mubr.bf16.mxu0 0
    %597 = vmatmul.mubr.bf16.gmra.mxu0 %v161
    %v598 = vpop.f32.mrf.mxu0
    %v599 = vadd.f32 %v514, %v598
    %v600 = vpop.f32.mrf.mxu0
    %v601 = vpop.f32.mrf.mxu0
    %v602 = vadd.f32 %v514, %v601
    %v603 = vpop.f32.mrf.mxu0
    %604 = vdwg.mxu0
    %v605 = vmax.f32 %v599, 0.0
    %v606 = vmax.f32 %v602, 0.0
    %v607 = vrot.slane %v491, 1
    %v608 = vrot.slane %v605, 1
    %v609 = vrot.slane %v492, 1
    %v610 = vrot.slane %v606, 1
    %vm611 = vcmp.lt.s32.totalorder %v88, 7
    %v612 = vsel %vm611, %v607, %v609
    %v613 = vsel %vm611, %v608, %v610
    %v614 = vsel %vm611, %v609, %v607
    %v615 = vsel %vm611, %v610, %v608
    %v616 = vpack.c.bf16 %v492, %v491
    %v617 = vpack.c.bf16 %v606, %v605
    %v618 = vld [vmem:[%s7] sm:$0xf]
    %v619 = vld [vmem:[%s7 + $0x4] sm:$0xf]
    %v620 = vld [vmem:[%s7 + $0x8] sm:$0xf]
    %v621 = vld [vmem:[%s7 + $0xc] sm:$0xf]
    %v622 = vld [vmem:[%s7 + $0x10] sm:$0xf]
    %v623 = vld [vmem:[%s7 + $0x14] sm:$0xf]
    %v624 = vld [vmem:[%s7 + $0x18] sm:$0xf]
    %v625 = vld [vmem:[%s7 + $0x1c] sm:$0xf]
    %v626 = vld [vmem:[%s7 + $0x20] sm:$0xf]
    %v627 = vld [vmem:[%s7 + $0x24] sm:$0xf]
    %v628 = vld [vmem:[%s7 + $0x28] sm:$0xf]
    %v629 = vld [vmem:[%s7 + $0x2c] sm:$0xf]
    %v630 = vld [vmem:[%s7 + $0x30] sm:$0xf]
    %v631 = vld [vmem:[%s7 + $0x34] sm:$0xf]
    %v632 = vld [vmem:[%s7 + $0x38] sm:$0xf]
    %v633 = vld [vmem:[%s7 + $0x3c] sm:$0xf]
    %v634 = vld [vmem:[%s7 + $0x40] sm:$0xf]
    %v635 = vld [vmem:[%s7 + $0x44] sm:$0xf]
    %v636 = vld [vmem:[%s7 + $0x48] sm:$0xf]
    %v637 = vld [vmem:[%s7 + $0x4c] sm:$0xf]
    %v638 = vld [vmem:[%s7 + $0x50] sm:$0xf]
    %v639 = vld [vmem:[%s7 + $0x54] sm:$0xf]
    %v640 = vld [vmem:[%s7 + $0x58] sm:$0xf]
    %v641 = vld [vmem:[%s7 + $0x5c] sm:$0xf]
    %v642 = vld [vmem:[%s7 + $0x60] sm:$0xf]
    %v643 = vld [vmem:[%s7 + $0x64] sm:$0xf]
    %v644 = vld [vmem:[%s7 + $0x68] sm:$0xf]
    %v645 = vld [vmem:[%s7 + $0x6c] sm:$0xf]
    %v646 = vld [vmem:[%s7 + $0x70] sm:$0xf]
    %v647 = vld [vmem:[%s7 + $0x74] sm:$0xf]
    %v648 = vld [vmem:[%s7 + $0x78] sm:$0xf]
    %v649 = vld [vmem:[%s7 + $0x7c] sm:$0xf]
    %v650 = vpack.c.bf16 %v614, %v612
    %v651 = vpack.c.bf16 %v615, %v613
    %v652 = vld [vmem:[%s8] sm:$0xf]
    %v653 = vld [vmem:[%s8 + $0x4] sm:$0xf]
    %v654 = vld [vmem:[%s8 + $0x8] sm:$0xf]
    %v655 = vld [vmem:[%s8 + $0xc] sm:$0xf]
    %v656 = vld [vmem:[%s8 + $0x10] sm:$0xf]
    %v657 = vld [vmem:[%s8 + $0x14] sm:$0xf]
    %v658 = vld [vmem:[%s8 + $0x18] sm:$0xf]
    %v659 = vld [vmem:[%s8 + $0x1c] sm:$0xf]
    %v660 = vld [vmem:[%s8 + $0x20] sm:$0xf]
    %v661 = vld [vmem:[%s8 + $0x24] sm:$0xf]
    %v662 = vld [vmem:[%s8 + $0x28] sm:$0xf]
    %v663 = vld [vmem:[%s8 + $0x2c] sm:$0xf]
    %v664 = vld [vmem:[%s8 + $0x30] sm:$0xf]
    %v665 = vld [vmem:[%s8 + $0x34] sm:$0xf]
    %v666 = vld [vmem:[%s8 + $0x38] sm:$0xf]
    %v667 = vld [vmem:[%s8 + $0x3c] sm:$0xf]
    %v668 = vld [vmem:[%s8 + $0x40] sm:$0xf]
    %v669 = vld [vmem:[%s8 + $0x44] sm:$0xf]
    %v670 = vld [vmem:[%s8 + $0x48] sm:$0xf]
    %v671 = vld [vmem:[%s8 + $0x4c] sm:$0xf]
    %v672 = vld [vmem:[%s8 + $0x50] sm:$0xf]
    %v673 = vld [vmem:[%s8 + $0x54] sm:$0xf]
    %v674 = vld [vmem:[%s8 + $0x58] sm:$0xf]
    %v675 = vld [vmem:[%s8 + $0x5c] sm:$0xf]
    %v676 = vld [vmem:[%s8 + $0x60] sm:$0xf]
    %v677 = vld [vmem:[%s8 + $0x64] sm:$0xf]
    %v678 = vld [vmem:[%s8 + $0x68] sm:$0xf]
    %v679 = vld [vmem:[%s8 + $0x6c] sm:$0xf]
    %v680 = vld [vmem:[%s8 + $0x70] sm:$0xf]
    %v681 = vld [vmem:[%s8 + $0x74] sm:$0xf]
    %v682 = vld [vmem:[%s8 + $0x78] sm:$0xf]
    %v683 = vld [vmem:[%s8 + $0x7c] sm:$0xf]
    %v716 = vunpack.c.l.b16 %v652
    %v717 = vunpack.c.l.b16 %v653
    %v718 = vunpack.c.l.b16 %v654
    %v719 = vunpack.c.l.b16 %v655
    %v720 = vunpack.c.l.b16 %v656
    %v721 = vunpack.c.l.b16 %v657
    %v722 = vunpack.c.l.b16 %v658
    %v723 = vunpack.c.l.b16 %v659
    %v724 = vunpack.c.l.b16 %v660
    %v725 = vunpack.c.l.b16 %v661
    %v726 = vunpack.c.l.b16 %v662
    %v727 = vunpack.c.l.b16 %v663
    %v728 = vunpack.c.l.b16 %v664
    %v729 = vunpack.c.l.b16 %v665
    %v730 = vunpack.c.l.b16 %v666
    %v731 = vunpack.c.l.b16 %v667
    %v732 = vunpack.c.l.b16 %v668
    %v733 = vunpack.c.l.b16 %v669
    %v734 = vunpack.c.l.b16 %v670
    %v735 = vunpack.c.l.b16 %v671
    %v736 = vunpack.c.l.b16 %v672
    %v737 = vunpack.c.l.b16 %v673
    %v738 = vunpack.c.l.b16 %v674
    %v739 = vunpack.c.l.b16 %v675
    %v740 = vunpack.c.l.b16 %v676
    %v741 = vunpack.c.l.b16 %v677
    %v742 = vunpack.c.l.b16 %v678
    %v743 = vunpack.c.l.b16 %v679
    %v744 = vunpack.c.l.b16 %v680
    %v745 = vunpack.c.l.b16 %v681
    %v746 = vunpack.c.l.b16 %v682
    %v747 = vunpack.c.l.b16 %v683
    %v748 = vpack.c.b16 %v717, %v716
    %v749 = vpack.c.b16 %v719, %v718
    %v750 = vpack.c.b16 %v721, %v720
    %v751 = vpack.c.b16 %v723, %v722
    %v752 = vpack.c.b16 %v725, %v724
    %v753 = vpack.c.b16 %v727, %v726
    %v754 = vpack.c.b16 %v729, %v728
    %v755 = vpack.c.b16 %v731, %v730
    %v756 = vpack.c.b16 %v733, %v732
    %v757 = vpack.c.b16 %v735, %v734
    %v758 = vpack.c.b16 %v737, %v736
    %v759 = vpack.c.b16 %v739, %v738
    %v760 = vpack.c.b16 %v741, %v740
    %v761 = vpack.c.b16 %v743, %v742
    %v762 = vpack.c.b16 %v745, %v744
    %v763 = vpack.c.b16 %v747, %v746
    %780 = vmatprep.subr.bf16.mxu0 0
    %781 = vmatpush1.bf16.msra.mxu0 %v755
    %782 = vmatprep.subr.bf16.mxu0 0
    %783 = vmatpush1.bf16.msra.mxu0 %v754
    %784 = vmatprep.subr.bf16.mxu0 0
    %785 = vmatpush1.bf16.msra.mxu0 %v753
    %786 = vmatprep.subr.bf16.mxu0 0
    %787 = vmatpush1.bf16.msra.mxu0 %v752
    %788 = vmatprep.subr.bf16.mxu0 0
    %789 = vmatpush1.bf16.msra.mxu0 %v751
    %790 = vmatprep.subr.bf16.mxu0 0
    %791 = vmatpush1.bf16.msra.mxu0 %v750
    %792 = vmatprep.subr.bf16.mxu0 0
    %793 = vmatpush1.bf16.msra.mxu0 %v749
    %794 = vmatprep.subr.bf16.mxu0 0
    %795 = vmatpush1.bf16.msra.mxu0 %v748
    %796 = vmatprep.subr.bf16.mxu0 0
    %797 = vmatpush2.bf16.msra.mxu0 %v763
    %798 = vmatprep.subr.bf16.mxu0 0
    %799 = vmatpush2.bf16.msra.mxu0 %v762
    %800 = vmatprep.subr.bf16.mxu0 0
    %801 = vmatpush2.bf16.msra.mxu0 %v761
    %802 = vmatprep.subr.bf16.mxu0 0
    %803 = vmatpush2.bf16.msra.mxu0 %v760
    %804 = vmatprep.subr.bf16.mxu0 0
    %805 = vmatpush2.bf16.msra.mxu0 %v759
    %806 = vmatprep.subr.bf16.mxu0 0
    %807 = vmatpush2.bf16.msra.mxu0 %v758
    %808 = vmatprep.subr.bf16.mxu0 0
    %809 = vmatpush2.bf16.msra.mxu0 %v757
    %810 = vmatprep.subr.bf16.mxu0 0
    %811 = vmatpush2.bf16.msra.mxu0 %v756
    %812 = vmatprep.mubr.bf16.mxu0 %v651
    %813 = vmatmul.mubr.bf16.gmra.mxu0 %v650
    %v814 = vpop.f32.mrf.mxu0
    %v815 = vadd.f32 0.0, %v814
    %v816 = vpop.f32.mrf.mxu0
    %v817 = vpop.f32.mrf.mxu0
    %v818 = vadd.f32 0.0, %v817
    %v819 = vpop.f32.mrf.mxu0
    %820 = vdwg.mxu0
    %v853 = vunpack.c.l.b16 %v618
    %v854 = vunpack.c.l.b16 %v619
    %v855 = vunpack.c.l.b16 %v620
    %v856 = vunpack.c.l.b16 %v621
    %v857 = vunpack.c.l.b16 %v622
    %v858 = vunpack.c.l.b16 %v623
    %v859 = vunpack.c.l.b16 %v624
    %v860 = vunpack.c.l.b16 %v625
    %v861 = vunpack.c.l.b16 %v626
    %v862 = vunpack.c.l.b16 %v627
    %v863 = vunpack.c.l.b16 %v628
    %v864 = vunpack.c.l.b16 %v629
    %v865 = vunpack.c.l.b16 %v630
    %v866 = vunpack.c.l.b16 %v631
    %v867 = vunpack.c.l.b16 %v632
    %v868 = vunpack.c.l.b16 %v633
    %v869 = vunpack.c.l.b16 %v634
    %v870 = vunpack.c.l.b16 %v635
    %v871 = vunpack.c.l.b16 %v636
    %v872 = vunpack.c.l.b16 %v637
    %v873 = vunpack.c.l.b16 %v638
    %v874 = vunpack.c.l.b16 %v639
    %v875 = vunpack.c.l.b16 %v640
    %v876 = vunpack.c.l.b16 %v641
    %v877 = vunpack.c.l.b16 %v642
    %v878 = vunpack.c.l.b16 %v643
    %v879 = vunpack.c.l.b16 %v644
    %v880 = vunpack.c.l.b16 %v645
    %v881 = vunpack.c.l.b16 %v646
    %v882 = vunpack.c.l.b16 %v647
    %v883 = vunpack.c.l.b16 %v648
    %v884 = vunpack.c.l.b16 %v649
    %v885 = vpack.c.b16 %v854, %v853
    %v886 = vpack.c.b16 %v856, %v855
    %v887 = vpack.c.b16 %v858, %v857
    %v888 = vpack.c.b16 %v860, %v859
    %v889 = vpack.c.b16 %v862, %v861
    %v890 = vpack.c.b16 %v864, %v863
    %v891 = vpack.c.b16 %v866, %v865
    %v892 = vpack.c.b16 %v868, %v867
    %v893 = vpack.c.b16 %v870, %v869
    %v894 = vpack.c.b16 %v872, %v871
    %v895 = vpack.c.b16 %v874, %v873
    %v896 = vpack.c.b16 %v876, %v875
    %v897 = vpack.c.b16 %v878, %v877
    %v898 = vpack.c.b16 %v880, %v879
    %v899 = vpack.c.b16 %v882, %v881
    %v900 = vpack.c.b16 %v884, %v883
    %917 = vmatprep.subr.bf16.mxu0 0
    %918 = vmatpush1.bf16.msra.mxu0 %v892
    %919 = vmatprep.subr.bf16.mxu0 0
    %920 = vmatpush1.bf16.msra.mxu0 %v891
    %921 = vmatprep.subr.bf16.mxu0 0
    %922 = vmatpush1.bf16.msra.mxu0 %v890
    %923 = vmatprep.subr.bf16.mxu0 0
    %924 = vmatpush1.bf16.msra.mxu0 %v889
    %925 = vmatprep.subr.bf16.mxu0 0
    %926 = vmatpush1.bf16.msra.mxu0 %v888
    %927 = vmatprep.subr.bf16.mxu0 0
    %928 = vmatpush1.bf16.msra.mxu0 %v887
    %929 = vmatprep.subr.bf16.mxu0 0
    %930 = vmatpush1.bf16.msra.mxu0 %v886
    %931 = vmatprep.subr.bf16.mxu0 0
    %932 = vmatpush1.bf16.msra.mxu0 %v885
    %933 = vmatprep.subr.bf16.mxu0 0
    %934 = vmatpush2.bf16.msra.mxu0 %v900
    %935 = vmatprep.subr.bf16.mxu0 0
    %936 = vmatpush2.bf16.msra.mxu0 %v899
    %937 = vmatprep.subr.bf16.mxu0 0
    %938 = vmatpush2.bf16.msra.mxu0 %v898
    %939 = vmatprep.subr.bf16.mxu0 0
    %940 = vmatpush2.bf16.msra.mxu0 %v897
    %941 = vmatprep.subr.bf16.mxu0 0
    %942 = vmatpush2.bf16.msra.mxu0 %v896
    %943 = vmatprep.subr.bf16.mxu0 0
    %944 = vmatpush2.bf16.msra.mxu0 %v895
    %945 = vmatprep.subr.bf16.mxu0 0
    %946 = vmatpush2.bf16.msra.mxu0 %v894
    %947 = vmatprep.subr.bf16.mxu0 0
    %948 = vmatpush2.bf16.msra.mxu0 %v893
    %949 = vmatprep.mubr.bf16.mxu0 %v617
    %950 = vmatmul.mubr.bf16.gmra.mxu0 %v616
    %v951 = vpop.f32.mrf.mxu0
    %v952 = vadd.f32 %v815, %v951
    %v953 = vpop.f32.mrf.mxu0
    %v954 = vpop.f32.mrf.mxu0
    %v955 = vadd.f32 %v818, %v954
    %v956 = vpop.f32.mrf.mxu0
    %957 = vdwg.mxu0
    %v958 = vld [vmem:[#allocation8] sm:$0x1]
    %v960 = vlaneseq
    %v961 = vshrl.u32 %v960, 7
    %v962 = vsub.s32 0, %v961
    %v963 = vrot.slane %v958, %v962
    %v965 = vadd.f32 %v952, %v963
    %v966 = vadd.f32 %v955, %v963
    %967 = vst [vmem:[#allocation2] sm:$0xff] %v965
    %968 = vst [vmem:[#allocation2 + $0x8] sm:$0xff] %v966
    %v969 = vld [vmem:[#allocation2] ss:$2 sm:$0xff]
    %970 = vst [vmem:[%s10] sm:$0xff] %v969
    // Predicated region
    $region58: #{forward.8} parent=1 // pred_check
      _
    $region59: #{forward.8} parent=1 // pred_check_branch
      %972 = sbr.rel (0) target = $region61
    $region60: #{forward.8} parent=1 // pred_region
      _
    $region61: #{forward.8} parent=1 // pred_fallthru
      _
    // Predicated region
    $region62: #{forward.8} parent=1 // pred_check
      _
    $region63: #{forward.8} parent=1 // pred_check_branch
      %974 = sbr.rel (0) target = $region65
    $region64: #{forward.8} parent=1 // pred_region
      _
    $region65: #{forward.8} parent=1 // pred_fallthru
      _
    %975 = vsyncpa [#allocation4], 1
    %976 = vsyncpa [#allocation6], 1
    %977 = vsyncpa [#allocation9], 1

// kernel: forward.10
$region0: #{forward.10}
  #allocation0 [shape = 'u32[]', space=smem, size = 0x4, offset = 0x4, fixed_abs, tag = 'smem constant byte address 0x4 - core index']
  #allocation1 [shape = 'u32[144,128]{1,0:T(1,128)}', space=vmem, size = 0x12000, scoped, tag = 'internal scratch']
  #allocation2 [shape = 'f32[8,128]{1,0:T(8,128)}', space=vmem, size = 0x1000, scoped, tag = 'scratch operand']
  %s0 = inlined_call_operand.vmem [shape: f32[4,8,384], index: 0, kind: input, shape index: {}]
  %s1 = inlined_call_operand.vmem [shape: bf16[128,384], index: 1, kind: input, shape index: {}]
  %s2 = inlined_call_operand.vmem [shape: f32[1,128], index: 2, kind: input, shape index: {}]
  %s3 = inlined_call_operand.vmem [shape: f32[4,8,128], index: 3, kind: output, shape index: {}]
  %s4 = sld [smem:[#allocation0]]
  $region26: #{forward.10} parent=0
    _
  %s6 = ssub.s32 1, %s4
  %s7 = scalar_select 0, %s6, %s4
  // Predicated region
  $region2: #{forward.10} parent=0 // pred_check
    _
  $region3: #{forward.10} parent=0 // pred_check_branch
    %9 = sbr.rel (0) target = $region5
  $region4: #{forward.10} parent=0 // pred_region
    _
  $region5: #{forward.10} parent=0 // pred_fallthru
    _
  // Predicated region
  $region6: #{forward.10} parent=0 // pred_check
    _
  $region7: #{forward.10} parent=0 // pred_check_branch
    %11 = sbr.rel (0) target = $region9
  $region8: #{forward.10} parent=0 // pred_region
    _
  $region9: #{forward.10} parent=0 // pred_fallthru
    _
  // Predicated region
  $region10: #{forward.10} parent=0 // pred_check
    _
  $region11: #{forward.10} parent=0 // pred_check_branch
    %13 = sbr.rel (0) target = $region13
  $region12: #{forward.10} parent=0 // pred_region
    _
  $region13: #{forward.10} parent=0 // pred_fallthru
    _
  %p15 = scmp.eq.s32.totalorder 0, 0
  // Predicated region
  $region14: #{forward.10} parent=0 // pred_check
    %p16 = pneg %p15
  $region15: #{forward.10} parent=0 // pred_check_branch
    %18 = sbr.rel (%p16) target = $region17
  $region16: #{forward.10} parent=0 // pred_region
    %19 = vst [vmem:[#allocation2] sm:$0xff] 0.0
  $region17: #{forward.10} parent=0 // pred_fallthru
    _
  %v20 = vld [vmem:[%s1] sm:$0xff]
  %v21 = vld [vmem:[%s1 + $0x8] sm:$0xf]
  %v22 = vld [vmem:[%s1 + $0xc] sm:$0xff]
  %v23 = vld [vmem:[%s1 + $0x14] sm:$0xf]
  %v24 = vld [vmem:[%s1 + $0x18] sm:$0xff]
  %v25 = vld [vmem:[%s1 + $0x20] sm:$0xf]
  %v26 = vld [vmem:[%s1 + $0x24] sm:$0xff]
  %v27 = vld [vmem:[%s1 + $0x2c] sm:$0xf]
  %v28 = vld [vmem:[%s1 + $0x30] sm:$0xff]
  %v29 = vld [vmem:[%s1 + $0x38] sm:$0xf]
  %v30 = vld [vmem:[%s1 + $0x3c] sm:$0xff]
  %v31 = vld [vmem:[%s1 + $0x44] sm:$0xf]
  %v32 = vld [vmem:[%s1 + $0x48] sm:$0xff]
  %v33 = vld [vmem:[%s1 + $0x50] sm:$0xf]
  %v34 = vld [vmem:[%s1 + $0x54] sm:$0xff]
  %v35 = vld [vmem:[%s1 + $0x5c] sm:$0xf]
  %v36 = vld [vmem:[%s1 + $0x60] sm:$0xff]
  %v37 = vld [vmem:[%s1 + $0x68] sm:$0xf]
  %v38 = vld [vmem:[%s1 + $0x6c] sm:$0xff]
  %v39 = vld [vmem:[%s1 + $0x74] sm:$0xf]
  %v40 = vld [vmem:[%s1 + $0x78] sm:$0xff]
  %v41 = vld [vmem:[%s1 + $0x80] sm:$0xf]
  %v42 = vld [vmem:[%s1 + $0x84] sm:$0xff]
  %v43 = vld [vmem:[%s1 + $0x8c] sm:$0xf]
  %v44 = vld [vmem:[%s1 + $0x90] sm:$0xff]
  %v45 = vld [vmem:[%s1 + $0x98] sm:$0xf]
  %v46 = vld [vmem:[%s1 + $0x9c] sm:$0xff]
  %v47 = vld [vmem:[%s1 + $0xa4] sm:$0xf]
  %v48 = vld [vmem:[%s1 + $0xa8] sm:$0xff]
  %v49 = vld [vmem:[%s1 + $0xb0] sm:$0xf]
  %v50 = vld [vmem:[%s1 + $0xb4] sm:$0xff]
  %v51 = vld [vmem:[%s1 + $0xbc] sm:$0xf]
  %v52 = vld [vmem:[%s2] sm:$0x1]
  %v53 = vld [vmem:[#allocation2] sm:$0xff]
  %v54 = vld [vmem:[%s0] sm:$0xff]
  %v55 = vld [vmem:[%s0 + $0x8] sm:$0xff]
  %v56 = vld [vmem:[%s0 + $0x10] sm:$0xff]
  %v57 = vpack.c.bf16 %v53, %v53
  %v90 = vunpack.c.l.b16 %v20
  %v91 = vunpack.c.h.b16 %v20
  %v92 = vunpack.c.l.b16 %v21
  %v93 = vunpack.c.l.b16 %v22
  %v94 = vunpack.c.h.b16 %v22
  %v95 = vunpack.c.l.b16 %v23
  %v96 = vunpack.c.l.b16 %v24
  %v97 = vunpack.c.h.b16 %v24
  %v98 = vunpack.c.l.b16 %v25
  %v99 = vunpack.c.l.b16 %v26
  %v100 = vunpack.c.h.b16 %v26
  %v101 = vunpack.c.l.b16 %v27
  %v102 = vunpack.c.l.b16 %v28
  %v103 = vunpack.c.h.b16 %v28
  %v104 = vunpack.c.l.b16 %v29
  %v105 = vunpack.c.l.b16 %v30
  %v106 = vunpack.c.h.b16 %v30
  %v107 = vunpack.c.l.b16 %v31
  %v108 = vunpack.c.l.b16 %v32
  %v109 = vunpack.c.h.b16 %v32
  %v110 = vunpack.c.l.b16 %v33
  %v111 = vunpack.c.l.b16 %v34
  %v112 = vunpack.c.h.b16 %v34
  %v113 = vunpack.c.l.b16 %v35
  %v114 = vunpack.c.l.b16 %v36
  %v115 = vunpack.c.h.b16 %v36
  %v116 = vunpack.c.l.b16 %v37
  %v117 = vunpack.c.l.b16 %v38
  %v118 = vunpack.c.h.b16 %v38
  %v119 = vunpack.c.l.b16 %v39
  %v120 = vunpack.c.l.b16 %v40
  %v121 = vunpack.c.h.b16 %v40
  %v122 = vunpack.c.l.b16 %v41
  %v123 = vunpack.c.l.b16 %v42
  %v124 = vunpack.c.h.b16 %v42
  %v125 = vunpack.c.l.b16 %v43
  %v126 = vunpack.c.l.b16 %v44
  %v127 = vunpack.c.h.b16 %v44
  %v128 = vunpack.c.l.b16 %v45
  %v129 = vunpack.c.l.b16 %v46
  %v130 = vunpack.c.h.b16 %v46
  %v131 = vunpack.c.l.b16 %v47
  %v132 = vunpack.c.l.b16 %v48
  %v133 = vunpack.c.h.b16 %v48
  %v134 = vunpack.c.l.b16 %v49
  %v135 = vunpack.c.l.b16 %v50
  %v136 = vunpack.c.h.b16 %v50
  %v137 = vunpack.c.l.b16 %v51
  %v138 = vpack.c.b16 %v93, %v90
  %v139 = vpack.c.b16 %v94, %v91
  %v140 = vpack.c.b16 %v95, %v92
  %v141 = vpack.c.b16 %v99, %v96
  %v142 = vpack.c.b16 %v100, %v97
  %v143 = vpack.c.b16 %v101, %v98
  %v144 = vpack.c.b16 %v105, %v102
  %v145 = vpack.c.b16 %v106, %v103
  %v146 = vpack.c.b16 %v107, %v104
  %v147 = vpack.c.b16 %v111, %v108
  %v148 = vpack.c.b16 %v112, %v109
  %v149 = vpack.c.b16 %v113, %v110
  %v150 = vpack.c.b16 %v117, %v114
  %v151 = vpack.c.b16 %v118, %v115
  %v152 = vpack.c.b16 %v119, %v116
  %v153 = vpack.c.b16 %v123, %v120
  %v154 = vpack.c.b16 %v124, %v121
  %v155 = vpack.c.b16 %v125, %v122
  %v156 = vpack.c.b16 %v129, %v126
  %v157 = vpack.c.b16 %v130, %v127
  %v158 = vpack.c.b16 %v131, %v128
  %v159 = vpack.c.b16 %v135, %v132
  %v160 = vpack.c.b16 %v136, %v133
  %v161 = vpack.c.b16 %v137, %v134
  %186 = vmatprep.subr.bf16.mxu0 %v160
  %187 = vmatpush1.bf16.msra.mxu0 %v159
  %188 = vmatprep.subr.bf16.mxu0 %v157
  %189 = vmatpush1.bf16.msra.mxu0 %v156
  %190 = vmatprep.subr.bf16.mxu0 %v154
  %191 = vmatpush1.bf16.msra.mxu0 %v153
  %192 = vmatprep.subr.bf16.mxu0 %v151
  %193 = vmatpush1.bf16.msra.mxu0 %v150
  %194 = vmatprep.subr.bf16.mxu0 %v148
  %195 = vmatpush1.bf16.msra.mxu0 %v147
  %196 = vmatprep.subr.bf16.mxu0 %v145
  %197 = vmatpush1.bf16.msra.mxu0 %v144
  %198 = vmatprep.subr.bf16.mxu0 %v142
  %199 = vmatpush1.bf16.msra.mxu0 %v141
  %200 = vmatprep.subr.bf16.mxu0 %v139
  %201 = vmatpush1.bf16.msra.mxu0 %v138
  %202 = vmatprep.subr.bf16.mxu0 0
  %203 = vmatpush2.bf16.msra.mxu0 0
  %204 = vmatprep.subr.bf16.mxu0 0
  %205 = vmatpush2.bf16.msra.mxu0 0
  %206 = vmatprep.subr.bf16.mxu0 0
  %207 = vmatpush2.bf16.msra.mxu0 0
  %208 = vmatprep.subr.bf16.mxu0 0
  %209 = vmatpush2.bf16.msra.mxu0 0
  %210 = vmatprep.subr.bf16.mxu0 0
  %211 = vmatpush2.bf16.msra.mxu0 0
  %212 = vmatprep.subr.bf16.mxu0 0
  %213 = vmatpush2.bf16.msra.mxu0 0
  %214 = vmatprep.subr.bf16.mxu0 0
  %215 = vmatpush2.bf16.msra.mxu0 0
  %216 = vmatprep.subr.bf16.mxu0 0
  %217 = vmatpush2.bf16.msra.mxu0 0
  %218 = vmatprep.mubr.bf16.mxu0 0
  %219 = vmatmul.mubr.bf16.gmra.mxu0 %v57
  %v220 = vpop.f32.mrf.mxu0
  %v221 = vadd.f32 0.0, %v220
  %v222 = vpop.f32.mrf.mxu0
  %v223 = vadd.f32 0.0, %v222
  %v224 = vpop.f32.mrf.mxu0
  %v225 = vpop.f32.mrf.mxu0
  %226 = vdwg.mxu0
  %227 = vmatprep.subr.bf16.mxu0 0
  %228 = vmatpush1.bf16.msra.mxu0 %v161
  %229 = vmatprep.subr.bf16.mxu0 0
  %230 = vmatpush1.bf16.msra.mxu0 %v158
  %231 = vmatprep.subr.bf16.mxu0 0
  %232 = vmatpush1.bf16.msra.mxu0 %v155
  %233 = vmatprep.subr.bf16.mxu0 0
  %234 = vmatpush1.bf16.msra.mxu0 %v152
  %235 = vmatprep.subr.bf16.mxu0 0
  %236 = vmatpush1.bf16.msra.mxu0 %v149
  %237 = vmatprep.subr.bf16.mxu0 0
  %238 = vmatpush1.bf16.msra.mxu0 %v146
  %239 = vmatprep.subr.bf16.mxu0 0
  %240 = vmatpush1.bf16.msra.mxu0 %v143
  %241 = vmatprep.subr.bf16.mxu0 0
  %242 = vmatpush1.bf16.msra.mxu0 %v140
  %243 = vmatprep.subr.bf16.mxu0 0
  %244 = vmatpush2.bf16.msra.mxu0 0
  %245 = vmatprep.subr.bf16.mxu0 0
  %246 = vmatpush2.bf16.msra.mxu0 0
  %247 = vmatprep.subr.bf16.mxu0 0
  %248 = vmatpush2.bf16.msra.mxu0 0
  %249 = vmatprep.subr.bf16.mxu0 0
  %250 = vmatpush2.bf16.msra.mxu0 0
  %251 = vmatprep.subr.bf16.mxu0 0
  %252 = vmatpush2.bf16.msra.mxu0 0
  %253 = vmatprep.subr.bf16.mxu0 0
  %254 = vmatpush2.bf16.msra.mxu0 0
  %255 = vmatprep.subr.bf16.mxu0 0
  %256 = vmatpush2.bf16.msra.mxu0 0
  %257 = vmatprep.subr.bf16.mxu0 0
  %258 = vmatpush2.bf16.msra.mxu0 0
  %259 = vmatprep.mubr.bf16.mxu0 0
  %260 = vmatmul.mubr.bf16.gmra.mxu0 %v57
  %v261 = vpop.f32.mrf.mxu0
  %v262 = vadd.f32 0.0, %v261
  %v263 = vpop.f32.mrf.mxu0
  %v264 = vpop.f32.mrf.mxu0
  %v265 = vpop.f32.mrf.mxu0
  %266 = vdwg.mxu0
  %v267 = vadd.f32 %v54, %v221
  %v268 = vxor.u32 %v267, 2147483648
  %v269 = vmul.f32 %v268, 1.442695
  %v270 = vpow.pop %v269
  %v271 = vadd.f32 %v270, 1.0
  %v272 = vrcp.pop %v271
  %v273 = vmul.f32 1.0, %v272
  %v274 = vadd.f32 %v55, %v223
  %v275 = vxor.u32 %v274, 2147483648
  %v276 = vmul.f32 %v275, 1.442695
  %v277 = vpow.pop %v276
  %v278 = vadd.f32 %v277, 1.0
  %v279 = vrcp.pop %v278
  %v280 = vmul.f32 1.0, %v279
  %v282 = vlaneseq
  %v283 = vshrl.u32 %v282, 7
  %v284 = vsub.s32 0, %v283
  %v285 = vrot.slane %v52, %v284
  %v287 = vadd.f32 %v262, %v285
  %v288 = vmul.f32 %v273, %v287
  %v289 = vadd.f32 %v56, %v288
  %v290 = vtanh.pop %v289
  %v291 = vsub.f32 1.0, %v280
  %v292 = vmul.f32 %v291, %v290
  %v293 = vmul.f32 %v280, %v53
  %v294 = vadd.f32 %v292, %v293
  %295 = vst [vmem:[%s3] sm:$0xff] %v294
  %s296 = scalar_lea.vmem %s0, 24
  %v297 = vld [vmem:[%s296] sm:$0xff]
  %v298 = vld [vmem:[%s296 + $0x8] sm:$0xff]
  %v299 = vld [vmem:[%s296 + $0x10] sm:$0xff]
  %v300 = vpack.c.bf16 %v294, %v294
  %301 = vmatprep.subr.bf16.mxu0 %v160
  %302 = vmatpush1.bf16.msra.mxu0 %v159
  %303 = vmatprep.subr.bf16.mxu0 %v157
  %304 = vmatpush1.bf16.msra.mxu0 %v156
  %305 = vmatprep.subr.bf16.mxu0 %v154
  %306 = vmatpush1.bf16.msra.mxu0 %v153
  %307 = vmatprep.subr.bf16.mxu0 %v151
  %308 = vmatpush1.bf16.msra.mxu0 %v150
  %309 = vmatprep.subr.bf16.mxu0 %v148
  %310 = vmatpush1.bf16.msra.mxu0 %v147
  %311 = vmatprep.subr.bf16.mxu0 %v145
  %312 = vmatpush1.bf16.msra.mxu0 %v144
  %313 = vmatprep.subr.bf16.mxu0 %v142
  %314 = vmatpush1.bf16.msra.mxu0 %v141
  %315 = vmatprep.subr.bf16.mxu0 %v139
  %316 = vmatpush1.bf16.msra.mxu0 %v138
  %317 = vmatprep.subr.bf16.mxu0 0
  %318 = vmatpush2.bf16.msra.mxu0 0
  %319 = vmatprep.subr.bf16.mxu0 0
  %320 = vmatpush2.bf16.msra.mxu0 0
  %321 = vmatprep.subr.bf16.mxu0 0
  %322 = vmatpush2.bf16.msra.mxu0 0
  %323 = vmatprep.subr.bf16.mxu0 0
  %324 = vmatpush2.bf16.msra.mxu0 0
  %325 = vmatprep.subr.bf16.mxu0 0
  %326 = vmatpush2.bf16.msra.mxu0 0
  %327 = vmatprep.subr.bf16.mxu0 0
  %328 = vmatpush2.bf16.msra.mxu0 0
  %329 = vmatprep.subr.bf16.mxu0 0
  %330 = vmatpush2.bf16.msra.mxu0 0
  %331 = vmatprep.subr.bf16.mxu0 0
  %332 = vmatpush2.bf16.msra.mxu0 0
  %333 = vmatprep.mubr.bf16.mxu0 0
  %334 = vmatmul.mubr.bf16.gmra.mxu0 %v300
  %v335 = vpop.f32.mrf.mxu0
  %v336 = vadd.f32 0.0, %v335
  %v337 = vpop.f32.mrf.mxu0
  %v338 = vadd.f32 0.0, %v337
  %v339 = vpop.f32.mrf.mxu0
  %v340 = vpop.f32.mrf.mxu0
  %341 = vdwg.mxu0
  %342 = vmatprep.subr.bf16.mxu0 0
  %343 = vmatpush1.bf16.msra.mxu0 %v161
  %344 = vmatprep.subr.bf16.mxu0 0
  %345 = vmatpush1.bf16.msra.mxu0 %v158
  %346 = vmatprep.subr.bf16.mxu0 0
  %347 = vmatpush1.bf16.msra.mxu0 %v155
  %348 = vmatprep.subr.bf16.mxu0 0
  %349 = vmatpush1.bf16.msra.mxu0 %v152
  %350 = vmatprep.subr.bf16.mxu0 0
  %351 = vmatpush1.bf16.msra.mxu0 %v149
  %352 = vmatprep.subr.bf16.mxu0 0
  %353 = vmatpush1.bf16.msra.mxu0 %v146
  %354 = vmatprep.subr.bf16.mxu0 0
  %355 = vmatpush1.bf16.msra.mxu0 %v143
  %356 = vmatprep.subr.bf16.mxu0 0
  %357 = vmatpush1.bf16.msra.mxu0 %v140
  %358 = vmatprep.subr.bf16.mxu0 0
  %359 = vmatpush2.bf16.msra.mxu0 0
  %360 = vmatprep.subr.bf16.mxu0 0
  %361 = vmatpush2.bf16.msra.mxu0 0
  %362 = vmatprep.subr.bf16.mxu0 0
  %363 = vmatpush2.bf16.msra.mxu0 0
  %364 = vmatprep.subr.bf16.mxu0 0
  %365 = vmatpush2.bf16.msra.mxu0 0
  %366 = vmatprep.subr.bf16.mxu0 0
  %367 = vmatpush2.bf16.msra.mxu0 0
  %368 = vmatprep.subr.bf16.mxu0 0
  %369 = vmatpush2.bf16.msra.mxu0 0
  %370 = vmatprep.subr.bf16.mxu0 0
  %371 = vmatpush2.bf16.msra.mxu0 0
  %372 = vmatprep.subr.bf16.mxu0 0
  %373 = vmatpush2.bf16.msra.mxu0 0
  %374 = vmatprep.mubr.bf16.mxu0 0
  %375 = vmatmul.mubr.bf16.gmra.mxu0 %v300
  %v376 = vpop.f32.mrf.mxu0
  %v377 = vadd.f32 0.0, %v376
  %v378 = vpop.f32.mrf.mxu0
  %v379 = vpop.f32.mrf.mxu0
  %v380 = vpop.f32.mrf.mxu0
  %381 = vdwg.mxu0
  %v382 = vadd.f32 %v297, %v336
  %v383 = vxor.u32 %v382, 2147483648
  %v384 = vmul.f32 %v383, 1.442695
  %v385 = vpow.pop %v384
  %v386 = vadd.f32 %v385, 1.0
  %v387 = vrcp.pop %v386
  %v388 = vmul.f32 1.0, %v387
  %v389 = vadd.f32 %v298, %v338
  %v390 = vxor.u32 %v389, 2147483648
  %v391 = vmul.f32 %v390, 1.442695
  %v392 = vpow.pop %v391
  %v393 = vadd.f32 %v392, 1.0
  %v394 = vrcp.pop %v393
  %v395 = vmul.f32 1.0, %v394
  %v396 = vadd.f32 %v377, %v285
  %v397 = vmul.f32 %v388, %v396
  %v398 = vadd.f32 %v299, %v397
  %v399 = vtanh.pop %v398
  %v400 = vsub.f32 1.0, %v395
  %v401 = vmul.f32 %v400, %v399
  %v402 = vmul.f32 %v395, %v294
  %v403 = vadd.f32 %v401, %v402
  %s404 = scalar_lea.vmem %s3, 8
  %405 = vst [vmem:[%s404] sm:$0xff] %v403
  %s406 = scalar_lea.vmem %s0, 48
  %v407 = vld [vmem:[%s406] sm:$0xff]
  %v408 = vld [vmem:[%s406 + $0x8] sm:$0xff]
  %v409 = vld [vmem:[%s406 + $0x10] sm:$0xff]
  %v410 = vpack.c.bf16 %v403, %v403
  %411 = vmatprep.subr.bf16.mxu0 %v160
  %412 = vmatpush1.bf16.msra.mxu0 %v159
  %413 = vmatprep.subr.bf16.mxu0 %v157
  %414 = vmatpush1.bf16.msra.mxu0 %v156
  %415 = vmatprep.subr.bf16.mxu0 %v154
  %416 = vmatpush1.bf16.msra.mxu0 %v153
  %417 = vmatprep.subr.bf16.mxu0 %v151
  %418 = vmatpush1.bf16.msra.mxu0 %v150
  %419 = vmatprep.subr.bf16.mxu0 %v148
  %420 = vmatpush1.bf16.msra.mxu0 %v147
  %421 = vmatprep.subr.bf16.mxu0 %v145
  %422 = vmatpush1.bf16.msra.mxu0 %v144
  %423 = vmatprep.subr.bf16.mxu0 %v142
  %424 = vmatpush1.bf16.msra.mxu0 %v141
  %425 = vmatprep.subr.bf16.mxu0 %v139
  %426 = vmatpush1.bf16.msra.mxu0 %v138
  %427 = vmatprep.subr.bf16.mxu0 0
  %428 = vmatpush2.bf16.msra.mxu0 0
  %429 = vmatprep.subr.bf16.mxu0 0
  %430 = vmatpush2.bf16.msra.mxu0 0
  %431 = vmatprep.subr.bf16.mxu0 0
  %432 = vmatpush2.bf16.msra.mxu0 0
  %433 = vmatprep.subr.bf16.mxu0 0
  %434 = vmatpush2.bf16.msra.mxu0 0
  %435 = vmatprep.subr.bf16.mxu0 0
  %436 = vmatpush2.bf16.msra.mxu0 0
  %437 = vmatprep.subr.bf16.mxu0 0
  %438 = vmatpush2.bf16.msra.mxu0 0
  %439 = vmatprep.subr.bf16.mxu0 0
  %440 = vmatpush2.bf16.msra.mxu0 0
  %441 = vmatprep.subr.bf16.mxu0 0
  %442 = vmatpush2.bf16.msra.mxu0 0
  %443 = vmatprep.mubr.bf16.mxu0 0
  %444 = vmatmul.mubr.bf16.gmra.mxu0 %v410
  %v445 = vpop.f32.mrf.mxu0
  %v446 = vadd.f32 0.0, %v445
  %v447 = vpop.f32.mrf.mxu0
  %v448 = vadd.f32 0.0, %v447
  %v449 = vpop.f32.mrf.mxu0
  %v450 = vpop.f32.mrf.mxu0
  %451 = vdwg.mxu0
  %452 = vmatprep.subr.bf16.mxu0 0
  %453 = vmatpush1.bf16.msra.mxu0 %v161
  %454 = vmatprep.subr.bf16.mxu0 0
  %455 = vmatpush1.bf16.msra.mxu0 %v158
  %456 = vmatprep.subr.bf16.mxu0 0
  %457 = vmatpush1.bf16.msra.mxu0 %v155
  %458 = vmatprep.subr.bf16.mxu0 0
  %459 = vmatpush1.bf16.msra.mxu0 %v152
  %460 = vmatprep.subr.bf16.mxu0 0
  %461 = vmatpush1.bf16.msra.mxu0 %v149
  %462 = vmatprep.subr.bf16.mxu0 0
  %463 = vmatpush1.bf16.msra.mxu0 %v146
  %464 = vmatprep.subr.bf16.mxu0 0
  %465 = vmatpush1.bf16.msra.mxu0 %v143
  %466 = vmatprep.subr.bf16.mxu0 0
  %467 = vmatpush1.bf16.msra.mxu0 %v140
  %468 = vmatprep.subr.bf16.mxu0 0
  %469 = vmatpush2.bf16.msra.mxu0 0
  %470 = vmatprep.subr.bf16.mxu0 0
  %471 = vmatpush2.bf16.msra.mxu0 0
  %472 = vmatprep.subr.bf16.mxu0 0
  %473 = vmatpush2.bf16.msra.mxu0 0
  %474 = vmatprep.subr.bf16.mxu0 0
  %475 = vmatpush2.bf16.msra.mxu0 0
  %476 = vmatprep.subr.bf16.mxu0 0
  %477 = vmatpush2.bf16.msra.mxu0 0
  %478 = vmatprep.subr.bf16.mxu0 0
  %479 = vmatpush2.bf16.msra.mxu0 0
  %480 = vmatprep.subr.bf16.mxu0 0
  %481 = vmatpush2.bf16.msra.mxu0 0
  %482 = vmatprep.subr.bf16.mxu0 0
  %483 = vmatpush2.bf16.msra.mxu0 0
  %484 = vmatprep.mubr.bf16.mxu0 0
  %485 = vmatmul.mubr.bf16.gmra.mxu0 %v410
  %v486 = vpop.f32.mrf.mxu0
  %v487 = vadd.f32 0.0, %v486
  %v488 = vpop.f32.mrf.mxu0
  %v489 = vpop.f32.mrf.mxu0
  %v490 = vpop.f32.mrf.mxu0
  %491 = vdwg.mxu0
  %v492 = vadd.f32 %v407, %v446
  %v493 = vxor.u32 %v492, 2147483648
  %v494 = vmul.f32 %v493, 1.442695
  %v495 = vpow.pop %v494
  %v496 = vadd.f32 %v495, 1.0
  %v497 = vrcp.pop %v496
  %v498 = vmul.f32 1.0, %v497
  %v499 = vadd.f32 %v408, %v448
  %v500 = vxor.u32 %v499, 2147483648
  %v501 = vmul.f32 %v500, 1.442695
  %v502 = vpow.pop %v501
  %v503 = vadd.f32 %v502, 1.0
  %v504 = vrcp.pop %v503
  %v505 = vmul.f32 1.0, %v504
  %v506 = vadd.f32 %v487, %v285
  %v507 = vmul.f32 %v498, %v506
  %v508 = vadd.f32 %v409, %v507
  %v509 = vtanh.pop %v508
  %v510 = vsub.f32 1.0, %v505
  %v511 = vmul.f32 %v510, %v509
  %v512 = vmul.f32 %v505, %v403
  %v513 = vadd.f32 %v511, %v512
  %s514 = scalar_lea.vmem %s3, 16
  %515 = vst [vmem:[%s514] sm:$0xff] %v513
  %s516 = scalar_lea.vmem %s0, 72
  %v517 = vld [vmem:[%s516] sm:$0xff]
  %v518 = vld [vmem:[%s516 + $0x8] sm:$0xff]
  %v519 = vld [vmem:[%s516 + $0x10] sm:$0xff]
  %v520 = vpack.c.bf16 %v513, %v513
  %521 = vmatprep.subr.bf16.mxu0 %v160
  %522 = vmatpush1.bf16.msra.mxu0 %v159
  %523 = vmatprep.subr.bf16.mxu0 %v157
  %524 = vmatpush1.bf16.msra.mxu0 %v156
  %525 = vmatprep.subr.bf16.mxu0 %v154
  %526 = vmatpush1.bf16.msra.mxu0 %v153
  %527 = vmatprep.subr.bf16.mxu0 %v151
  %528 = vmatpush1.bf16.msra.mxu0 %v150
  %529 = vmatprep.subr.bf16.mxu0 %v148
  %530 = vmatpush1.bf16.msra.mxu0 %v147
  %531 = vmatprep.subr.bf16.mxu0 %v145
  %532 = vmatpush1.bf16.msra.mxu0 %v144
  %533 = vmatprep.subr.bf16.mxu0 %v142
  %534 = vmatpush1.bf16.msra.mxu0 %v141
  %535 = vmatprep.subr.bf16.mxu0 %v139
  %536 = vmatpush1.bf16.msra.mxu0 %v138
  %537 = vmatprep.subr.bf16.mxu0 0
  %538 = vmatpush2.bf16.msra.mxu0 0
  %539 = vmatprep.subr.bf16.mxu0 0
  %540 = vmatpush2.bf16.msra.mxu0 0
  %541 = vmatprep.subr.bf16.mxu0 0
  %542 = vmatpush2.bf16.msra.mxu0 0
  %543 = vmatprep.subr.bf16.mxu0 0
  %544 = vmatpush2.bf16.msra.mxu0 0
  %545 = vmatprep.subr.bf16.mxu0 0
  %546 = vmatpush2.bf16.msra.mxu0 0
  %547 = vmatprep.subr.bf16.mxu0 0
  %548 = vmatpush2.bf16.msra.mxu0 0
  %549 = vmatprep.subr.bf16.mxu0 0
  %550 = vmatpush2.bf16.msra.mxu0 0
  %551 = vmatprep.subr.bf16.mxu0 0
  %552 = vmatpush2.bf16.msra.mxu0 0
  %553 = vmatprep.mubr.bf16.mxu0 0
  %554 = vmatmul.mubr.bf16.gmra.mxu0 %v520
  %v555 = vpop.f32.mrf.mxu0
  %v556 = vadd.f32 0.0, %v555
  %v557 = vpop.f32.mrf.mxu0
  %v558 = vadd.f32 0.0, %v557
  %v559 = vpop.f32.mrf.mxu0
  %v560 = vpop.f32.mrf.mxu0
  %561 = vdwg.mxu0
  %562 = vmatprep.subr.bf16.mxu0 0
  %563 = vmatpush1.bf16.msra.mxu0 %v161
  %564 = vmatprep.subr.bf16.mxu0 0
  %565 = vmatpush1.bf16.msra.mxu0 %v158
  %566 = vmatprep.subr.bf16.mxu0 0
  %567 = vmatpush1.bf16.msra.mxu0 %v155
  %568 = vmatprep.subr.bf16.mxu0 0
  %569 = vmatpush1.bf16.msra.mxu0 %v152
  %570 = vmatprep.subr.bf16.mxu0 0
  %571 = vmatpush1.bf16.msra.mxu0 %v149
  %572 = vmatprep.subr.bf16.mxu0 0
  %573 = vmatpush1.bf16.msra.mxu0 %v146
  %574 = vmatprep.subr.bf16.mxu0 0
  %575 = vmatpush1.bf16.msra.mxu0 %v143
  %576 = vmatprep.subr.bf16.mxu0 0
  %577 = vmatpush1.bf16.msra.mxu0 %v140
  %578 = vmatprep.subr.bf16.mxu0 0
  %579 = vmatpush2.bf16.msra.mxu0 0
  %580 = vmatprep.subr.bf16.mxu0 0
  %581 = vmatpush2.bf16.msra.mxu0 0
  %582 = vmatprep.subr.bf16.mxu0 0
  %583 = vmatpush2.bf16.msra.mxu0 0
  %584 = vmatprep.subr.bf16.mxu0 0
  %585 = vmatpush2.bf16.msra.mxu0 0
  %586 = vmatprep.subr.bf16.mxu0 0
  %587 = vmatpush2.bf16.msra.mxu0 0
  %588 = vmatprep.subr.bf16.mxu0 0
  %589 = vmatpush2.bf16.msra.mxu0 0
  %590 = vmatprep.subr.bf16.mxu0 0
  %591 = vmatpush2.bf16.msra.mxu0 0
  %592 = vmatprep.subr.bf16.mxu0 0
  %593 = vmatpush2.bf16.msra.mxu0 0
  %594 = vmatprep.mubr.bf16.mxu0 0
  %595 = vmatmul.mubr.bf16.gmra.mxu0 %v520
  %v596 = vpop.f32.mrf.mxu0
  %v597 = vadd.f32 0.0, %v596
  %v598 = vpop.f32.mrf.mxu0
  %v599 = vpop.f32.mrf.mxu0
  %v600 = vpop.f32.mrf.mxu0
  %601 = vdwg.mxu0
  %v602 = vadd.f32 %v517, %v556
  %v603 = vxor.u32 %v602, 2147483648
  %v604 = vmul.f32 %v603, 1.442695
  %v605 = vpow.pop %v604
  %v606 = vadd.f32 %v605, 1.0
  %v607 = vrcp.pop %v606
  %v608 = vmul.f32 1.0, %v607
  %v609 = vadd.f32 %v518, %v558
  %v610 = vxor.u32 %v609, 2147483648
  %v611 = vmul.f32 %v610, 1.442695
  %v612 = vpow.pop %v611
  %v613 = vadd.f32 %v612, 1.0
  %v614 = vrcp.pop %v613
  %v615 = vmul.f32 1.0, %v614
  %v616 = vadd.f32 %v597, %v285
  %v617 = vmul.f32 %v608, %v616
  %v618 = vadd.f32 %v519, %v617
  %v619 = vtanh.pop %v618
  %v620 = vsub.f32 1.0, %v615
  %v621 = vmul.f32 %v620, %v619
  %v622 = vmul.f32 %v615, %v513
  %v623 = vadd.f32 %v621, %v622
  %s624 = scalar_lea.vmem %s3, 24
  %625 = vst [vmem:[%s624] sm:$0xff] %v623
  %626 = vst [vmem:[#allocation2] sm:$0xff] %v623
  // Predicated region
  $region18: #{forward.10} parent=0 // pred_check
    _
  $region19: #{forward.10} parent=0 // pred_check_branch
    %628 = sbr.rel (0) target = $region21
  $region20: #{forward.10} parent=0 // pred_region
    _
  $region21: #{forward.10} parent=0 // pred_fallthru
    _
  // Predicated region
  $region22: #{forward.10} parent=0 // pred_check
    _
  $region23: #{forward.10} parent=0 // pred_check_branch
    %630 = sbr.rel (0) target = $region25
  $region24: #{forward.10} parent=0 // pred_region
    _
  $region25: #{forward.10} parent=0 // pred_fallthru
    _

// kernel: forward.13
$region0: #{forward.13}
  #allocation0 [shape = 'u32[]', space=smem, size = 0x4, offset = 0x4, fixed_abs, tag = 'smem constant byte address 0x4 - core index']
  #allocation1 [shape = 'u32[144,128]{1,0:T(1,128)}', space=vmem, size = 0x12000, scoped, tag = 'internal scratch']
  %s0 = inlined_call_operand.vmem [shape: f32[8,128], index: 0, kind: input, shape index: {}]
  %s1 = inlined_call_operand.vmem [shape: bf16[128,128], index: 1, kind: input, shape index: {}]
  %s2 = inlined_call_operand.vmem [shape: f32[1,128], index: 2, kind: input, shape index: {}]
  %s3 = inlined_call_operand.vmem [shape: bf16[128,128], index: 3, kind: input, shape index: {}]
  %s4 = inlined_call_operand.vmem [shape: f32[1,128], index: 4, kind: input, shape index: {}]
  %s5 = inlined_call_operand.vmem [shape: bf16[128,128], index: 5, kind: input, shape index: {}]
  %s6 = inlined_call_operand.vmem [shape: f32[1,128], index: 6, kind: input, shape index: {}]
  %s7 = inlined_call_operand.vmem [shape: f32[8,128], index: 7, kind: output, shape index: {}]
  %s8 = sld [smem:[#allocation0]]
  $region38: #{forward.13} parent=0
    _
  %s10 = ssub.s32 1, %s8
  %s11 = scalar_select 0, %s10, %s8
  // Predicated region
  $region2: #{forward.13} parent=0 // pred_check
    _
  $region3: #{forward.13} parent=0 // pred_check_branch
    %13 = sbr.rel (0) target = $region5
  $region4: #{forward.13} parent=0 // pred_region
    _
  $region5: #{forward.13} parent=0 // pred_fallthru
    _
  // Predicated region
  $region6: #{forward.13} parent=0 // pred_check
    _
  $region7: #{forward.13} parent=0 // pred_check_branch
    %15 = sbr.rel (0) target = $region9
  $region8: #{forward.13} parent=0 // pred_region
    _
  $region9: #{forward.13} parent=0 // pred_fallthru
    _
  // Predicated region
  $region10: #{forward.13} parent=0 // pred_check
    _
  $region11: #{forward.13} parent=0 // pred_check_branch
    %17 = sbr.rel (0) target = $region13
  $region12: #{forward.13} parent=0 // pred_region
    _
  $region13: #{forward.13} parent=0 // pred_fallthru
    _
  // Predicated region
  $region14: #{forward.13} parent=0 // pred_check
    _
  $region15: #{forward.13} parent=0 // pred_check_branch
    %19 = sbr.rel (0) target = $region17
  $region16: #{forward.13} parent=0 // pred_region
    _
  $region17: #{forward.13} parent=0 // pred_fallthru
    _
  // Predicated region
  $region18: #{forward.13} parent=0 // pred_check
    _
  $region19: #{forward.13} parent=0 // pred_check_branch
    %21 = sbr.rel (0) target = $region21
  $region20: #{forward.13} parent=0 // pred_region
    _
  $region21: #{forward.13} parent=0 // pred_fallthru
    _
  // Predicated region
  $region22: #{forward.13} parent=0 // pred_check
    _
  $region23: #{forward.13} parent=0 // pred_check_branch
    %23 = sbr.rel (0) target = $region25
  $region24: #{forward.13} parent=0 // pred_region
    _
  $region25: #{forward.13} parent=0 // pred_fallthru
    _
  // Predicated region
  $region26: #{forward.13} parent=0 // pred_check
    _
  $region27: #{forward.13} parent=0 // pred_check_branch
    %25 = sbr.rel (0) target = $region29
  $region28: #{forward.13} parent=0 // pred_region
    _
  $region29: #{forward.13} parent=0 // pred_fallthru
    _
  %v27 = vld [vmem:[%s0] sm:$0xff]
  %v28 = vld [vmem:[%s1] sm:$0xf]
  %v29 = vld [vmem:[%s1 + $0x4] sm:$0xf]
  %v30 = vld [vmem:[%s1 + $0x8] sm:$0xf]
  %v31 = vld [vmem:[%s1 + $0xc] sm:$0xf]
  %v32 = vld [vmem:[%s1 + $0x10] sm:$0xf]
  %v33 = vld [vmem:[%s1 + $0x14] sm:$0xf]
  %v34 = vld [vmem:[%s1 + $0x18] sm:$0xf]
  %v35 = vld [vmem:[%s1 + $0x1c] sm:$0xf]
  %v36 = vld [vmem:[%s1 + $0x20] sm:$0xf]
  %v37 = vld [vmem:[%s1 + $0x24] sm:$0xf]
  %v38 = vld [vmem:[%s1 + $0x28] sm:$0xf]
  %v39 = vld [vmem:[%s1 + $0x2c] sm:$0xf]
  %v40 = vld [vmem:[%s1 + $0x30] sm:$0xf]
  %v41 = vld [vmem:[%s1 + $0x34] sm:$0xf]
  %v42 = vld [vmem:[%s1 + $0x38] sm:$0xf]
  %v43 = vld [vmem:[%s1 + $0x3c] sm:$0xf]
  %v44 = vld [vmem:[%s2] sm:$0x1]
  %v45 = vpack.c.bf16 %v27, %v27
  %v47 = vlaneseq
  %v48 = vshrl.u32 %v47, 7
  %v49 = vsub.s32 0, %v48
  %v50 = vrot.slane %v44, %v49
  %v68 = vunpack.c.l.b16 %v28
  %v69 = vunpack.c.l.b16 %v29
  %v70 = vunpack.c.l.b16 %v30
  %v71 = vunpack.c.l.b16 %v31
  %v72 = vunpack.c.l.b16 %v32
  %v73 = vunpack.c.l.b16 %v33
  %v74 = vunpack.c.l.b16 %v34
  %v75 = vunpack.c.l.b16 %v35
  %v76 = vunpack.c.l.b16 %v36
  %v77 = vunpack.c.l.b16 %v37
  %v78 = vunpack.c.l.b16 %v38
  %v79 = vunpack.c.l.b16 %v39
  %v80 = vunpack.c.l.b16 %v40
  %v81 = vunpack.c.l.b16 %v41
  %v82 = vunpack.c.l.b16 %v42
  %v83 = vunpack.c.l.b16 %v43
  %v84 = vpack.c.b16 %v69, %v68
  %v85 = vpack.c.b16 %v71, %v70
  %v86 = vpack.c.b16 %v73, %v72
  %v87 = vpack.c.b16 %v75, %v74
  %v88 = vpack.c.b16 %v77, %v76
  %v89 = vpack.c.b16 %v79, %v78
  %v90 = vpack.c.b16 %v81, %v80
  %v91 = vpack.c.b16 %v83, %v82
  %100 = vmatprep.subr.bf16.mxu0 0
  %101 = vmatpush1.bf16.msra.mxu0 %v91
  %102 = vmatprep.subr.bf16.mxu0 0
  %103 = vmatpush1.bf16.msra.mxu0 %v90
  %104 = vmatprep.subr.bf16.mxu0 0
  %105 = vmatpush1.bf16.msra.mxu0 %v89
  %106 = vmatprep.subr.bf16.mxu0 0
  %107 = vmatpush1.bf16.msra.mxu0 %v88
  %108 = vmatprep.subr.bf16.mxu0 0
  %109 = vmatpush1.bf16.msra.mxu0 %v87
  %110 = vmatprep.subr.bf16.mxu0 0
  %111 = vmatpush1.bf16.msra.mxu0 %v86
  %112 = vmatprep.subr.bf16.mxu0 0
  %113 = vmatpush1.bf16.msra.mxu0 %v85
  %114 = vmatprep.subr.bf16.mxu0 0
  %115 = vmatpush1.bf16.msra.mxu0 %v84
  %116 = vmatprep.subr.bf16.mxu0 0
  %117 = vmatpush2.bf16.msra.mxu0 0
  %118 = vmatprep.subr.bf16.mxu0 0
  %119 = vmatpush2.bf16.msra.mxu0 0
  %120 = vmatprep.subr.bf16.mxu0 0
  %121 = vmatpush2.bf16.msra.mxu0 0
  %122 = vmatprep.subr.bf16.mxu0 0
  %123 = vmatpush2.bf16.msra.mxu0 0
  %124 = vmatprep.subr.bf16.mxu0 0
  %125 = vmatpush2.bf16.msra.mxu0 0
  %126 = vmatprep.subr.bf16.mxu0 0
  %127 = vmatpush2.bf16.msra.mxu0 0
  %128 = vmatprep.subr.bf16.mxu0 0
  %129 = vmatpush2.bf16.msra.mxu0 0
  %130 = vmatprep.subr.bf16.mxu0 0
  %131 = vmatpush2.bf16.msra.mxu0 0
  %132 = vmatprep.mubr.bf16.mxu0 0
  %133 = vmatmul.mubr.bf16.gmra.mxu0 %v45
  %v134 = vpop.f32.mrf.mxu0
  %v135 = vadd.f32 %v50, %v134
  %v136 = vpop.f32.mrf.mxu0
  %v137 = vpop.f32.mrf.mxu0
  %v138 = vpop.f32.mrf.mxu0
  %139 = vdwg.mxu0
  %v140 = vmax.f32 %v135, 0.0
  %v141 = vld [vmem:[%s3] sm:$0xf]
  %v142 = vld [vmem:[%s3 + $0x4] sm:$0xf]
  %v143 = vld [vmem:[%s3 + $0x8] sm:$0xf]
  %v144 = vld [vmem:[%s3 + $0xc] sm:$0xf]
  %v145 = vld [vmem:[%s3 + $0x10] sm:$0xf]
  %v146 = vld [vmem:[%s3 + $0x14] sm:$0xf]
  %v147 = vld [vmem:[%s3 + $0x18] sm:$0xf]
  %v148 = vld [vmem:[%s3 + $0x1c] sm:$0xf]
  %v149 = vld [vmem:[%s3 + $0x20] sm:$0xf]
  %v150 = vld [vmem:[%s3 + $0x24] sm:$0xf]
  %v151 = vld [vmem:[%s3 + $0x28] sm:$0xf]
  %v152 = vld [vmem:[%s3 + $0x2c] sm:$0xf]
  %v153 = vld [vmem:[%s3 + $0x30] sm:$0xf]
  %v154 = vld [vmem:[%s3 + $0x34] sm:$0xf]
  %v155 = vld [vmem:[%s3 + $0x38] sm:$0xf]
  %v156 = vld [vmem:[%s3 + $0x3c] sm:$0xf]
  %v157 = vld [vmem:[%s4] sm:$0x1]
  %v158 = vpack.c.bf16 %v140, %v140
  %v160 = vlaneseq
  %v161 = vshrl.u32 %v160, 7
  %v162 = vsub.s32 0, %v161
  %v163 = vrot.slane %v157, %v162
  %v181 = vunpack.c.l.b16 %v141
  %v182 = vunpack.c.l.b16 %v142
  %v183 = vunpack.c.l.b16 %v143
  %v184 = vunpack.c.l.b16 %v144
  %v185 = vunpack.c.l.b16 %v145
  %v186 = vunpack.c.l.b16 %v146
  %v187 = vunpack.c.l.b16 %v147
  %v188 = vunpack.c.l.b16 %v148
  %v189 = vunpack.c.l.b16 %v149
  %v190 = vunpack.c.l.b16 %v150
  %v191 = vunpack.c.l.b16 %v151
  %v192 = vunpack.c.l.b16 %v152
  %v193 = vunpack.c.l.b16 %v153
  %v194 = vunpack.c.l.b16 %v154
  %v195 = vunpack.c.l.b16 %v155
  %v196 = vunpack.c.l.b16 %v156
  %v197 = vpack.c.b16 %v182, %v181
  %v198 = vpack.c.b16 %v184, %v183
  %v199 = vpack.c.b16 %v186, %v185
  %v200 = vpack.c.b16 %v188, %v187
  %v201 = vpack.c.b16 %v190, %v189
  %v202 = vpack.c.b16 %v192, %v191
  %v203 = vpack.c.b16 %v194, %v193
  %v204 = vpack.c.b16 %v196, %v195
  %213 = vmatprep.subr.bf16.mxu0 0
  %214 = vmatpush1.bf16.msra.mxu0 %v204
  %215 = vmatprep.subr.bf16.mxu0 0
  %216 = vmatpush1.bf16.msra.mxu0 %v203
  %217 = vmatprep.subr.bf16.mxu0 0
  %218 = vmatpush1.bf16.msra.mxu0 %v202
  %219 = vmatprep.subr.bf16.mxu0 0
  %220 = vmatpush1.bf16.msra.mxu0 %v201
  %221 = vmatprep.subr.bf16.mxu0 0
  %222 = vmatpush1.bf16.msra.mxu0 %v200
  %223 = vmatprep.subr.bf16.mxu0 0
  %224 = vmatpush1.bf16.msra.mxu0 %v199
  %225 = vmatprep.subr.bf16.mxu0 0
  %226 = vmatpush1.bf16.msra.mxu0 %v198
  %227 = vmatprep.subr.bf16.mxu0 0
  %228 = vmatpush1.bf16.msra.mxu0 %v197
  %229 = vmatprep.subr.bf16.mxu0 0
  %230 = vmatpush2.bf16.msra.mxu0 0
  %231 = vmatprep.subr.bf16.mxu0 0
  %232 = vmatpush2.bf16.msra.mxu0 0
  %233 = vmatprep.subr.bf16.mxu0 0
  %234 = vmatpush2.bf16.msra.mxu0 0
  %235 = vmatprep.subr.bf16.mxu0 0
  %236 = vmatpush2.bf16.msra.mxu0 0
  %237 = vmatprep.subr.bf16.mxu0 0
  %238 = vmatpush2.bf16.msra.mxu0 0
  %239 = vmatprep.subr.bf16.mxu0 0
  %240 = vmatpush2.bf16.msra.mxu0 0
  %241 = vmatprep.subr.bf16.mxu0 0
  %242 = vmatpush2.bf16.msra.mxu0 0
  %243 = vmatprep.subr.bf16.mxu0 0
  %244 = vmatpush2.bf16.msra.mxu0 0
  %245 = vmatprep.mubr.bf16.mxu0 0
  %246 = vmatmul.mubr.bf16.gmra.mxu0 %v158
  %v247 = vpop.f32.mrf.mxu0
  %v248 = vadd.f32 %v163, %v247
  %v249 = vpop.f32.mrf.mxu0
  %v250 = vpop.f32.mrf.mxu0
  %v251 = vpop.f32.mrf.mxu0
  %252 = vdwg.mxu0
  %v253 = vmax.f32 %v248, 0.0
  %v254 = vld [vmem:[%s5] sm:$0xf]
  %v255 = vld [vmem:[%s5 + $0x4] sm:$0xf]
  %v256 = vld [vmem:[%s5 + $0x8] sm:$0xf]
  %v257 = vld [vmem:[%s5 + $0xc] sm:$0xf]
  %v258 = vld [vmem:[%s5 + $0x10] sm:$0xf]
  %v259 = vld [vmem:[%s5 + $0x14] sm:$0xf]
  %v260 = vld [vmem:[%s5 + $0x18] sm:$0xf]
  %v261 = vld [vmem:[%s5 + $0x1c] sm:$0xf]
  %v262 = vld [vmem:[%s5 + $0x20] sm:$0xf]
  %v263 = vld [vmem:[%s5 + $0x24] sm:$0xf]
  %v264 = vld [vmem:[%s5 + $0x28] sm:$0xf]
  %v265 = vld [vmem:[%s5 + $0x2c] sm:$0xf]
  %v266 = vld [vmem:[%s5 + $0x30] sm:$0xf]
  %v267 = vld [vmem:[%s5 + $0x34] sm:$0xf]
  %v268 = vld [vmem:[%s5 + $0x38] sm:$0xf]
  %v269 = vld [vmem:[%s5 + $0x3c] sm:$0xf]
  %v270 = vld [vmem:[%s6] sm:$0x1]
  %v271 = vpack.c.bf16 %v253, %v253
  %v273 = vlaneseq
  %v274 = vshrl.u32 %v273, 7
  %v275 = vsub.s32 0, %v274
  %v276 = vrot.slane %v270, %v275
  %v294 = vunpack.c.l.b16 %v254
  %v295 = vunpack.c.l.b16 %v255
  %v296 = vunpack.c.l.b16 %v256
  %v297 = vunpack.c.l.b16 %v257
  %v298 = vunpack.c.l.b16 %v258
  %v299 = vunpack.c.l.b16 %v259
  %v300 = vunpack.c.l.b16 %v260
  %v301 = vunpack.c.l.b16 %v261
  %v302 = vunpack.c.l.b16 %v262
  %v303 = vunpack.c.l.b16 %v263
  %v304 = vunpack.c.l.b16 %v264
  %v305 = vunpack.c.l.b16 %v265
  %v306 = vunpack.c.l.b16 %v266
  %v307 = vunpack.c.l.b16 %v267
  %v308 = vunpack.c.l.b16 %v268
  %v309 = vunpack.c.l.b16 %v269
  %v310 = vpack.c.b16 %v295, %v294
  %v311 = vpack.c.b16 %v297, %v296
  %v312 = vpack.c.b16 %v299, %v298
  %v313 = vpack.c.b16 %v301, %v300
  %v314 = vpack.c.b16 %v303, %v302
  %v315 = vpack.c.b16 %v305, %v304
  %v316 = vpack.c.b16 %v307, %v306
  %v317 = vpack.c.b16 %v309, %v308
  %326 = vmatprep.subr.bf16.mxu0 0
  %327 = vmatpush1.bf16.msra.mxu0 %v317
  %328 = vmatprep.subr.bf16.mxu0 0
  %329 = vmatpush1.bf16.msra.mxu0 %v316
  %330 = vmatprep.subr.bf16.mxu0 0
  %331 = vmatpush1.bf16.msra.mxu0 %v315
  %332 = vmatprep.subr.bf16.mxu0 0
  %333 = vmatpush1.bf16.msra.mxu0 %v314
  %334 = vmatprep.subr.bf16.mxu0 0
  %335 = vmatpush1.bf16.msra.mxu0 %v313
  %336 = vmatprep.subr.bf16.mxu0 0
  %337 = vmatpush1.bf16.msra.mxu0 %v312
  %338 = vmatprep.subr.bf16.mxu0 0
  %339 = vmatpush1.bf16.msra.mxu0 %v311
  %340 = vmatprep.subr.bf16.mxu0 0
  %341 = vmatpush1.bf16.msra.mxu0 %v310
  %342 = vmatprep.subr.bf16.mxu0 0
  %343 = vmatpush2.bf16.msra.mxu0 0
  %344 = vmatprep.subr.bf16.mxu0 0
  %345 = vmatpush2.bf16.msra.mxu0 0
  %346 = vmatprep.subr.bf16.mxu0 0
  %347 = vmatpush2.bf16.msra.mxu0 0
  %348 = vmatprep.subr.bf16.mxu0 0
  %349 = vmatpush2.bf16.msra.mxu0 0
  %350 = vmatprep.subr.bf16.mxu0 0
  %351 = vmatpush2.bf16.msra.mxu0 0
  %352 = vmatprep.subr.bf16.mxu0 0
  %353 = vmatpush2.bf16.msra.mxu0 0
  %354 = vmatprep.subr.bf16.mxu0 0
  %355 = vmatpush2.bf16.msra.mxu0 0
  %356 = vmatprep.subr.bf16.mxu0 0
  %357 = vmatpush2.bf16.msra.mxu0 0
  %358 = vmatprep.mubr.bf16.mxu0 0
  %359 = vmatmul.mubr.bf16.gmra.mxu0 %v271
  %v360 = vpop.f32.mrf.mxu0
  %v361 = vadd.f32 %v276, %v360
  %v362 = vpop.f32.mrf.mxu0
  %v363 = vpop.f32.mrf.mxu0
  %v364 = vpop.f32.mrf.mxu0
  %365 = vdwg.mxu0
  %366 = vst [vmem:[%s7] sm:$0xff] %v361
  // Predicated region
  $region30: #{forward.13} parent=0 // pred_check
    _
  $region31: #{forward.13} parent=0 // pred_check_branch
    %368 = sbr.rel (0) target = $region33
  $region32: #{forward.13} parent=0 // pred_region
    _
  $region33: #{forward.13} parent=0 // pred_fallthru
    _
  // Predicated region
  $region34: #{forward.13} parent=0 // pred_check
    _
  $region35: #{forward.13} parent=0 // pred_check_branch
    %370 = sbr.rel (0) target = $region37
  $region36: #{forward.13} parent=0 // pred_region
    _
  $region37: #{forward.13} parent=0 // pred_fallthru
    _

// kernel: forward.12
$region0: #{forward.12}
  #allocation0 [shape = 'u32[]', space=smem, size = 0x4, offset = 0x4, fixed_abs, tag = 'smem constant byte address 0x4 - core index']
  #allocation1 [shape = 'u32[144,128]{1,0:T(1,128)}', space=vmem, size = 0x12000, scoped, tag = 'internal scratch']
  #allocation2 [shape = 'f32[8,128]{1,0:T(8,128)}', space=vmem, size = 0x1000, scoped, tag = 'scratch operand']
  %s0 = inlined_call_operand.vmem [shape: f32[4,8,384], index: 0, kind: input, shape index: {}]
  %s1 = inlined_call_operand.vmem [shape: bf16[128,384], index: 1, kind: input, shape index: {}]
  %s2 = inlined_call_operand.vmem [shape: f32[1,128], index: 2, kind: input, shape index: {}]
  %s3 = inlined_call_operand.vmem [shape: f32[8,128], index: 3, kind: output, shape index: {}]
  %s4 = sld [smem:[#allocation0]]
  $region26: #{forward.12} parent=0
    _
  %s6 = ssub.s32 1, %s4
  %s7 = scalar_select 0, %s6, %s4
  // Predicated region
  $region2: #{forward.12} parent=0 // pred_check
    _
  $region3: #{forward.12} parent=0 // pred_check_branch
    %9 = sbr.rel (0) target = $region5
  $region4: #{forward.12} parent=0 // pred_region
    _
  $region5: #{forward.12} parent=0 // pred_fallthru
    _
  // Predicated region
  $region6: #{forward.12} parent=0 // pred_check
    _
  $region7: #{forward.12} parent=0 // pred_check_branch
    %11 = sbr.rel (0) target = $region9
  $region8: #{forward.12} parent=0 // pred_region
    _
  $region9: #{forward.12} parent=0 // pred_fallthru
    _
  // Predicated region
  $region10: #{forward.12} parent=0 // pred_check
    _
  $region11: #{forward.12} parent=0 // pred_check_branch
    %13 = sbr.rel (0) target = $region13
  $region12: #{forward.12} parent=0 // pred_region
    _
  $region13: #{forward.12} parent=0 // pred_fallthru
    _
  %p15 = scmp.eq.s32.totalorder 0, 0
  // Predicated region
  $region14: #{forward.12} parent=0 // pred_check
    %p16 = pneg %p15
  $region15: #{forward.12} parent=0 // pred_check_branch
    %18 = sbr.rel (%p16) target = $region17
  $region16: #{forward.12} parent=0 // pred_region
    %19 = vst [vmem:[#allocation2] sm:$0xff] 0.0
  $region17: #{forward.12} parent=0 // pred_fallthru
    _
  %v20 = vld [vmem:[%s1] sm:$0xff]
  %v21 = vld [vmem:[%s1 + $0x8] sm:$0xf]
  %v22 = vld [vmem:[%s1 + $0xc] sm:$0xff]
  %v23 = vld [vmem:[%s1 + $0x14] sm:$0xf]
  %v24 = vld [vmem:[%s1 + $0x18] sm:$0xff]
  %v25 = vld [vmem:[%s1 + $0x20] sm:$0xf]
  %v26 = vld [vmem:[%s1 + $0x24] sm:$0xff]
  %v27 = vld [vmem:[%s1 + $0x2c] sm:$0xf]
  %v28 = vld [vmem:[%s1 + $0x30] sm:$0xff]
  %v29 = vld [vmem:[%s1 + $0x38] sm:$0xf]
  %v30 = vld [vmem:[%s1 + $0x3c] sm:$0xff]
  %v31 = vld [vmem:[%s1 + $0x44] sm:$0xf]
  %v32 = vld [vmem:[%s1 + $0x48] sm:$0xff]
  %v33 = vld [vmem:[%s1 + $0x50] sm:$0xf]
  %v34 = vld [vmem:[%s1 + $0x54] sm:$0xff]
  %v35 = vld [vmem:[%s1 + $0x5c] sm:$0xf]
  %v36 = vld [vmem:[%s1 + $0x60] sm:$0xff]
  %v37 = vld [vmem:[%s1 + $0x68] sm:$0xf]
  %v38 = vld [vmem:[%s1 + $0x6c] sm:$0xff]
  %v39 = vld [vmem:[%s1 + $0x74] sm:$0xf]
  %v40 = vld [vmem:[%s1 + $0x78] sm:$0xff]
  %v41 = vld [vmem:[%s1 + $0x80] sm:$0xf]
  %v42 = vld [vmem:[%s1 + $0x84] sm:$0xff]
  %v43 = vld [vmem:[%s1 + $0x8c] sm:$0xf]
  %v44 = vld [vmem:[%s1 + $0x90] sm:$0xff]
  %v45 = vld [vmem:[%s1 + $0x98] sm:$0xf]
  %v46 = vld [vmem:[%s1 + $0x9c] sm:$0xff]
  %v47 = vld [vmem:[%s1 + $0xa4] sm:$0xf]
  %v48 = vld [vmem:[%s1 + $0xa8] sm:$0xff]
  %v49 = vld [vmem:[%s1 + $0xb0] sm:$0xf]
  %v50 = vld [vmem:[%s1 + $0xb4] sm:$0xff]
  %v51 = vld [vmem:[%s1 + $0xbc] sm:$0xf]
  %v52 = vld [vmem:[%s2] sm:$0x1]
  %v53 = vld [vmem:[#allocation2] sm:$0xff]
  %v54 = vld [vmem:[%s0] sm:$0xff]
  %v55 = vld [vmem:[%s0 + $0x8] sm:$0xff]
  %v56 = vld [vmem:[%s0 + $0x10] sm:$0xff]
  %v57 = vpack.c.bf16 %v53, %v53
  %v90 = vunpack.c.l.b16 %v20
  %v91 = vunpack.c.h.b16 %v20
  %v92 = vunpack.c.l.b16 %v21
  %v93 = vunpack.c.l.b16 %v22
  %v94 = vunpack.c.h.b16 %v22
  %v95 = vunpack.c.l.b16 %v23
  %v96 = vunpack.c.l.b16 %v24
  %v97 = vunpack.c.h.b16 %v24
  %v98 = vunpack.c.l.b16 %v25
  %v99 = vunpack.c.l.b16 %v26
  %v100 = vunpack.c.h.b16 %v26
  %v101 = vunpack.c.l.b16 %v27
  %v102 = vunpack.c.l.b16 %v28
  %v103 = vunpack.c.h.b16 %v28
  %v104 = vunpack.c.l.b16 %v29
  %v105 = vunpack.c.l.b16 %v30
  %v106 = vunpack.c.h.b16 %v30
  %v107 = vunpack.c.l.b16 %v31
  %v108 = vunpack.c.l.b16 %v32
  %v109 = vunpack.c.h.b16 %v32
  %v110 = vunpack.c.l.b16 %v33
  %v111 = vunpack.c.l.b16 %v34
  %v112 = vunpack.c.h.b16 %v34
  %v113 = vunpack.c.l.b16 %v35
  %v114 = vunpack.c.l.b16 %v36
  %v115 = vunpack.c.h.b16 %v36
  %v116 = vunpack.c.l.b16 %v37
  %v117 = vunpack.c.l.b16 %v38
  %v118 = vunpack.c.h.b16 %v38
  %v119 = vunpack.c.l.b16 %v39
  %v120 = vunpack.c.l.b16 %v40
  %v121 = vunpack.c.h.b16 %v40
  %v122 = vunpack.c.l.b16 %v41
  %v123 = vunpack.c.l.b16 %v42
  %v124 = vunpack.c.h.b16 %v42
  %v125 = vunpack.c.l.b16 %v43
  %v126 = vunpack.c.l.b16 %v44
  %v127 = vunpack.c.h.b16 %v44
  %v128 = vunpack.c.l.b16 %v45
  %v129 = vunpack.c.l.b16 %v46
  %v130 = vunpack.c.h.b16 %v46
  %v131 = vunpack.c.l.b16 %v47
  %v132 = vunpack.c.l.b16 %v48
  %v133 = vunpack.c.h.b16 %v48
  %v134 = vunpack.c.l.b16 %v49
  %v135 = vunpack.c.l.b16 %v50
  %v136 = vunpack.c.h.b16 %v50
  %v137 = vunpack.c.l.b16 %v51
  %v138 = vpack.c.b16 %v93, %v90
  %v139 = vpack.c.b16 %v94, %v91
  %v140 = vpack.c.b16 %v95, %v92
  %v141 = vpack.c.b16 %v99, %v96
  %v142 = vpack.c.b16 %v100, %v97
  %v143 = vpack.c.b16 %v101, %v98
  %v144 = vpack.c.b16 %v105, %v102
  %v145 = vpack.c.b16 %v106, %v103
  %v146 = vpack.c.b16 %v107, %v104
  %v147 = vpack.c.b16 %v111, %v108
  %v148 = vpack.c.b16 %v112, %v109
  %v149 = vpack.c.b16 %v113, %v110
  %v150 = vpack.c.b16 %v117, %v114
  %v151 = vpack.c.b16 %v118, %v115
  %v152 = vpack.c.b16 %v119, %v116
  %v153 = vpack.c.b16 %v123, %v120
  %v154 = vpack.c.b16 %v124, %v121
  %v155 = vpack.c.b16 %v125, %v122
  %v156 = vpack.c.b16 %v129, %v126
  %v157 = vpack.c.b16 %v130, %v127
  %v158 = vpack.c.b16 %v131, %v128
  %v159 = vpack.c.b16 %v135, %v132
  %v160 = vpack.c.b16 %v136, %v133
  %v161 = vpack.c.b16 %v137, %v134
  %186 = vmatprep.subr.bf16.mxu0 %v160
  %187 = vmatpush1.bf16.msra.mxu0 %v159
  %188 = vmatprep.subr.bf16.mxu0 %v157
  %189 = vmatpush1.bf16.msra.mxu0 %v156
  %190 = vmatprep.subr.bf16.mxu0 %v154
  %191 = vmatpush1.bf16.msra.mxu0 %v153
  %192 = vmatprep.subr.bf16.mxu0 %v151
  %193 = vmatpush1.bf16.msra.mxu0 %v150
  %194 = vmatprep.subr.bf16.mxu0 %v148
  %195 = vmatpush1.bf16.msra.mxu0 %v147
  %196 = vmatprep.subr.bf16.mxu0 %v145
  %197 = vmatpush1.bf16.msra.mxu0 %v144
  %198 = vmatprep.subr.bf16.mxu0 %v142
  %199 = vmatpush1.bf16.msra.mxu0 %v141
  %200 = vmatprep.subr.bf16.mxu0 %v139
  %201 = vmatpush1.bf16.msra.mxu0 %v138
  %202 = vmatprep.subr.bf16.mxu0 0
  %203 = vmatpush2.bf16.msra.mxu0 0
  %204 = vmatprep.subr.bf16.mxu0 0
  %205 = vmatpush2.bf16.msra.mxu0 0
  %206 = vmatprep.subr.bf16.mxu0 0
  %207 = vmatpush2.bf16.msra.mxu0 0
  %208 = vmatprep.subr.bf16.mxu0 0
  %209 = vmatpush2.bf16.msra.mxu0 0
  %210 = vmatprep.subr.bf16.mxu0 0
  %211 = vmatpush2.bf16.msra.mxu0 0
  %212 = vmatprep.subr.bf16.mxu0 0
  %213 = vmatpush2.bf16.msra.mxu0 0
  %214 = vmatprep.subr.bf16.mxu0 0
  %215 = vmatpush2.bf16.msra.mxu0 0
  %216 = vmatprep.subr.bf16.mxu0 0
  %217 = vmatpush2.bf16.msra.mxu0 0
  %218 = vmatprep.mubr.bf16.mxu0 0
  %219 = vmatmul.mubr.bf16.gmra.mxu0 %v57
  %v220 = vpop.f32.mrf.mxu0
  %v221 = vadd.f32 0.0, %v220
  %v222 = vpop.f32.mrf.mxu0
  %v223 = vadd.f32 0.0, %v222
  %v224 = vpop.f32.mrf.mxu0
  %v225 = vpop.f32.mrf.mxu0
  %226 = vdwg.mxu0
  %227 = vmatprep.subr.bf16.mxu0 0
  %228 = vmatpush1.bf16.msra.mxu0 %v161
  %229 = vmatprep.subr.bf16.mxu0 0
  %230 = vmatpush1.bf16.msra.mxu0 %v158
  %231 = vmatprep.subr.bf16.mxu0 0
  %232 = vmatpush1.bf16.msra.mxu0 %v155
  %233 = vmatprep.subr.bf16.mxu0 0
  %234 = vmatpush1.bf16.msra.mxu0 %v152
  %235 = vmatprep.subr.bf16.mxu0 0
  %236 = vmatpush1.bf16.msra.mxu0 %v149
  %237 = vmatprep.subr.bf16.mxu0 0
  %238 = vmatpush1.bf16.msra.mxu0 %v146
  %239 = vmatprep.subr.bf16.mxu0 0
  %240 = vmatpush1.bf16.msra.mxu0 %v143
  %241 = vmatprep.subr.bf16.mxu0 0
  %242 = vmatpush1.bf16.msra.mxu0 %v140
  %243 = vmatprep.subr.bf16.mxu0 0
  %244 = vmatpush2.bf16.msra.mxu0 0
  %245 = vmatprep.subr.bf16.mxu0 0
  %246 = vmatpush2.bf16.msra.mxu0 0
  %247 = vmatprep.subr.bf16.mxu0 0
  %248 = vmatpush2.bf16.msra.mxu0 0
  %249 = vmatprep.subr.bf16.mxu0 0
  %250 = vmatpush2.bf16.msra.mxu0 0
  %251 = vmatprep.subr.bf16.mxu0 0
  %252 = vmatpush2.bf16.msra.mxu0 0
  %253 = vmatprep.subr.bf16.mxu0 0
  %254 = vmatpush2.bf16.msra.mxu0 0
  %255 = vmatprep.subr.bf16.mxu0 0
  %256 = vmatpush2.bf16.msra.mxu0 0
  %257 = vmatprep.subr.bf16.mxu0 0
  %258 = vmatpush2.bf16.msra.mxu0 0
  %259 = vmatprep.mubr.bf16.mxu0 0
  %260 = vmatmul.mubr.bf16.gmra.mxu0 %v57
  %v261 = vpop.f32.mrf.mxu0
  %v262 = vadd.f32 0.0, %v261
  %v263 = vpop.f32.mrf.mxu0
  %v264 = vpop.f32.mrf.mxu0
  %v265 = vpop.f32.mrf.mxu0
  %266 = vdwg.mxu0
  %v267 = vadd.f32 %v54, %v221
  %v268 = vxor.u32 %v267, 2147483648
  %v269 = vmul.f32 %v268, 1.442695
  %v270 = vpow.pop %v269
  %v271 = vadd.f32 %v270, 1.0
  %v272 = vrcp.pop %v271
  %v273 = vmul.f32 1.0, %v272
  %v274 = vadd.f32 %v55, %v223
  %v275 = vxor.u32 %v274, 2147483648
  %v276 = vmul.f32 %v275, 1.442695
  %v277 = vpow.pop %v276
  %v278 = vadd.f32 %v277, 1.0
  %v279 = vrcp.pop %v278
  %v280 = vmul.f32 1.0, %v279
  %v282 = vlaneseq
  %v283 = vshrl.u32 %v282, 7
  %v284 = vsub.s32 0, %v283
  %v285 = vrot.slane %v52, %v284
  %v287 = vadd.f32 %v262, %v285
  %v288 = vmul.f32 %v273, %v287
  %v289 = vadd.f32 %v56, %v288
  %v290 = vtanh.pop %v289
  %v291 = vsub.f32 1.0, %v280
  %v292 = vmul.f32 %v291, %v290
  %v293 = vmul.f32 %v280, %v53
  %v294 = vadd.f32 %v292, %v293
  %s295 = scalar_lea.vmem %s0, 24
  %v296 = vld [vmem:[%s295] sm:$0xff]
  %v297 = vld [vmem:[%s295 + $0x8] sm:$0xff]
  %v298 = vld [vmem:[%s295 + $0x10] sm:$0xff]
  %v299 = vpack.c.bf16 %v294, %v294
  %300 = vmatprep.subr.bf16.mxu0 %v160
  %301 = vmatpush1.bf16.msra.mxu0 %v159
  %302 = vmatprep.subr.bf16.mxu0 %v157
  %303 = vmatpush1.bf16.msra.mxu0 %v156
  %304 = vmatprep.subr.bf16.mxu0 %v154
  %305 = vmatpush1.bf16.msra.mxu0 %v153
  %306 = vmatprep.subr.bf16.mxu0 %v151
  %307 = vmatpush1.bf16.msra.mxu0 %v150
  %308 = vmatprep.subr.bf16.mxu0 %v148
  %309 = vmatpush1.bf16.msra.mxu0 %v147
  %310 = vmatprep.subr.bf16.mxu0 %v145
  %311 = vmatpush1.bf16.msra.mxu0 %v144
  %312 = vmatprep.subr.bf16.mxu0 %v142
  %313 = vmatpush1.bf16.msra.mxu0 %v141
  %314 = vmatprep.subr.bf16.mxu0 %v139
  %315 = vmatpush1.bf16.msra.mxu0 %v138
  %316 = vmatprep.subr.bf16.mxu0 0
  %317 = vmatpush2.bf16.msra.mxu0 0
  %318 = vmatprep.subr.bf16.mxu0 0
  %319 = vmatpush2.bf16.msra.mxu0 0
  %320 = vmatprep.subr.bf16.mxu0 0
  %321 = vmatpush2.bf16.msra.mxu0 0
  %322 = vmatprep.subr.bf16.mxu0 0
  %323 = vmatpush2.bf16.msra.mxu0 0
  %324 = vmatprep.subr.bf16.mxu0 0
  %325 = vmatpush2.bf16.msra.mxu0 0
  %326 = vmatprep.subr.bf16.mxu0 0
  %327 = vmatpush2.bf16.msra.mxu0 0
  %328 = vmatprep.subr.bf16.mxu0 0
  %329 = vmatpush2.bf16.msra.mxu0 0
  %330 = vmatprep.subr.bf16.mxu0 0
  %331 = vmatpush2.bf16.msra.mxu0 0
  %332 = vmatprep.mubr.bf16.mxu0 0
  %333 = vmatmul.mubr.bf16.gmra.mxu0 %v299
  %v334 = vpop.f32.mrf.mxu0
  %v335 = vadd.f32 0.0, %v334
  %v336 = vpop.f32.mrf.mxu0
  %v337 = vadd.f32 0.0, %v336
  %v338 = vpop.f32.mrf.mxu0
  %v339 = vpop.f32.mrf.mxu0
  %340 = vdwg.mxu0
  %341 = vmatprep.subr.bf16.mxu0 0
  %342 = vmatpush1.bf16.msra.mxu0 %v161
  %343 = vmatprep.subr.bf16.mxu0 0
  %344 = vmatpush1.bf16.msra.mxu0 %v158
  %345 = vmatprep.subr.bf16.mxu0 0
  %346 = vmatpush1.bf16.msra.mxu0 %v155
  %347 = vmatprep.subr.bf16.mxu0 0
  %348 = vmatpush1.bf16.msra.mxu0 %v152
  %349 = vmatprep.subr.bf16.mxu0 0
  %350 = vmatpush1.bf16.msra.mxu0 %v149
  %351 = vmatprep.subr.bf16.mxu0 0
  %352 = vmatpush1.bf16.msra.mxu0 %v146
  %353 = vmatprep.subr.bf16.mxu0 0
  %354 = vmatpush1.bf16.msra.mxu0 %v143
  %355 = vmatprep.subr.bf16.mxu0 0
  %356 = vmatpush1.bf16.msra.mxu0 %v140
  %357 = vmatprep.subr.bf16.mxu0 0
  %358 = vmatpush2.bf16.msra.mxu0 0
  %359 = vmatprep.subr.bf16.mxu0 0
  %360 = vmatpush2.bf16.msra.mxu0 0
  %361 = vmatprep.subr.bf16.mxu0 0
  %362 = vmatpush2.bf16.msra.mxu0 0
  %363 = vmatprep.subr.bf16.mxu0 0
  %364 = vmatpush2.bf16.msra.mxu0 0
  %365 = vmatprep.subr.bf16.mxu0 0
  %366 = vmatpush2.bf16.msra.mxu0 0
  %367 = vmatprep.subr.bf16.mxu0 0
  %368 = vmatpush2.bf16.msra.mxu0 0
  %369 = vmatprep.subr.bf16.mxu0 0
  %370 = vmatpush2.bf16.msra.mxu0 0
  %371 = vmatprep.subr.bf16.mxu0 0
  %372 = vmatpush2.bf16.msra.mxu0 0
  %373 = vmatprep.mubr.bf16.mxu0 0
  %374 = vmatmul.mubr.bf16.gmra.mxu0 %v299
  %v375 = vpop.f32.mrf.mxu0
  %v376 = vadd.f32 0.0, %v375
  %v377 = vpop.f32.mrf.mxu0
  %v378 = vpop.f32.mrf.mxu0
  %v379 = vpop.f32.mrf.mxu0
  %380 = vdwg.mxu0
  %v381 = vadd.f32 %v296, %v335
  %v382 = vxor.u32 %v381, 2147483648
  %v383 = vmul.f32 %v382, 1.442695
  %v384 = vpow.pop %v383
  %v385 = vadd.f32 %v384, 1.0
  %v386 = vrcp.pop %v385
  %v387 = vmul.f32 1.0, %v386
  %v388 = vadd.f32 %v297, %v337
  %v389 = vxor.u32 %v388, 2147483648
  %v390 = vmul.f32 %v389, 1.442695
  %v391 = vpow.pop %v390
  %v392 = vadd.f32 %v391, 1.0
  %v393 = vrcp.pop %v392
  %v394 = vmul.f32 1.0, %v393
  %v395 = vadd.f32 %v376, %v285
  %v396 = vmul.f32 %v387, %v395
  %v397 = vadd.f32 %v298, %v396
  %v398 = vtanh.pop %v397
  %v399 = vsub.f32 1.0, %v394
  %v400 = vmul.f32 %v399, %v398
  %v401 = vmul.f32 %v394, %v294
  %v402 = vadd.f32 %v400, %v401
  %s403 = scalar_lea.vmem %s0, 48
  %v404 = vld [vmem:[%s403] sm:$0xff]
  %v405 = vld [vmem:[%s403 + $0x8] sm:$0xff]
  %v406 = vld [vmem:[%s403 + $0x10] sm:$0xff]
  %v407 = vpack.c.bf16 %v402, %v402
  %408 = vmatprep.subr.bf16.mxu0 %v160
  %409 = vmatpush1.bf16.msra.mxu0 %v159
  %410 = vmatprep.subr.bf16.mxu0 %v157
  %411 = vmatpush1.bf16.msra.mxu0 %v156
  %412 = vmatprep.subr.bf16.mxu0 %v154
  %413 = vmatpush1.bf16.msra.mxu0 %v153
  %414 = vmatprep.subr.bf16.mxu0 %v151
  %415 = vmatpush1.bf16.msra.mxu0 %v150
  %416 = vmatprep.subr.bf16.mxu0 %v148
  %417 = vmatpush1.bf16.msra.mxu0 %v147
  %418 = vmatprep.subr.bf16.mxu0 %v145
  %419 = vmatpush1.bf16.msra.mxu0 %v144
  %420 = vmatprep.subr.bf16.mxu0 %v142
  %421 = vmatpush1.bf16.msra.mxu0 %v141
  %422 = vmatprep.subr.bf16.mxu0 %v139
  %423 = vmatpush1.bf16.msra.mxu0 %v138
  %424 = vmatprep.subr.bf16.mxu0 0
  %425 = vmatpush2.bf16.msra.mxu0 0
  %426 = vmatprep.subr.bf16.mxu0 0
  %427 = vmatpush2.bf16.msra.mxu0 0
  %428 = vmatprep.subr.bf16.mxu0 0
  %429 = vmatpush2.bf16.msra.mxu0 0
  %430 = vmatprep.subr.bf16.mxu0 0
  %431 = vmatpush2.bf16.msra.mxu0 0
  %432 = vmatprep.subr.bf16.mxu0 0
  %433 = vmatpush2.bf16.msra.mxu0 0
  %434 = vmatprep.subr.bf16.mxu0 0
  %435 = vmatpush2.bf16.msra.mxu0 0
  %436 = vmatprep.subr.bf16.mxu0 0
  %437 = vmatpush2.bf16.msra.mxu0 0
  %438 = vmatprep.subr.bf16.mxu0 0
  %439 = vmatpush2.bf16.msra.mxu0 0
  %440 = vmatprep.mubr.bf16.mxu0 0
  %441 = vmatmul.mubr.bf16.gmra.mxu0 %v407
  %v442 = vpop.f32.mrf.mxu0
  %v443 = vadd.f32 0.0, %v442
  %v444 = vpop.f32.mrf.mxu0
  %v445 = vadd.f32 0.0, %v444
  %v446 = vpop.f32.mrf.mxu0
  %v447 = vpop.f32.mrf.mxu0
  %448 = vdwg.mxu0
  %449 = vmatprep.subr.bf16.mxu0 0
  %450 = vmatpush1.bf16.msra.mxu0 %v161
  %451 = vmatprep.subr.bf16.mxu0 0
  %452 = vmatpush1.bf16.msra.mxu0 %v158
  %453 = vmatprep.subr.bf16.mxu0 0
  %454 = vmatpush1.bf16.msra.mxu0 %v155
  %455 = vmatprep.subr.bf16.mxu0 0
  %456 = vmatpush1.bf16.msra.mxu0 %v152
  %457 = vmatprep.subr.bf16.mxu0 0
  %458 = vmatpush1.bf16.msra.mxu0 %v149
  %459 = vmatprep.subr.bf16.mxu0 0
  %460 = vmatpush1.bf16.msra.mxu0 %v146
  %461 = vmatprep.subr.bf16.mxu0 0
  %462 = vmatpush1.bf16.msra.mxu0 %v143
  %463 = vmatprep.subr.bf16.mxu0 0
  %464 = vmatpush1.bf16.msra.mxu0 %v140
  %465 = vmatprep.subr.bf16.mxu0 0
  %466 = vmatpush2.bf16.msra.mxu0 0
  %467 = vmatprep.subr.bf16.mxu0 0
  %468 = vmatpush2.bf16.msra.mxu0 0
  %469 = vmatprep.subr.bf16.mxu0 0
  %470 = vmatpush2.bf16.msra.mxu0 0
  %471 = vmatprep.subr.bf16.mxu0 0
  %472 = vmatpush2.bf16.msra.mxu0 0
  %473 = vmatprep.subr.bf16.mxu0 0
  %474 = vmatpush2.bf16.msra.mxu0 0
  %475 = vmatprep.subr.bf16.mxu0 0
  %476 = vmatpush2.bf16.msra.mxu0 0
  %477 = vmatprep.subr.bf16.mxu0 0
  %478 = vmatpush2.bf16.msra.mxu0 0
  %479 = vmatprep.subr.bf16.mxu0 0
  %480 = vmatpush2.bf16.msra.mxu0 0
  %481 = vmatprep.mubr.bf16.mxu0 0
  %482 = vmatmul.mubr.bf16.gmra.mxu0 %v407
  %v483 = vpop.f32.mrf.mxu0
  %v484 = vadd.f32 0.0, %v483
  %v485 = vpop.f32.mrf.mxu0
  %v486 = vpop.f32.mrf.mxu0
  %v487 = vpop.f32.mrf.mxu0
  %488 = vdwg.mxu0
  %v489 = vadd.f32 %v404, %v443
  %v490 = vxor.u32 %v489, 2147483648
  %v491 = vmul.f32 %v490, 1.442695
  %v492 = vpow.pop %v491
  %v493 = vadd.f32 %v492, 1.0
  %v494 = vrcp.pop %v493
  %v495 = vmul.f32 1.0, %v494
  %v496 = vadd.f32 %v405, %v445
  %v497 = vxor.u32 %v496, 2147483648
  %v498 = vmul.f32 %v497, 1.442695
  %v499 = vpow.pop %v498
  %v500 = vadd.f32 %v499, 1.0
  %v501 = vrcp.pop %v500
  %v502 = vmul.f32 1.0, %v501
  %v503 = vadd.f32 %v484, %v285
  %v504 = vmul.f32 %v495, %v503
  %v505 = vadd.f32 %v406, %v504
  %v506 = vtanh.pop %v505
  %v507 = vsub.f32 1.0, %v502
  %v508 = vmul.f32 %v507, %v506
  %v509 = vmul.f32 %v502, %v402
  %v510 = vadd.f32 %v508, %v509
  %s511 = scalar_lea.vmem %s0, 72
  %v512 = vld [vmem:[%s511] sm:$0xff]
  %v513 = vld [vmem:[%s511 + $0x8] sm:$0xff]
  %v514 = vld [vmem:[%s511 + $0x10] sm:$0xff]
  %v515 = vpack.c.bf16 %v510, %v510
  %516 = vmatprep.subr.bf16.mxu0 %v160
  %517 = vmatpush1.bf16.msra.mxu0 %v159
  %518 = vmatprep.subr.bf16.mxu0 %v157
  %519 = vmatpush1.bf16.msra.mxu0 %v156
  %520 = vmatprep.subr.bf16.mxu0 %v154
  %521 = vmatpush1.bf16.msra.mxu0 %v153
  %522 = vmatprep.subr.bf16.mxu0 %v151
  %523 = vmatpush1.bf16.msra.mxu0 %v150
  %524 = vmatprep.subr.bf16.mxu0 %v148
  %525 = vmatpush1.bf16.msra.mxu0 %v147
  %526 = vmatprep.subr.bf16.mxu0 %v145
  %527 = vmatpush1.bf16.msra.mxu0 %v144
  %528 = vmatprep.subr.bf16.mxu0 %v142
  %529 = vmatpush1.bf16.msra.mxu0 %v141
  %530 = vmatprep.subr.bf16.mxu0 %v139
  %531 = vmatpush1.bf16.msra.mxu0 %v138
  %532 = vmatprep.subr.bf16.mxu0 0
  %533 = vmatpush2.bf16.msra.mxu0 0
  %534 = vmatprep.subr.bf16.mxu0 0
  %535 = vmatpush2.bf16.msra.mxu0 0
  %536 = vmatprep.subr.bf16.mxu0 0
  %537 = vmatpush2.bf16.msra.mxu0 0
  %538 = vmatprep.subr.bf16.mxu0 0
  %539 = vmatpush2.bf16.msra.mxu0 0
  %540 = vmatprep.subr.bf16.mxu0 0
  %541 = vmatpush2.bf16.msra.mxu0 0
  %542 = vmatprep.subr.bf16.mxu0 0
  %543 = vmatpush2.bf16.msra.mxu0 0
  %544 = vmatprep.subr.bf16.mxu0 0
  %545 = vmatpush2.bf16.msra.mxu0 0
  %546 = vmatprep.subr.bf16.mxu0 0
  %547 = vmatpush2.bf16.msra.mxu0 0
  %548 = vmatprep.mubr.bf16.mxu0 0
  %549 = vmatmul.mubr.bf16.gmra.mxu0 %v515
  %v550 = vpop.f32.mrf.mxu0
  %v551 = vadd.f32 0.0, %v550
  %v552 = vpop.f32.mrf.mxu0
  %v553 = vadd.f32 0.0, %v552
  %v554 = vpop.f32.mrf.mxu0
  %v555 = vpop.f32.mrf.mxu0
  %556 = vdwg.mxu0
  %557 = vmatprep.subr.bf16.mxu0 0
  %558 = vmatpush1.bf16.msra.mxu0 %v161
  %559 = vmatprep.subr.bf16.mxu0 0
  %560 = vmatpush1.bf16.msra.mxu0 %v158
  %561 = vmatprep.subr.bf16.mxu0 0
  %562 = vmatpush1.bf16.msra.mxu0 %v155
  %563 = vmatprep.subr.bf16.mxu0 0
  %564 = vmatpush1.bf16.msra.mxu0 %v152
  %565 = vmatprep.subr.bf16.mxu0 0
  %566 = vmatpush1.bf16.msra.mxu0 %v149
  %567 = vmatprep.subr.bf16.mxu0 0
  %568 = vmatpush1.bf16.msra.mxu0 %v146
  %569 = vmatprep.subr.bf16.mxu0 0
  %570 = vmatpush1.bf16.msra.mxu0 %v143
  %571 = vmatprep.subr.bf16.mxu0 0
  %572 = vmatpush1.bf16.msra.mxu0 %v140
  %573 = vmatprep.subr.bf16.mxu0 0
  %574 = vmatpush2.bf16.msra.mxu0 0
  %575 = vmatprep.subr.bf16.mxu0 0
  %576 = vmatpush2.bf16.msra.mxu0 0
  %577 = vmatprep.subr.bf16.mxu0 0
  %578 = vmatpush2.bf16.msra.mxu0 0
  %579 = vmatprep.subr.bf16.mxu0 0
  %580 = vmatpush2.bf16.msra.mxu0 0
  %581 = vmatprep.subr.bf16.mxu0 0
  %582 = vmatpush2.bf16.msra.mxu0 0
  %583 = vmatprep.subr.bf16.mxu0 0
  %584 = vmatpush2.bf16.msra.mxu0 0
  %585 = vmatprep.subr.bf16.mxu0 0
  %586 = vmatpush2.bf16.msra.mxu0 0
  %587 = vmatprep.subr.bf16.mxu0 0
  %588 = vmatpush2.bf16.msra.mxu0 0
  %589 = vmatprep.mubr.bf16.mxu0 0
  %590 = vmatmul.mubr.bf16.gmra.mxu0 %v515
  %v591 = vpop.f32.mrf.mxu0
  %v592 = vadd.f32 0.0, %v591
  %v593 = vpop.f32.mrf.mxu0
  %v594 = vpop.f32.mrf.mxu0
  %v595 = vpop.f32.mrf.mxu0
  %596 = vdwg.mxu0
  %v597 = vadd.f32 %v512, %v551
  %v598 = vxor.u32 %v597, 2147483648
  %v599 = vmul.f32 %v598, 1.442695
  %v600 = vpow.pop %v599
  %v601 = vadd.f32 %v600, 1.0
  %v602 = vrcp.pop %v601
  %v603 = vmul.f32 1.0, %v602
  %v604 = vadd.f32 %v513, %v553
  %v605 = vxor.u32 %v604, 2147483648
  %v606 = vmul.f32 %v605, 1.442695
  %v607 = vpow.pop %v606
  %v608 = vadd.f32 %v607, 1.0
  %v609 = vrcp.pop %v608
  %v610 = vmul.f32 1.0, %v609
  %v611 = vadd.f32 %v592, %v285
  %v612 = vmul.f32 %v603, %v611
  %v613 = vadd.f32 %v514, %v612
  %v614 = vtanh.pop %v613
  %v615 = vsub.f32 1.0, %v610
  %v616 = vmul.f32 %v615, %v614
  %v617 = vmul.f32 %v610, %v510
  %v618 = vadd.f32 %v616, %v617
  %619 = vst [vmem:[#allocation2] sm:$0xff] %v618
  %620 = vst [vmem:[%s3] sm:$0xff] %v618
  // Predicated region
  $region18: #{forward.12} parent=0 // pred_check
    _
  $region19: #{forward.12} parent=0 // pred_check_branch
    %622 = sbr.rel (0) target = $region21
  $region20: #{forward.12} parent=0 // pred_region
    _
  $region21: #{forward.12} parent=0 // pred_fallthru
    _
  // Predicated region
  $region22: #{forward.12} parent=0 // pred_check
    _
  $region23: #{forward.12} parent=0 // pred_check_branch
    %624 = sbr.rel (0) target = $region25
  $region24: #{forward.12} parent=0 // pred_region
    _
  $region25: #{forward.12} parent=0 // pred_fallthru
    _

</llo_original>
